<compile_context>
chip_gen: v7x
topology: tpu7x:2x2x1
jax: 0.10.0
libtpu: 0.0.40
codegen_flags: <defaults>
</compile_context>

<pallas_src>
import functools

import jax
import jax.numpy as jnp
import numpy as np
from jax.experimental import pallas as pl
from jax.experimental.pallas import tpu as pltpu

EPS = 1e-5
MXU_DTYPE = jnp.bfloat16          # matmul operand dtype (f32 accumulation)

_TAPS = [(kh, kw) for kh in range(3) for kw in range(3)]


# ---------------------------------------------------------------------------
# In-kernel helpers (trace-time Python, static shapes)
# ---------------------------------------------------------------------------
def _zero_ring_plain(pad, bn, hp, wp, c):
    """Zero only the 1-pixel border of a (bn, hp, wp, c) padded scratch."""
    zr = jnp.zeros((bn, 1, wp, c), jnp.float32)
    pad[:, 0:1, :, :] = zr
    pad[:, hp - 1:hp, :, :] = zr
    zc = jnp.zeros((bn, hp, 1, c), jnp.float32)
    pad[:, :, 0:1, :] = zc
    pad[:, :, wp - 1:wp, :] = zc


def _fill_interior_plain(pad, act, h, w):
    """act: (bn, h, w, c) -> interior of (bn, h+2, w+2, c) padded scratch."""
    pad[:, 1:h + 1, 1:w + 1, :] = act


def _zero_ring_parity(pad, bn, hh, wh, c):
    """Zero the never-overwritten strip of each padded parity plane.

    pad: (bn, 4, hh+1, wh+1, c); plane (pa, pb) interior is [a:a+hh, b:b+wh]
    with a = 1-pa, b = 1-pb, so exactly one row-strip and one col-strip per
    plane stay untouched and must be the conv zero padding."""
    for pa in range(2):
        for pb in range(2):
            q = pa * 2 + pb
            r = 0 if pa == 0 else hh
            s = 0 if pb == 0 else wh
            pad[:, q, r:r + 1, :, :] = jnp.zeros((bn, 1, wh + 1, c), jnp.float32)
            pad[:, q, :, s:s + 1, :] = jnp.zeros((bn, hh + 1, 1, c), jnp.float32)


def _fill_interior_parity(pad, act, hh, wh):
    """act: (bn, 4, hh, wh, c) parity planes of the UNPADDED image.

    Padded-parity plane (pa, pb) holds original-parity (1-pa, 1-pb) data at
    row/col offset (1-pa, 1-pb)."""
    for pa in range(2):
        for pb in range(2):
            a, b = 1 - pa, 1 - pb
            pad[:, pa * 2 + pb, a:a + hh, b:b + wh, :] = act[:, a * 2 + b]


def _conv3x3_acc(pad, w_ref, stride, ho, wo, rows, cin, cout):
    """3x3 conv of whatever tile sits in the padded scratch `pad`, as 9
    accumulated per-tap MXU dots (bf16 operands, f32 accumulation)."""
    acc = jnp.zeros((rows, cout), jnp.float32)
    for t, (kh, kw) in enumerate(_TAPS):
        if stride == 1:
            p = pad[:, kh:kh + ho, kw:kw + wo, :]
        else:
            q = (kh % 2) * 2 + (kw % 2)               # padded-parity plane
            p = pad[:, q, kh // 2:kh // 2 + ho, kw // 2:kw // 2 + wo, :]
        p2 = p.reshape(rows, cin).astype(MXU_DTYPE)
        acc = acc + jnp.dot(p2, w_ref[t], preferred_element_type=jnp.float32)
    return acc


# ---------------------------------------------------------------------------
# Kernel A: bn1 + relu + conv1 (+ BN2 statistic partials)
# ---------------------------------------------------------------------------
def _make_conv1_kernel(bn, h, w, cin, cout, stride):
    ho, wo = h // stride, w // stride
    rows = bn * ho * wo
    hh, wh = h // 2, w // 2

    def kernel(x_ref, s1_ref, t1_ref, w1_ref, b1_ref, c1_ref, st_ref, pad_a):
        # BN1 (folded scale/shift, computed in the wrapper) + ReLU, f32.
        xv = x_ref[...]
        h1 = jnp.maximum(xv.reshape(-1, cin) * s1_ref[...] + t1_ref[...], 0.0)
        h1 = h1.reshape(xv.shape)

        # Conv zero-padding: zero only the halo ring, overwrite the interior.
        if stride == 1:
            _zero_ring_plain(pad_a, bn, h + 2, w + 2, cin)
            _fill_interior_plain(pad_a, h1, h, w)
        else:
            _zero_ring_parity(pad_a, bn, hh, wh, cin)
            _fill_interior_parity(pad_a, h1, hh, wh)

        # conv1: 9 accumulated per-tap dots.
        c1 = _conv3x3_acc(pad_a, w1_ref, stride, ho, wo, rows, cin, cout)
        c1 = c1 + b1_ref[...]
        # dropout(p=0.0) is the identity here.
        c1_ref[...] = c1.reshape(bn, ho, wo, cout)

        # Per-tile BN2 partial statistics (single pass: sum and sum of squares).
        s = jnp.sum(c1, axis=0, keepdims=True)
        ss = jnp.sum(c1 * c1, axis=0, keepdims=True)
        st_ref[...] = jnp.concatenate([s, ss], axis=0).reshape(1, 2, cout)

    return kernel


# ---------------------------------------------------------------------------
# Kernel B: bn2 + relu + conv2 + skip (+ residual add)
# ---------------------------------------------------------------------------
def _make_conv2_kernel(bn, h, w, cin, cout, stride, has_skip_conv):
    ho, wo = h // stride, w // stride
    rows = bn * ho * wo
    hh, wh = h // 2, w // 2

    def kernel(*refs):
        if has_skip_conv:
            (c1_ref, x_ref, s2_ref, t2_ref, w2_ref, b2_ref, ws_ref, bs_ref,
             out_ref, pad_b, pad_x) = refs
        else:
            (c1_ref, x_ref, s2_ref, t2_ref, w2_ref, b2_ref,
             out_ref, pad_b) = refs

        # BN2 (folded scale/shift from the wrapper) + ReLU on conv1 output.
        c1v = c1_ref[...]
        h2 = jnp.maximum(c1v.reshape(rows, cout) * s2_ref[...] + t2_ref[...], 0.0)

        # conv2 (stride 1 on the (ho, wo) grid).
        _zero_ring_plain(pad_b, bn, ho + 2, wo + 2, cout)
        _fill_interior_plain(pad_b, h2.reshape(bn, ho, wo, cout), ho, wo)
        out = _conv3x3_acc(pad_b, w2_ref, 1, ho, wo, rows, cout, cout)
        out = out + b2_ref[...]

        # Skip connection.
        if has_skip_conv:
            xv = x_ref[...]
            if stride == 1:
                _zero_ring_plain(pad_x, bn, h + 2, w + 2, cin)
                _fill_interior_plain(pad_x, xv, h, w)
            else:
                _zero_ring_parity(pad_x, bn, hh, wh, cin)
                _fill_interior_parity(pad_x, xv, hh, wh)
            skip = _conv3x3_acc(pad_x, ws_ref, stride, ho, wo, rows, cin, cout)
            out = out + skip + bs_ref[...]
        else:
            out = out + x_ref[...].reshape(rows, cout)   # identity skip, exact f32

        out_ref[...] = out.reshape(bn, ho, wo, cout)

    return kernel


# ---------------------------------------------------------------------------
# Wrapper helpers
# ---------------------------------------------------------------------------
def _pick_batch_tile(n, per_image_bytes, budget=6 * 1024 * 1024):
    """Largest batch tile that divides n, fits the per-step VMEM budget and
    (when possible) leaves >= 2 grid steps for pipelining / megacore."""
    bn = 1
    for cand in range(2, n + 1):
        if n % cand:
            continue
        if cand * per_image_bytes > budget or n // cand < 2:
            break
        bn = cand
    return bn


def _f32_bytes(*shapes):
    return sum(4 * int(np.prod(s)) for s in shapes)


def _vmem_limit(block_bytes):
    # Blocked operands are double-buffered; leave generous headroom but stay
    # well under v7x's 64 MiB physical VMEM.
    return int(min(max(4 * block_bytes + (2 << 20), 16 * 1024 * 1024),
                   56 * 1024 * 1024))


def _const_spec(shape):
    nd = len(shape)
    return pl.BlockSpec(shape, lambda i, _nd=nd: (0,) * _nd)


# ---------------------------------------------------------------------------
# Forward pass: NCHW in / NCHW out
# ---------------------------------------------------------------------------
@functools.partial(jax.jit, static_argnums=2)
def wide_dropout_block_forward(x_nchw, params, down_sample):
    stride = 2 if down_sample else 1
    x = jnp.transpose(x_nchw, (0, 2, 3, 1)).astype(jnp.float32)     # NCHW -> NHWC
    n, h, w, cin = x.shape
    cout = params["w1"].shape[-1]
    assert h % stride == 0 and w % stride == 0
    ho, wo = h // stride, w // stride
    has_skip_conv = (stride != 1) or (cin != cout)

    # ---- BN1 (training-mode batch statistics) folded into scale/shift -------
    mean1 = jnp.mean(x, axis=(0, 1, 2))
    var1 = jnp.var(x, axis=(0, 1, 2))                 # biased, like BN normalization
    inv1 = jax.lax.rsqrt(var1 + EPS)
    scale1 = (params["gamma1"] * inv1).reshape(1, cin).astype(jnp.float32)
    shift1 = (params["beta1"] - mean1 * params["gamma1"] * inv1
              ).reshape(1, cin).astype(jnp.float32)

    # ---- batch tiling --------------------------------------------------------
    per_image_bytes = _f32_bytes((h, w, cin), (h + 2, w + 2, cin),
                                 (ho, wo, cout), (ho + 2, wo + 2, cout))
    bn = _pick_batch_tile(n, per_image_bytes)
    grid = (n // bn,)

    # ---- input layout (parity planes for stride 2: contiguous tap slices) ---
    if stride == 2:
        xk = jnp.stack([x[:, a::2, b::2, :] for a in (0, 1) for b in (0, 1)],
                       axis=1)                                   # (N, 4, H/2, W/2, Cin)
        x_block = (bn, 4, h // 2, w // 2, cin)
        x_index = lambda i: (i, 0, 0, 0, 0)
        pad_x_shape = (bn, 4, h // 2 + 1, w // 2 + 1, cin)
    else:
        xk = x
        x_block = (bn, h, w, cin)
        x_index = lambda i: (i, 0, 0, 0)
        pad_x_shape = (bn, h + 2, w + 2, cin)

    # ---- weights as (tap, Cin, Cout) in bf16 (f32 accumulation in-kernel) ----
    w1 = params["w1"].reshape(9, cin, cout).astype(MXU_DTYPE)
    w2 = params["w2"].reshape(9, cout, cout).astype(MXU_DTYPE)
    b1 = params["b1"].reshape(1, cout).astype(jnp.float32)
    b2 = params["b2"].reshape(1, cout).astype(jnp.float32)

    out_block = (bn, ho, wo, cout)
    out_index = lambda i: (i, 0, 0, 0)

    # ---- kernel A: bn1 + relu + conv1 + BN2 stat partials --------------------
    vmem_a = _vmem_limit(_f32_bytes(x_block, out_block, pad_x_shape))
    c1, stats = pl.pallas_call(
        _make_conv1_kernel(bn, h, w, cin, cout, stride),
        grid=grid,
        in_specs=[
            pl.BlockSpec(x_block, x_index),
            _const_spec((1, cin)), _const_spec((1, cin)),
            _const_spec((9, cin, cout)), _const_spec((1, cout)),
        ],
        out_specs=(
            pl.BlockSpec(out_block, out_index),
            pl.BlockSpec((1, 2, cout), lambda i: (i, 0, 0)),
        ),
        out_shape=(
            jax.ShapeDtypeStruct((n, ho, wo, cout), jnp.float32),
            jax.ShapeDtypeStruct((grid[0], 2, cout), jnp.float32),
        ),
        scratch_shapes=[pltpu.VMEM(pad_x_shape, jnp.float32)],
        compiler_params=pltpu.CompilerParams(
            dimension_semantics=("parallel",),
            vmem_limit_bytes=vmem_a),
    )(xk, scale1, shift1, w1, b1)

    # ---- BN2 scale/shift from the per-tile partials (single-pass stats) -----
    rows_total = n * ho * wo
    stat_sum = jnp.sum(stats, axis=0)                             # (2, Cout)
    mean2 = stat_sum[0] / rows_total
    var2 = jnp.maximum(stat_sum[1] / rows_total - mean2 * mean2, 0.0)
    inv2 = jax.lax.rsqrt(var2 + EPS)
    scale2 = (params["gamma2"] * inv2).reshape(1, cout).astype(jnp.float32)
    shift2 = (params["beta2"] - mean2 * params["gamma2"] * inv2
              ).reshape(1, cout).astype(jnp.float32)

    # ---- kernel B: bn2 + relu + conv2 + skip + residual ----------------------
    args_b = [c1, xk, scale2, shift2, w2, b2]
    in_specs_b = [
        pl.BlockSpec(out_block, out_index),
        pl.BlockSpec(x_block, x_index),
        _const_spec((1, cout)), _const_spec((1, cout)),
        _const_spec((9, cout, cout)), _const_spec((1, cout)),
    ]
    scratch_b = [pltpu.VMEM((bn, ho + 2, wo + 2, cout), jnp.float32)]
    if has_skip_conv:
        ws = params["ws"].reshape(9, cin, cout).astype(MXU_DTYPE)
        bs = params["bs"].reshape(1, cout).astype(jnp.float32)
        args_b += [ws, bs]
        in_specs_b += [_const_spec((9, cin, cout)), _const_spec((1, cout))]
        scratch_b += [pltpu.VMEM(pad_x_shape, jnp.float32)]

    vmem_b = _vmem_limit(_f32_bytes(out_block, x_block, pad_x_shape,
                                    (bn, ho + 2, wo + 2, cout)))
    out = pl.pallas_call(
        _make_conv2_kernel(bn, h, w, cin, cout, stride, has_skip_conv),
        grid=grid,
        in_specs=in_specs_b,
        out_specs=pl.BlockSpec(out_block, out_index),
        out_shape=jax.ShapeDtypeStruct((n, ho, wo, cout), jnp.float32),
        scratch_shapes=scratch_b,
        compiler_params=pltpu.CompilerParams(
            dimension_semantics=("parallel",),
            vmem_limit_bytes=vmem_b),
    )(*args_b)

    return jnp.transpose(out, (0, 3, 1, 2))                       # NHWC -> NCHW


# ---------------------------------------------------------------------------
# Plain-JAX reference (same param convention: conv weights in HWIO, f32)
# ---------------------------------------------------------------------------
def reference_forward(x_nchw, params, down_sample):
    stride = 2 if down_sample else 1
    x = jnp.transpose(x_nchw, (0, 2, 3, 1))

    def bn_relu(y, g, b):
        m = jnp.mean(y, axis=(0, 1, 2), keepdims=True)
        v = jnp.var(y, axis=(0, 1, 2), keepdims=True)
        return jnp.maximum((y - m) / jnp.sqrt(v + EPS) * g + b, 0.0)

    def conv(y, wgt, b, s):
        z = jax.lax.conv_general_dilated(
            y, wgt, (s, s), ((1, 1), (1, 1)),
            dimension_numbers=("NHWC", "HWIO", "NHWC"))
        return z + b

    cin, cout = params["w1"].shape[2], params["w1"].shape[3]
    hdd = bn_relu(x, params["gamma1"], params["beta1"])
    hdd = conv(hdd, params["w1"], params["b1"], stride)
    hdd = bn_relu(hdd, params["gamma2"], params["beta2"])
    hdd = conv(hdd, params["w2"], params["b2"], 1)
    if stride != 1 or cin != cout:
        skip = conv(x, params["ws"], params["bs"], stride)
    else:
        skip = x
    return jnp.transpose(hdd + skip, (0, 3, 1, 2))


# ---------------------------------------------------------------------------
if __name__ == "__main__":
    key = jax.random.PRNGKey(0)

    def make_params(k, cin, cout):
        ks = jax.random.split(k, 10)
        return {
            "gamma1": 1.0 + 0.1 * jax.random.normal(ks[0], (cin,), jnp.float32),
            "beta1": 0.1 * jax.random.normal(ks[1], (cin,), jnp.float32),
            "w1": 0.1 * jax.random.normal(ks[2], (3, 3, cin, cout), jnp.float32),
            "b1": 0.1 * jax.random.normal(ks[3], (cout,), jnp.float32),
            "gamma2": 1.0 + 0.1 * jax.random.normal(ks[4], (cout,), jnp.float32),
            "beta2": 0.1 * jax.random.normal(ks[5], (cout,), jnp.float32),
            "w2": 0.1 * jax.random.normal(ks[6], (3, 3, cout, cout), jnp.float32),
            "b2": 0.1 * jax.random.normal(ks[7], (cout,), jnp.float32),
            "ws": 0.1 * jax.random.normal(ks[8], (3, 3, cin, cout), jnp.float32),
            "bs": 0.1 * jax.random.normal(ks[9], (cout,), jnp.float32),
        }

    # bf16 MXU operands vs. an all-f32 reference -> loosened tolerances.
    RTOL, ATOL = 2e-2, 3e-2

    # Case 1: WideDropoutBlock(in_planes=4, out_planes=8, dropout=0.0, down_sample=True)
    k1, k2, k3, k4 = jax.random.split(key, 4)
    x1 = jax.random.normal(k1, (2, 4, 16, 16), jnp.float32)
    p1 = make_params(k2, 4, 8)
    out1 = jax.block_until_ready(wide_dropout_block_forward(x1, p1, True))
    ref1 = jax.block_until_ready(reference_forward(x1, p1, True))
    assert out1.shape == ref1.shape, (out1.shape, ref1.shape)
    np.testing.assert_allclose(np.asarray(out1), np.asarray(ref1),
                               rtol=RTOL, atol=ATOL)

    # Case 2: identity skip (in_planes == out_planes, no down-sampling)
    x2 = jax.random.normal(k3, (2, 8, 16, 16), jnp.float32)
    p2 = make_params(k4, 8, 8)
    out2 = jax.block_until_ready(wide_dropout_block_forward(x2, p2, False))
    ref2 = jax.block_until_ready(reference_forward(x2, p2, False))
    assert out2.shape == ref2.shape, (out2.shape, ref2.shape)
    np.testing.assert_allclose(np.asarray(out2), np.asarray(ref2),
                               rtol=RTOL, atol=ATOL)

    print("KERNEL_OK")
</pallas_src>

<mosaic_0001>
module attributes {stable_mosaic.version = 11 : i64} {
  func.func @kernel(%arg0: i32, %arg1: memref<1x4x8x8x4xf32, #tpu.memory_space<vmem>>, %arg2: memref<1x4xf32, #tpu.memory_space<vmem>>, %arg3: memref<1x4xf32, #tpu.memory_space<vmem>>, %arg4: memref<9x4x8xbf16, #tpu.memory_space<vmem>>, %arg5: memref<1x8xf32, #tpu.memory_space<vmem>>, %arg6: memref<1x8x8x8xf32, #tpu.memory_space<vmem>>, %arg7: memref<1x2x8xf32, #tpu.memory_space<vmem>>, %arg8: memref<1x4x9x9x4xf32, #tpu.memory_space<vmem>>) attributes {dimension_semantics = [#tpu.dimension_semantics<parallel>], iteration_bounds = array<i64: 2>, scalar_prefetch = 0 : i64, scratch_operands = 1 : i64, tpu.core_type = #tpu.core_type<tc>, window_params = [{transform_indices = @transform_0, window_bounds = array<i64: 1, 4, 8, 8, 4>}, {pipeline_mode = #tpu.pipeline_mode<synchronous>, transform_indices = @transform_1, window_bounds = array<i64: 1, 4>}, {pipeline_mode = #tpu.pipeline_mode<synchronous>, transform_indices = @transform_2, window_bounds = array<i64: 1, 4>}, {pipeline_mode = #tpu.pipeline_mode<synchronous>, transform_indices = @transform_3, window_bounds = array<i64: 9, 4, 8>}, {pipeline_mode = #tpu.pipeline_mode<synchronous>, transform_indices = @transform_4, window_bounds = array<i64: 1, 8>}, {transform_indices = @transform_5, window_bounds = array<i64: 1, 8, 8, 8>}, {transform_indices = @transform_6, window_bounds = array<i64: 1, 2, 8>}]} {
    %c0 = arith.constant 0 : index
    %c0_0 = arith.constant 0 : index
    %c0_1 = arith.constant 0 : index
    %c0_2 = arith.constant 0 : index
    %c0_3 = arith.constant 0 : index
    %0 = vector.load %arg1[%c0, %c0_0, %c0_1, %c0_2, %c0_3] : memref<1x4x8x8x4xf32, #tpu.memory_space<vmem>>, vector<1x4x8x8x4xf32>
    %1 = vector.shape_cast %0 : vector<1x4x8x8x4xf32> to vector<256x4xf32>
    %c0_4 = arith.constant 0 : index
    %c0_5 = arith.constant 0 : index
    %2 = vector.load %arg2[%c0_4, %c0_5] : memref<1x4xf32, #tpu.memory_space<vmem>>, vector<1x4xf32>
    %3 = vector.broadcast %2 : vector<1x4xf32> to vector<256x4xf32>
    %4 = arith.mulf %1, %3 : vector<256x4xf32>
    %c0_6 = arith.constant 0 : index
    %c0_7 = arith.constant 0 : index
    %5 = vector.load %arg3[%c0_6, %c0_7] : memref<1x4xf32, #tpu.memory_space<vmem>>, vector<1x4xf32>
    %6 = vector.broadcast %5 : vector<1x4xf32> to vector<256x4xf32>
    %7 = arith.addf %4, %6 : vector<256x4xf32>
    %cst = arith.constant 0.000000e+00 : f32
    %8 = vector.broadcast %cst : f32 to vector<256x4xf32>
    %9 = arith.maximumf %7, %8 : vector<256x4xf32>
    %10 = vector.shape_cast %9 : vector<256x4xf32> to vector<1x4x8x8x4xf32>
    %cst_8 = arith.constant 0.000000e+00 : f32
    %11 = vector.broadcast %cst_8 : f32 to vector<1x1x9x4xf32>
    %c0_9 = arith.constant 0 : index
    %c0_10 = arith.constant 0 : index
    %c0_11 = arith.constant 0 : index
    %c0_12 = arith.constant 0 : index
    %c0_13 = arith.constant 0 : index
    %12 = vector.load %arg8[%c0_9, %c0_10, %c0_11, %c0_12, %c0_13] : memref<1x4x9x9x4xf32, #tpu.memory_space<vmem>>, vector<1x1x1x9x4xf32>
    %13 = vector.shape_cast %12 : vector<1x1x1x9x4xf32> to vector<1x1x9x4xf32>
    %14 = vector.shape_cast %11 : vector<1x1x9x4xf32> to vector<1x1x1x9x4xf32>
    tpu.vector_store %arg8[%c0_9, %c0_10, %c0_11, %c0_12, %c0_13], %14 {strides = array<i32>} : memref<1x4x9x9x4xf32, #tpu.memory_space<vmem>>, vector<1x1x1x9x4xf32>,
    %cst_14 = arith.constant 0.000000e+00 : f32
    %15 = vector.broadcast %cst_14 : f32 to vector<1x9x1x4xf32>
    %c0_15 = arith.constant 0 : index
    %c0_16 = arith.constant 0 : index
    %c0_17 = arith.constant 0 : index
    %c0_18 = arith.constant 0 : index
    %c0_19 = arith.constant 0 : index
    %16 = vector.load %arg8[%c0_15, %c0_16, %c0_17, %c0_18, %c0_19] : memref<1x4x9x9x4xf32, #tpu.memory_space<vmem>>, vector<1x1x9x1x4xf32>
    %17 = vector.shape_cast %16 : vector<1x1x9x1x4xf32> to vector<1x9x1x4xf32>
    %18 = vector.shape_cast %15 : vector<1x9x1x4xf32> to vector<1x1x9x1x4xf32>
    tpu.vector_store %arg8[%c0_15, %c0_16, %c0_17, %c0_18, %c0_19], %18 {strides = array<i32>} : memref<1x4x9x9x4xf32, #tpu.memory_space<vmem>>, vector<1x1x9x1x4xf32>,
    %cst_20 = arith.constant 0.000000e+00 : f32
    %19 = vector.broadcast %cst_20 : f32 to vector<1x1x9x4xf32>
    %c0_21 = arith.constant 0 : index
    %c1 = arith.constant 1 : index
    %c0_22 = arith.constant 0 : index
    %c0_23 = arith.constant 0 : index
    %c0_24 = arith.constant 0 : index
    %20 = vector.load %arg8[%c0_21, %c1, %c0_22, %c0_23, %c0_24] : memref<1x4x9x9x4xf32, #tpu.memory_space<vmem>>, vector<1x1x1x9x4xf32>
    %21 = vector.shape_cast %20 : vector<1x1x1x9x4xf32> to vector<1x1x9x4xf32>
    %22 = vector.shape_cast %19 : vector<1x1x9x4xf32> to vector<1x1x1x9x4xf32>
    tpu.vector_store %arg8[%c0_21, %c1, %c0_22, %c0_23, %c0_24], %22 {strides = array<i32>} : memref<1x4x9x9x4xf32, #tpu.memory_space<vmem>>, vector<1x1x1x9x4xf32>,
    %cst_25 = arith.constant 0.000000e+00 : f32
    %23 = vector.broadcast %cst_25 : f32 to vector<1x9x1x4xf32>
    %c0_26 = arith.constant 0 : index
    %c1_27 = arith.constant 1 : index
    %c0_28 = arith.constant 0 : index
    %c8 = arith.constant 8 : index
    %c0_29 = arith.constant 0 : index
    %24 = vector.load %arg8[%c0_26, %c1_27, %c0_28, %c8, %c0_29] : memref<1x4x9x9x4xf32, #tpu.memory_space<vmem>>, vector<1x1x9x1x4xf32>
    %25 = vector.shape_cast %24 : vector<1x1x9x1x4xf32> to vector<1x9x1x4xf32>
    %26 = vector.shape_cast %23 : vector<1x9x1x4xf32> to vector<1x1x9x1x4xf32>
    tpu.vector_store %arg8[%c0_26, %c1_27, %c0_28, %c8, %c0_29], %26 {strides = array<i32>} : memref<1x4x9x9x4xf32, #tpu.memory_space<vmem>>, vector<1x1x9x1x4xf32>,
    %cst_30 = arith.constant 0.000000e+00 : f32
    %27 = vector.broadcast %cst_30 : f32 to vector<1x1x9x4xf32>
    %c0_31 = arith.constant 0 : index
    %c2 = arith.constant 2 : index
    %c8_32 = arith.constant 8 : index
    %c0_33 = arith.constant 0 : index
    %c0_34 = arith.constant 0 : index
    %28 = vector.load %arg8[%c0_31, %c2, %c8_32, %c0_33, %c0_34] : memref<1x4x9x9x4xf32, #tpu.memory_space<vmem>>, vector<1x1x1x9x4xf32>
    %29 = vector.shape_cast %28 : vector<1x1x1x9x4xf32> to vector<1x1x9x4xf32>
    %30 = vector.shape_cast %27 : vector<1x1x9x4xf32> to vector<1x1x1x9x4xf32>
    tpu.vector_store %arg8[%c0_31, %c2, %c8_32, %c0_33, %c0_34], %30 {strides = array<i32>} : memref<1x4x9x9x4xf32, #tpu.memory_space<vmem>>, vector<1x1x1x9x4xf32>,
    %cst_35 = arith.constant 0.000000e+00 : f32
    %31 = vector.broadcast %cst_35 : f32 to vector<1x9x1x4xf32>
    %c0_36 = arith.constant 0 : index
    %c2_37 = arith.constant 2 : index
    %c0_38 = arith.constant 0 : index
    %c0_39 = arith.constant 0 : index
    %c0_40 = arith.constant 0 : index
    %32 = vector.load %arg8[%c0_36, %c2_37, %c0_38, %c0_39, %c0_40] : memref<1x4x9x9x4xf32, #tpu.memory_space<vmem>>, vector<1x1x9x1x4xf32>
    %33 = vector.shape_cast %32 : vector<1x1x9x1x4xf32> to vector<1x9x1x4xf32>
    %34 = vector.shape_cast %31 : vector<1x9x1x4xf32> to vector<1x1x9x1x4xf32>
    tpu.vector_store %arg8[%c0_36, %c2_37, %c0_38, %c0_39, %c0_40], %34 {strides = array<i32>} : memref<1x4x9x9x4xf32, #tpu.memory_space<vmem>>, vector<1x1x9x1x4xf32>,
    %cst_41 = arith.constant 0.000000e+00 : f32
    %35 = vector.broadcast %cst_41 : f32 to vector<1x1x9x4xf32>
    %c0_42 = arith.constant 0 : index
    %c3 = arith.constant 3 : index
    %c8_43 = arith.constant 8 : index
    %c0_44 = arith.constant 0 : index
    %c0_45 = arith.constant 0 : index
    %36 = vector.load %arg8[%c0_42, %c3, %c8_43, %c0_44, %c0_45] : memref<1x4x9x9x4xf32, #tpu.memory_space<vmem>>, vector<1x1x1x9x4xf32>
    %37 = vector.shape_cast %36 : vector<1x1x1x9x4xf32> to vector<1x1x9x4xf32>
    %38 = vector.shape_cast %35 : vector<1x1x9x4xf32> to vector<1x1x1x9x4xf32>
    tpu.vector_store %arg8[%c0_42, %c3, %c8_43, %c0_44, %c0_45], %38 {strides = array<i32>} : memref<1x4x9x9x4xf32, #tpu.memory_space<vmem>>, vector<1x1x1x9x4xf32>,
    %cst_46 = arith.constant 0.000000e+00 : f32
    %39 = vector.broadcast %cst_46 : f32 to vector<1x9x1x4xf32>
    %c0_47 = arith.constant 0 : index
    %c3_48 = arith.constant 3 : index
    %c0_49 = arith.constant 0 : index
    %c8_50 = arith.constant 8 : index
    %c0_51 = arith.constant 0 : index
    %40 = vector.load %arg8[%c0_47, %c3_48, %c0_49, %c8_50, %c0_51] : memref<1x4x9x9x4xf32, #tpu.memory_space<vmem>>, vector<1x1x9x1x4xf32>
    %41 = vector.shape_cast %40 : vector<1x1x9x1x4xf32> to vector<1x9x1x4xf32>
    %42 = vector.shape_cast %39 : vector<1x9x1x4xf32> to vector<1x1x9x1x4xf32>
    tpu.vector_store %arg8[%c0_47, %c3_48, %c0_49, %c8_50, %c0_51], %42 {strides = array<i32>} : memref<1x4x9x9x4xf32, #tpu.memory_space<vmem>>, vector<1x1x9x1x4xf32>,
    %43 = vector.extract_strided_slice %10 {offsets = [0, 3, 0, 0, 0], sizes = [1, 1, 8, 8, 4], strides = [1, 1, 1, 1, 1]} : vector<1x4x8x8x4xf32> to vector<1x1x8x8x4xf32>
    %44 = vector.shape_cast %43 : vector<1x1x8x8x4xf32> to vector<1x8x8x4xf32>
    %c0_52 = arith.constant 0 : index
    %c0_53 = arith.constant 0 : index
    %c1_54 = arith.constant 1 : index
    %c1_55 = arith.constant 1 : index
    %c0_56 = arith.constant 0 : index
    %45 = vector.load %arg8[%c0_52, %c0_53, %c1_54, %c1_55, %c0_56] : memref<1x4x9x9x4xf32, #tpu.memory_space<vmem>>, vector<1x1x8x8x4xf32>
    %46 = vector.shape_cast %45 : vector<1x1x8x8x4xf32> to vector<1x8x8x4xf32>
    %47 = vector.shape_cast %44 : vector<1x8x8x4xf32> to vector<1x1x8x8x4xf32>
    tpu.vector_store %arg8[%c0_52, %c0_53, %c1_54, %c1_55, %c0_56], %47 {strides = array<i32>} : memref<1x4x9x9x4xf32, #tpu.memory_space<vmem>>, vector<1x1x8x8x4xf32>,
    %48 = vector.extract_strided_slice %10 {offsets = [0, 2, 0, 0, 0], sizes = [1, 1, 8, 8, 4], strides = [1, 1, 1, 1, 1]} : vector<1x4x8x8x4xf32> to vector<1x1x8x8x4xf32>
    %49 = vector.shape_cast %48 : vector<1x1x8x8x4xf32> to vector<1x8x8x4xf32>
    %c0_57 = arith.constant 0 : index
    %c1_58 = arith.constant 1 : index
    %c1_59 = arith.constant 1 : index
    %c0_60 = arith.constant 0 : index
    %c0_61 = arith.constant 0 : index
    %50 = vector.load %arg8[%c0_57, %c1_58, %c1_59, %c0_60, %c0_61] : memref<1x4x9x9x4xf32, #tpu.memory_space<vmem>>, vector<1x1x8x8x4xf32>
    %51 = vector.shape_cast %50 : vector<1x1x8x8x4xf32> to vector<1x8x8x4xf32>
    %52 = vector.shape_cast %49 : vector<1x8x8x4xf32> to vector<1x1x8x8x4xf32>
    tpu.vector_store %arg8[%c0_57, %c1_58, %c1_59, %c0_60, %c0_61], %52 {strides = array<i32>} : memref<1x4x9x9x4xf32, #tpu.memory_space<vmem>>, vector<1x1x8x8x4xf32>,
    %53 = vector.extract_strided_slice %10 {offsets = [0, 1, 0, 0, 0], sizes = [1, 1, 8, 8, 4], strides = [1, 1, 1, 1, 1]} : vector<1x4x8x8x4xf32> to vector<1x1x8x8x4xf32>
    %54 = vector.shape_cast %53 : vector<1x1x8x8x4xf32> to vector<1x8x8x4xf32>
    %c0_62 = arith.constant 0 : index
    %c2_63 = arith.constant 2 : index
    %c0_64 = arith.constant 0 : index
    %c1_65 = arith.constant 1 : index
    %c0_66 = arith.constant 0 : index
    %55 = vector.load %arg8[%c0_62, %c2_63, %c0_64, %c1_65, %c0_66] : memref<1x4x9x9x4xf32, #tpu.memory_space<vmem>>, vector<1x1x8x8x4xf32>
    %56 = vector.shape_cast %55 : vector<1x1x8x8x4xf32> to vector<1x8x8x4xf32>
    %57 = vector.shape_cast %54 : vector<1x8x8x4xf32> to vector<1x1x8x8x4xf32>
    tpu.vector_store %arg8[%c0_62, %c2_63, %c0_64, %c1_65, %c0_66], %57 {strides = array<i32>} : memref<1x4x9x9x4xf32, #tpu.memory_space<vmem>>, vector<1x1x8x8x4xf32>,
    %58 = vector.extract_strided_slice %10 {offsets = [0, 0, 0, 0, 0], sizes = [1, 1, 8, 8, 4], strides = [1, 1, 1, 1, 1]} : vector<1x4x8x8x4xf32> to vector<1x1x8x8x4xf32>
    %59 = vector.shape_cast %58 : vector<1x1x8x8x4xf32> to vector<1x8x8x4xf32>
    %c0_67 = arith.constant 0 : index
    %c3_68 = arith.constant 3 : index
    %c0_69 = arith.constant 0 : index
    %c0_70 = arith.constant 0 : index
    %c0_71 = arith.constant 0 : index
    %60 = vector.load %arg8[%c0_67, %c3_68, %c0_69, %c0_70, %c0_71] : memref<1x4x9x9x4xf32, #tpu.memory_space<vmem>>, vector<1x1x8x8x4xf32>
    %61 = vector.shape_cast %60 : vector<1x1x8x8x4xf32> to vector<1x8x8x4xf32>
    %62 = vector.shape_cast %59 : vector<1x8x8x4xf32> to vector<1x1x8x8x4xf32>
    tpu.vector_store %arg8[%c0_67, %c3_68, %c0_69, %c0_70, %c0_71], %62 {strides = array<i32>} : memref<1x4x9x9x4xf32, #tpu.memory_space<vmem>>, vector<1x1x8x8x4xf32>,
    %cst_72 = arith.constant 0.000000e+00 : f32
    %63 = vector.broadcast %cst_72 : f32 to vector<64x8xf32>
    %c0_73 = arith.constant 0 : index
    %c0_74 = arith.constant 0 : index
    %c0_75 = arith.constant 0 : index
    %c0_76 = arith.constant 0 : index
    %c0_77 = arith.constant 0 : index
    %64 = vector.load %arg8[%c0_73, %c0_74, %c0_75, %c0_76, %c0_77] : memref<1x4x9x9x4xf32, #tpu.memory_space<vmem>>, vector<1x1x8x8x4xf32>
    %65 = vector.shape_cast %64 : vector<1x1x8x8x4xf32> to vector<1x8x8x4xf32>
    %66 = vector.shape_cast %65 : vector<1x8x8x4xf32> to vector<64x4xf32>
    %67 = arith.truncf %66 : vector<64x4xf32> to vector<64x4xbf16>
    %c0_78 = arith.constant 0 : index
    %c0_79 = arith.constant 0 : index
    %c0_80 = arith.constant 0 : index
    %68 = vector.load %arg4[%c0_78, %c0_79, %c0_80] : memref<9x4x8xbf16, #tpu.memory_space<vmem>>, vector<1x4x8xbf16>
    %69 = vector.shape_cast %68 : vector<1x4x8xbf16> to vector<4x8xbf16>
    %cst_81 = arith.constant dense<0.000000e+00> : vector<64x8xf32>
    %70 = tpu.matmul %67, %69, %cst_81 {dimension_numbers = #tpu.dot_dimension_numbers<[1], [0], [0], [1], [0, 0, 1, 1], [], []>} : vector<64x4xbf16>, vector<4x8xbf16>, vector<64x8xf32> -> vector<64x8xf32>
    %71 = arith.addf %63, %70 : vector<64x8xf32>
    %c0_82 = arith.constant 0 : index
    %c1_83 = arith.constant 1 : index
    %c0_84 = arith.constant 0 : index
    %c0_85 = arith.constant 0 : index
    %c0_86 = arith.constant 0 : index
    %72 = vector.load %arg8[%c0_82, %c1_83, %c0_84, %c0_85, %c0_86] : memref<1x4x9x9x4xf32, #tpu.memory_space<vmem>>, vector<1x1x8x8x4xf32>
    %73 = vector.shape_cast %72 : vector<1x1x8x8x4xf32> to vector<1x8x8x4xf32>
    %74 = vector.shape_cast %73 : vector<1x8x8x4xf32> to vector<64x4xf32>
    %75 = arith.truncf %74 : vector<64x4xf32> to vector<64x4xbf16>
    %c1_87 = arith.constant 1 : index
    %c0_88 = arith.constant 0 : index
    %c0_89 = arith.constant 0 : index
    %76 = vector.load %arg4[%c1_87, %c0_88, %c0_89] : memref<9x4x8xbf16, #tpu.memory_space<vmem>>, vector<1x4x8xbf16>
    %77 = vector.shape_cast %76 : vector<1x4x8xbf16> to vector<4x8xbf16>
    %cst_90 = arith.constant dense<0.000000e+00> : vector<64x8xf32>
    %78 = tpu.matmul %75, %77, %cst_90 {dimension_numbers = #tpu.dot_dimension_numbers<[1], [0], [0], [1], [0, 0, 1, 1], [], []>} : vector<64x4xbf16>, vector<4x8xbf16>, vector<64x8xf32> -> vector<64x8xf32>
    %79 = arith.addf %71, %78 : vector<64x8xf32>
    %c0_91 = arith.constant 0 : index
    %c0_92 = arith.constant 0 : index
    %c0_93 = arith.constant 0 : index
    %c1_94 = arith.constant 1 : index
    %c0_95 = arith.constant 0 : index
    %80 = vector.load %arg8[%c0_91, %c0_92, %c0_93, %c1_94, %c0_95] : memref<1x4x9x9x4xf32, #tpu.memory_space<vmem>>, vector<1x1x8x8x4xf32>
    %81 = vector.shape_cast %80 : vector<1x1x8x8x4xf32> to vector<1x8x8x4xf32>
    %82 = vector.shape_cast %81 : vector<1x8x8x4xf32> to vector<64x4xf32>
    %83 = arith.truncf %82 : vector<64x4xf32> to vector<64x4xbf16>
    %c2_96 = arith.constant 2 : index
    %c0_97 = arith.constant 0 : index
    %c0_98 = arith.constant 0 : index
    %84 = vector.load %arg4[%c2_96, %c0_97, %c0_98] : memref<9x4x8xbf16, #tpu.memory_space<vmem>>, vector<1x4x8xbf16>
    %85 = vector.shape_cast %84 : vector<1x4x8xbf16> to vector<4x8xbf16>
    %cst_99 = arith.constant dense<0.000000e+00> : vector<64x8xf32>
    %86 = tpu.matmul %83, %85, %cst_99 {dimension_numbers = #tpu.dot_dimension_numbers<[1], [0], [0], [1], [0, 0, 1, 1], [], []>} : vector<64x4xbf16>, vector<4x8xbf16>, vector<64x8xf32> -> vector<64x8xf32>
    %87 = arith.addf %79, %86 : vector<64x8xf32>
    %c0_100 = arith.constant 0 : index
    %c2_101 = arith.constant 2 : index
    %c0_102 = arith.constant 0 : index
    %c0_103 = arith.constant 0 : index
    %c0_104 = arith.constant 0 : index
    %88 = vector.load %arg8[%c0_100, %c2_101, %c0_102, %c0_103, %c0_104] : memref<1x4x9x9x4xf32, #tpu.memory_space<vmem>>, vector<1x1x8x8x4xf32>
    %89 = vector.shape_cast %88 : vector<1x1x8x8x4xf32> to vector<1x8x8x4xf32>
    %90 = vector.shape_cast %89 : vector<1x8x8x4xf32> to vector<64x4xf32>
    %91 = arith.truncf %90 : vector<64x4xf32> to vector<64x4xbf16>
    %c3_105 = arith.constant 3 : index
    %c0_106 = arith.constant 0 : index
    %c0_107 = arith.constant 0 : index
    %92 = vector.load %arg4[%c3_105, %c0_106, %c0_107] : memref<9x4x8xbf16, #tpu.memory_space<vmem>>, vector<1x4x8xbf16>
    %93 = vector.shape_cast %92 : vector<1x4x8xbf16> to vector<4x8xbf16>
    %cst_108 = arith.constant dense<0.000000e+00> : vector<64x8xf32>
    %94 = tpu.matmul %91, %93, %cst_108 {dimension_numbers = #tpu.dot_dimension_numbers<[1], [0], [0], [1], [0, 0, 1, 1], [], []>} : vector<64x4xbf16>, vector<4x8xbf16>, vector<64x8xf32> -> vector<64x8xf32>
    %95 = arith.addf %87, %94 : vector<64x8xf32>
    %c0_109 = arith.constant 0 : index
    %c3_110 = arith.constant 3 : index
    %c0_111 = arith.constant 0 : index
    %c0_112 = arith.constant 0 : index
    %c0_113 = arith.constant 0 : index
    %96 = vector.load %arg8[%c0_109, %c3_110, %c0_111, %c0_112, %c0_113] : memref<1x4x9x9x4xf32, #tpu.memory_space<vmem>>, vector<1x1x8x8x4xf32>
    %97 = vector.shape_cast %96 : vector<1x1x8x8x4xf32> to vector<1x8x8x4xf32>
    %98 = vector.shape_cast %97 : vector<1x8x8x4xf32> to vector<64x4xf32>
    %99 = arith.truncf %98 : vector<64x4xf32> to vector<64x4xbf16>
    %c4 = arith.constant 4 : index
    %c0_114 = arith.constant 0 : index
    %c0_115 = arith.constant 0 : index
    %100 = vector.load %arg4[%c4, %c0_114, %c0_115] : memref<9x4x8xbf16, #tpu.memory_space<vmem>>, vector<1x4x8xbf16>
    %101 = vector.shape_cast %100 : vector<1x4x8xbf16> to vector<4x8xbf16>
    %cst_116 = arith.constant dense<0.000000e+00> : vector<64x8xf32>
    %102 = tpu.matmul %99, %101, %cst_116 {dimension_numbers = #tpu.dot_dimension_numbers<[1], [0], [0], [1], [0, 0, 1, 1], [], []>} : vector<64x4xbf16>, vector<4x8xbf16>, vector<64x8xf32> -> vector<64x8xf32>
    %103 = arith.addf %95, %102 : vector<64x8xf32>
    %c0_117 = arith.constant 0 : index
    %c2_118 = arith.constant 2 : index
    %c0_119 = arith.constant 0 : index
    %c1_120 = arith.constant 1 : index
    %c0_121 = arith.constant 0 : index
    %104 = vector.load %arg8[%c0_117, %c2_118, %c0_119, %c1_120, %c0_121] : memref<1x4x9x9x4xf32, #tpu.memory_space<vmem>>, vector<1x1x8x8x4xf32>
    %105 = vector.shape_cast %104 : vector<1x1x8x8x4xf32> to vector<1x8x8x4xf32>
    %106 = vector.shape_cast %105 : vector<1x8x8x4xf32> to vector<64x4xf32>
    %107 = arith.truncf %106 : vector<64x4xf32> to vector<64x4xbf16>
    %c5 = arith.constant 5 : index
    %c0_122 = arith.constant 0 : index
    %c0_123 = arith.constant 0 : index
    %108 = vector.load %arg4[%c5, %c0_122, %c0_123] : memref<9x4x8xbf16, #tpu.memory_space<vmem>>, vector<1x4x8xbf16>
    %109 = vector.shape_cast %108 : vector<1x4x8xbf16> to vector<4x8xbf16>
    %cst_124 = arith.constant dense<0.000000e+00> : vector<64x8xf32>
    %110 = tpu.matmul %107, %109, %cst_124 {dimension_numbers = #tpu.dot_dimension_numbers<[1], [0], [0], [1], [0, 0, 1, 1], [], []>} : vector<64x4xbf16>, vector<4x8xbf16>, vector<64x8xf32> -> vector<64x8xf32>
    %111 = arith.addf %103, %110 : vector<64x8xf32>
    %c0_125 = arith.constant 0 : index
    %c0_126 = arith.constant 0 : index
    %c1_127 = arith.constant 1 : index
    %c0_128 = arith.constant 0 : index
    %c0_129 = arith.constant 0 : index
    %112 = vector.load %arg8[%c0_125, %c0_126, %c1_127, %c0_128, %c0_129] : memref<1x4x9x9x4xf32, #tpu.memory_space<vmem>>, vector<1x1x8x8x4xf32>
    %113 = vector.shape_cast %112 : vector<1x1x8x8x4xf32> to vector<1x8x8x4xf32>
    %114 = vector.shape_cast %113 : vector<1x8x8x4xf32> to vector<64x4xf32>
    %115 = arith.truncf %114 : vector<64x4xf32> to vector<64x4xbf16>
    %c6 = arith.constant 6 : index
    %c0_130 = arith.constant 0 : index
    %c0_131 = arith.constant 0 : index
    %116 = vector.load %arg4[%c6, %c0_130, %c0_131] : memref<9x4x8xbf16, #tpu.memory_space<vmem>>, vector<1x4x8xbf16>
    %117 = vector.shape_cast %116 : vector<1x4x8xbf16> to vector<4x8xbf16>
    %cst_132 = arith.constant dense<0.000000e+00> : vector<64x8xf32>
    %118 = tpu.matmul %115, %117, %cst_132 {dimension_numbers = #tpu.dot_dimension_numbers<[1], [0], [0], [1], [0, 0, 1, 1], [], []>} : vector<64x4xbf16>, vector<4x8xbf16>, vector<64x8xf32> -> vector<64x8xf32>
    %119 = arith.addf %111, %118 : vector<64x8xf32>
    %c0_133 = arith.constant 0 : index
    %c1_134 = arith.constant 1 : index
    %c1_135 = arith.constant 1 : index
    %c0_136 = arith.constant 0 : index
    %c0_137 = arith.constant 0 : index
    %120 = vector.load %arg8[%c0_133, %c1_134, %c1_135, %c0_136, %c0_137] : memref<1x4x9x9x4xf32, #tpu.memory_space<vmem>>, vector<1x1x8x8x4xf32>
    %121 = vector.shape_cast %120 : vector<1x1x8x8x4xf32> to vector<1x8x8x4xf32>
    %122 = vector.shape_cast %121 : vector<1x8x8x4xf32> to vector<64x4xf32>
    %123 = arith.truncf %122 : vector<64x4xf32> to vector<64x4xbf16>
    %c7 = arith.constant 7 : index
    %c0_138 = arith.constant 0 : index
    %c0_139 = arith.constant 0 : index
    %124 = vector.load %arg4[%c7, %c0_138, %c0_139] : memref<9x4x8xbf16, #tpu.memory_space<vmem>>, vector<1x4x8xbf16>
    %125 = vector.shape_cast %124 : vector<1x4x8xbf16> to vector<4x8xbf16>
    %cst_140 = arith.constant dense<0.000000e+00> : vector<64x8xf32>
    %126 = tpu.matmul %123, %125, %cst_140 {dimension_numbers = #tpu.dot_dimension_numbers<[1], [0], [0], [1], [0, 0, 1, 1], [], []>} : vector<64x4xbf16>, vector<4x8xbf16>, vector<64x8xf32> -> vector<64x8xf32>
    %127 = arith.addf %119, %126 : vector<64x8xf32>
    %c0_141 = arith.constant 0 : index
    %c0_142 = arith.constant 0 : index
    %c1_143 = arith.constant 1 : index
    %c1_144 = arith.constant 1 : index
    %c0_145 = arith.constant 0 : index
    %128 = vector.load %arg8[%c0_141, %c0_142, %c1_143, %c1_144, %c0_145] : memref<1x4x9x9x4xf32, #tpu.memory_space<vmem>>, vector<1x1x8x8x4xf32>
    %129 = vector.shape_cast %128 : vector<1x1x8x8x4xf32> to vector<1x8x8x4xf32>
    %130 = vector.shape_cast %129 : vector<1x8x8x4xf32> to vector<64x4xf32>
    %131 = arith.truncf %130 : vector<64x4xf32> to vector<64x4xbf16>
    %c8_146 = arith.constant 8 : index
    %c0_147 = arith.constant 0 : index
    %c0_148 = arith.constant 0 : index
    %132 = vector.load %arg4[%c8_146, %c0_147, %c0_148] : memref<9x4x8xbf16, #tpu.memory_space<vmem>>, vector<1x4x8xbf16>
    %133 = vector.shape_cast %132 : vector<1x4x8xbf16> to vector<4x8xbf16>
    %cst_149 = arith.constant dense<0.000000e+00> : vector<64x8xf32>
    %134 = tpu.matmul %131, %133, %cst_149 {dimension_numbers = #tpu.dot_dimension_numbers<[1], [0], [0], [1], [0, 0, 1, 1], [], []>} : vector<64x4xbf16>, vector<4x8xbf16>, vector<64x8xf32> -> vector<64x8xf32>
    %135 = arith.addf %127, %134 : vector<64x8xf32>
    %c0_150 = arith.constant 0 : index
    %c0_151 = arith.constant 0 : index
    %136 = vector.load %arg5[%c0_150, %c0_151] : memref<1x8xf32, #tpu.memory_space<vmem>>, vector<1x8xf32>
    %137 = vector.broadcast %136 : vector<1x8xf32> to vector<64x8xf32>
    %138 = arith.addf %135, %137 : vector<64x8xf32>
    %139 = vector.shape_cast %138 : vector<64x8xf32> to vector<1x8x8x8xf32>
    %c0_152 = arith.constant 0 : index
    %c0_153 = arith.constant 0 : index
    %c0_154 = arith.constant 0 : index
    %c0_155 = arith.constant 0 : index
    %140 = vector.load %arg6[%c0_152, %c0_153, %c0_154, %c0_155] : memref<1x8x8x8xf32, #tpu.memory_space<vmem>>, vector<1x8x8x8xf32>
    tpu.vector_store %arg6[%c0_152, %c0_153, %c0_154, %c0_155], %139 {strides = array<i32>} : memref<1x8x8x8xf32, #tpu.memory_space<vmem>>, vector<1x8x8x8xf32>,
    %cst_156 = arith.constant dense<0.000000e+00> : vector<8xf32>
    %141 = vector.multi_reduction <add>, %138, %cst_156 [0] : vector<64x8xf32> to vector<8xf32>
    %142 = vector.shape_cast %141 : vector<8xf32> to vector<1x8xf32>
    %143 = arith.mulf %138, %138 : vector<64x8xf32>
    %cst_157 = arith.constant dense<0.000000e+00> : vector<8xf32>
    %144 = vector.multi_reduction <add>, %143, %cst_157 [0] : vector<64x8xf32> to vector<8xf32>
    %145 = vector.shape_cast %144 : vector<8xf32> to vector<1x8xf32>
    %146 = tpu.concatenate %142, %145 in 0 : vector<1x8xf32>, vector<1x8xf32> -> vector<2x8xf32>
    %147 = vector.shape_cast %146 : vector<2x8xf32> to vector<1x2x8xf32>
    %c0_158 = arith.constant 0 : index
    %c0_159 = arith.constant 0 : index
    %c0_160 = arith.constant 0 : index
    %148 = vector.load %arg7[%c0_158, %c0_159, %c0_160] : memref<1x2x8xf32, #tpu.memory_space<vmem>>, vector<1x2x8xf32>
    tpu.vector_store %arg7[%c0_158, %c0_159, %c0_160], %147 {strides = array<i32>} : memref<1x2x8xf32, #tpu.memory_space<vmem>>, vector<1x2x8xf32>,
    return
  }
  func.func @transform_0(%arg0: i32) -> (i32, i32, i32, i32, i32) {
    %c0_i32 = arith.constant 0 : i32
    %c0_i32_0 = arith.constant 0 : i32
    %c0_i32_1 = arith.constant 0 : i32
    %c0_i32_2 = arith.constant 0 : i32
    %c0_i32_3 = arith.constant 0 : i32
    return %arg0, %c0_i32, %c0_i32_0, %c0_i32_1, %c0_i32_2 : i32, i32, i32, i32, i32
  }
  func.func @transform_1(%arg0: i32) -> (i32, i32) {
    %c0_i32 = arith.constant 0 : i32
    %c0_i32_0 = arith.constant 0 : i32
    %c0_i32_1 = arith.constant 0 : i32
    return %c0_i32, %c0_i32_0 : i32, i32
  }
  func.func @transform_2(%arg0: i32) -> (i32, i32) {
    %c0_i32 = arith.constant 0 : i32
    %c0_i32_0 = arith.constant 0 : i32
    %c0_i32_1 = arith.constant 0 : i32
    return %c0_i32, %c0_i32_0 : i32, i32
  }
  func.func @transform_3(%arg0: i32) -> (i32, i32, i32) {
    %c0_i32 = arith.constant 0 : i32
    %c0_i32_0 = arith.constant 0 : i32
    %c0_i32_1 = arith.constant 0 : i32
    %c0_i32_2 = arith.constant 0 : i32
    return %c0_i32, %c0_i32_0, %c0_i32_1 : i32, i32, i32
  }
  func.func @transform_4(%arg0: i32) -> (i32, i32) {
    %c0_i32 = arith.constant 0 : i32
    %c0_i32_0 = arith.constant 0 : i32
    %c0_i32_1 = arith.constant 0 : i32
    return %c0_i32, %c0_i32_0 : i32, i32
  }
  func.func @transform_5(%arg0: i32) -> (i32, i32, i32, i32) {
    %c0_i32 = arith.constant 0 : i32
    %c0_i32_0 = arith.constant 0 : i32
    %c0_i32_1 = arith.constant 0 : i32
    %c0_i32_2 = arith.constant 0 : i32
    return %arg0, %c0_i32, %c0_i32_0, %c0_i32_1 : i32, i32, i32, i32
  }
  func.func @transform_6(%arg0: i32) -> (i32, i32, i32) {
    %c0_i32 = arith.constant 0 : i32
    %c0_i32_0 = arith.constant 0 : i32
    %c0_i32_1 = arith.constant 0 : i32
    return %arg0, %c0_i32, %c0_i32_0 : i32, i32, i32
  }
}

module attributes {stable_mosaic.version = 11 : i64} {
  func.func @kernel(%arg0: i32, %arg1: memref<1x8x8x8xf32, #tpu.memory_space<vmem>>, %arg2: memref<1x4x8x8x4xf32, #tpu.memory_space<vmem>>, %arg3: memref<1x8xf32, #tpu.memory_space<vmem>>, %arg4: memref<1x8xf32, #tpu.memory_space<vmem>>, %arg5: memref<9x8x8xbf16, #tpu.memory_space<vmem>>, %arg6: memref<1x8xf32, #tpu.memory_space<vmem>>, %arg7: memref<9x4x8xbf16, #tpu.memory_space<vmem>>, %arg8: memref<1x8xf32, #tpu.memory_space<vmem>>, %arg9: memref<1x8x8x8xf32, #tpu.memory_space<vmem>>, %arg10: memref<1x10x10x8xf32, #tpu.memory_space<vmem>>, %arg11: memref<1x4x9x9x4xf32, #tpu.memory_space<vmem>>) attributes {dimension_semantics = [#tpu.dimension_semantics<parallel>], iteration_bounds = array<i64: 2>, scalar_prefetch = 0 : i64, scratch_operands = 2 : i64, tpu.core_type = #tpu.core_type<tc>, window_params = [{transform_indices = @transform_0, window_bounds = array<i64: 1, 8, 8, 8>}, {transform_indices = @transform_1, window_bounds = array<i64: 1, 4, 8, 8, 4>}, {pipeline_mode = #tpu.pipeline_mode<synchronous>, transform_indices = @transform_2, window_bounds = array<i64: 1, 8>}, {pipeline_mode = #tpu.pipeline_mode<synchronous>, transform_indices = @transform_3, window_bounds = array<i64: 1, 8>}, {pipeline_mode = #tpu.pipeline_mode<synchronous>, transform_indices = @transform_4, window_bounds = array<i64: 9, 8, 8>}, {pipeline_mode = #tpu.pipeline_mode<synchronous>, transform_indices = @transform_5, window_bounds = array<i64: 1, 8>}, {pipeline_mode = #tpu.pipeline_mode<synchronous>, transform_indices = @transform_6, window_bounds = array<i64: 9, 4, 8>}, {pipeline_mode = #tpu.pipeline_mode<synchronous>, transform_indices = @transform_7, window_bounds = array<i64: 1, 8>}, {transform_indices = @transform_8, window_bounds = array<i64: 1, 8, 8, 8>}]} {
    %c0 = arith.constant 0 : index
    %c0_0 = arith.constant 0 : index
    %c0_1 = arith.constant 0 : index
    %c0_2 = arith.constant 0 : index
    %0 = vector.load %arg1[%c0, %c0_0, %c0_1, %c0_2] : memref<1x8x8x8xf32, #tpu.memory_space<vmem>>, vector<1x8x8x8xf32>
    %1 = vector.shape_cast %0 : vector<1x8x8x8xf32> to vector<64x8xf32>
    %c0_3 = arith.constant 0 : index
    %c0_4 = arith.constant 0 : index
    %2 = vector.load %arg3[%c0_3, %c0_4] : memref<1x8xf32, #tpu.memory_space<vmem>>, vector<1x8xf32>
    %3 = vector.broadcast %2 : vector<1x8xf32> to vector<64x8xf32>
    %4 = arith.mulf %1, %3 : vector<64x8xf32>
    %c0_5 = arith.constant 0 : index
    %c0_6 = arith.constant 0 : index
    %5 = vector.load %arg4[%c0_5, %c0_6] : memref<1x8xf32, #tpu.memory_space<vmem>>, vector<1x8xf32>
    %6 = vector.broadcast %5 : vector<1x8xf32> to vector<64x8xf32>
    %7 = arith.addf %4, %6 : vector<64x8xf32>
    %cst = arith.constant 0.000000e+00 : f32
    %8 = vector.broadcast %cst : f32 to vector<64x8xf32>
    %9 = arith.maximumf %7, %8 : vector<64x8xf32>
    %cst_7 = arith.constant 0.000000e+00 : f32
    %10 = vector.broadcast %cst_7 : f32 to vector<1x1x10x8xf32>
    %c0_8 = arith.constant 0 : index
    %c0_9 = arith.constant 0 : index
    %c0_10 = arith.constant 0 : index
    %c0_11 = arith.constant 0 : index
    %11 = vector.load %arg10[%c0_8, %c0_9, %c0_10, %c0_11] : memref<1x10x10x8xf32, #tpu.memory_space<vmem>>, vector<1x1x10x8xf32>
    tpu.vector_store %arg10[%c0_8, %c0_9, %c0_10, %c0_11], %10 {strides = array<i32>} : memref<1x10x10x8xf32, #tpu.memory_space<vmem>>, vector<1x1x10x8xf32>,
    %c0_12 = arith.constant 0 : index
    %c9 = arith.constant 9 : index
    %c0_13 = arith.constant 0 : index
    %c0_14 = arith.constant 0 : index
    %12 = vector.load %arg10[%c0_12, %c9, %c0_13, %c0_14] : memref<1x10x10x8xf32, #tpu.memory_space<vmem>>, vector<1x1x10x8xf32>
    tpu.vector_store %arg10[%c0_12, %c9, %c0_13, %c0_14], %10 {strides = array<i32>} : memref<1x10x10x8xf32, #tpu.memory_space<vmem>>, vector<1x1x10x8xf32>,
    %cst_15 = arith.constant 0.000000e+00 : f32
    %13 = vector.broadcast %cst_15 : f32 to vector<1x10x1x8xf32>
    %c0_16 = arith.constant 0 : index
    %c0_17 = arith.constant 0 : index
    %c0_18 = arith.constant 0 : index
    %c0_19 = arith.constant 0 : index
    %14 = vector.load %arg10[%c0_16, %c0_17, %c0_18, %c0_19] : memref<1x10x10x8xf32, #tpu.memory_space<vmem>>, vector<1x10x1x8xf32>
    tpu.vector_store %arg10[%c0_16, %c0_17, %c0_18, %c0_19], %13 {strides = array<i32>} : memref<1x10x10x8xf32, #tpu.memory_space<vmem>>, vector<1x10x1x8xf32>,
    %c0_20 = arith.constant 0 : index
    %c0_21 = arith.constant 0 : index
    %c9_22 = arith.constant 9 : index
    %c0_23 = arith.constant 0 : index
    %15 = vector.load %arg10[%c0_20, %c0_21, %c9_22, %c0_23] : memref<1x10x10x8xf32, #tpu.memory_space<vmem>>, vector<1x10x1x8xf32>
    tpu.vector_store %arg10[%c0_20, %c0_21, %c9_22, %c0_23], %13 {strides = array<i32>} : memref<1x10x10x8xf32, #tpu.memory_space<vmem>>, vector<1x10x1x8xf32>,
    %16 = vector.shape_cast %9 : vector<64x8xf32> to vector<1x8x8x8xf32>
    %c0_24 = arith.constant 0 : index
    %c1 = arith.constant 1 : index
    %c1_25 = arith.constant 1 : index
    %c0_26 = arith.constant 0 : index
    %17 = vector.load %arg10[%c0_24, %c1, %c1_25, %c0_26] : memref<1x10x10x8xf32, #tpu.memory_space<vmem>>, vector<1x8x8x8xf32>
    tpu.vector_store %arg10[%c0_24, %c1, %c1_25, %c0_26], %16 {strides = array<i32>} : memref<1x10x10x8xf32, #tpu.memory_space<vmem>>, vector<1x8x8x8xf32>,
    %cst_27 = arith.constant 0.000000e+00 : f32
    %18 = vector.broadcast %cst_27 : f32 to vector<64x8xf32>
    %c0_28 = arith.constant 0 : index
    %c0_29 = arith.constant 0 : index
    %c0_30 = arith.constant 0 : index
    %c0_31 = arith.constant 0 : index
    %19 = vector.load %arg10[%c0_28, %c0_29, %c0_30, %c0_31] : memref<1x10x10x8xf32, #tpu.memory_space<vmem>>, vector<1x8x8x8xf32>
    %20 = vector.shape_cast %19 : vector<1x8x8x8xf32> to vector<64x8xf32>
    %21 = arith.truncf %20 : vector<64x8xf32> to vector<64x8xbf16>
    %c0_32 = arith.constant 0 : index
    %c0_33 = arith.constant 0 : index
    %c0_34 = arith.constant 0 : index
    %22 = vector.load %arg5[%c0_32, %c0_33, %c0_34] : memref<9x8x8xbf16, #tpu.memory_space<vmem>>, vector<1x8x8xbf16>
    %23 = vector.shape_cast %22 : vector<1x8x8xbf16> to vector<8x8xbf16>
    %cst_35 = arith.constant dense<0.000000e+00> : vector<64x8xf32>
    %24 = tpu.matmul %21, %23, %cst_35 {dimension_numbers = #tpu.dot_dimension_numbers<[1], [0], [0], [1], [0, 0, 1, 1], [], []>} : vector<64x8xbf16>, vector<8x8xbf16>, vector<64x8xf32> -> vector<64x8xf32>
    %25 = arith.addf %18, %24 : vector<64x8xf32>
    %c0_36 = arith.constant 0 : index
    %c0_37 = arith.constant 0 : index
    %c1_38 = arith.constant 1 : index
    %c0_39 = arith.constant 0 : index
    %26 = vector.load %arg10[%c0_36, %c0_37, %c1_38, %c0_39] : memref<1x10x10x8xf32, #tpu.memory_space<vmem>>, vector<1x8x8x8xf32>
    %27 = vector.shape_cast %26 : vector<1x8x8x8xf32> to vector<64x8xf32>
    %28 = arith.truncf %27 : vector<64x8xf32> to vector<64x8xbf16>
    %c1_40 = arith.constant 1 : index
    %c0_41 = arith.constant 0 : index
    %c0_42 = arith.constant 0 : index
    %29 = vector.load %arg5[%c1_40, %c0_41, %c0_42] : memref<9x8x8xbf16, #tpu.memory_space<vmem>>, vector<1x8x8xbf16>
    %30 = vector.shape_cast %29 : vector<1x8x8xbf16> to vector<8x8xbf16>
    %cst_43 = arith.constant dense<0.000000e+00> : vector<64x8xf32>
    %31 = tpu.matmul %28, %30, %cst_43 {dimension_numbers = #tpu.dot_dimension_numbers<[1], [0], [0], [1], [0, 0, 1, 1], [], []>} : vector<64x8xbf16>, vector<8x8xbf16>, vector<64x8xf32> -> vector<64x8xf32>
    %32 = arith.addf %25, %31 : vector<64x8xf32>
    %c0_44 = arith.constant 0 : index
    %c0_45 = arith.constant 0 : index
    %c2 = arith.constant 2 : index
    %c0_46 = arith.constant 0 : index
    %33 = vector.load %arg10[%c0_44, %c0_45, %c2, %c0_46] : memref<1x10x10x8xf32, #tpu.memory_space<vmem>>, vector<1x8x8x8xf32>
    %34 = vector.shape_cast %33 : vector<1x8x8x8xf32> to vector<64x8xf32>
    %35 = arith.truncf %34 : vector<64x8xf32> to vector<64x8xbf16>
    %c2_47 = arith.constant 2 : index
    %c0_48 = arith.constant 0 : index
    %c0_49 = arith.constant 0 : index
    %36 = vector.load %arg5[%c2_47, %c0_48, %c0_49] : memref<9x8x8xbf16, #tpu.memory_space<vmem>>, vector<1x8x8xbf16>
    %37 = vector.shape_cast %36 : vector<1x8x8xbf16> to vector<8x8xbf16>
    %cst_50 = arith.constant dense<0.000000e+00> : vector<64x8xf32>
    %38 = tpu.matmul %35, %37, %cst_50 {dimension_numbers = #tpu.dot_dimension_numbers<[1], [0], [0], [1], [0, 0, 1, 1], [], []>} : vector<64x8xbf16>, vector<8x8xbf16>, vector<64x8xf32> -> vector<64x8xf32>
    %39 = arith.addf %32, %38 : vector<64x8xf32>
    %c0_51 = arith.constant 0 : index
    %c1_52 = arith.constant 1 : index
    %c0_53 = arith.constant 0 : index
    %c0_54 = arith.constant 0 : index
    %40 = vector.load %arg10[%c0_51, %c1_52, %c0_53, %c0_54] : memref<1x10x10x8xf32, #tpu.memory_space<vmem>>, vector<1x8x8x8xf32>
    %41 = vector.shape_cast %40 : vector<1x8x8x8xf32> to vector<64x8xf32>
    %42 = arith.truncf %41 : vector<64x8xf32> to vector<64x8xbf16>
    %c3 = arith.constant 3 : index
    %c0_55 = arith.constant 0 : index
    %c0_56 = arith.constant 0 : index
    %43 = vector.load %arg5[%c3, %c0_55, %c0_56] : memref<9x8x8xbf16, #tpu.memory_space<vmem>>, vector<1x8x8xbf16>
    %44 = vector.shape_cast %43 : vector<1x8x8xbf16> to vector<8x8xbf16>
    %cst_57 = arith.constant dense<0.000000e+00> : vector<64x8xf32>
    %45 = tpu.matmul %42, %44, %cst_57 {dimension_numbers = #tpu.dot_dimension_numbers<[1], [0], [0], [1], [0, 0, 1, 1], [], []>} : vector<64x8xbf16>, vector<8x8xbf16>, vector<64x8xf32> -> vector<64x8xf32>
    %46 = arith.addf %39, %45 : vector<64x8xf32>
    %c0_58 = arith.constant 0 : index
    %c1_59 = arith.constant 1 : index
    %c1_60 = arith.constant 1 : index
    %c0_61 = arith.constant 0 : index
    %47 = vector.load %arg10[%c0_58, %c1_59, %c1_60, %c0_61] : memref<1x10x10x8xf32, #tpu.memory_space<vmem>>, vector<1x8x8x8xf32>
    %48 = vector.shape_cast %47 : vector<1x8x8x8xf32> to vector<64x8xf32>
    %49 = arith.truncf %48 : vector<64x8xf32> to vector<64x8xbf16>
    %c4 = arith.constant 4 : index
    %c0_62 = arith.constant 0 : index
    %c0_63 = arith.constant 0 : index
    %50 = vector.load %arg5[%c4, %c0_62, %c0_63] : memref<9x8x8xbf16, #tpu.memory_space<vmem>>, vector<1x8x8xbf16>
    %51 = vector.shape_cast %50 : vector<1x8x8xbf16> to vector<8x8xbf16>
    %cst_64 = arith.constant dense<0.000000e+00> : vector<64x8xf32>
    %52 = tpu.matmul %49, %51, %cst_64 {dimension_numbers = #tpu.dot_dimension_numbers<[1], [0], [0], [1], [0, 0, 1, 1], [], []>} : vector<64x8xbf16>, vector<8x8xbf16>, vector<64x8xf32> -> vector<64x8xf32>
    %53 = arith.addf %46, %52 : vector<64x8xf32>
    %c0_65 = arith.constant 0 : index
    %c1_66 = arith.constant 1 : index
    %c2_67 = arith.constant 2 : index
    %c0_68 = arith.constant 0 : index
    %54 = vector.load %arg10[%c0_65, %c1_66, %c2_67, %c0_68] : memref<1x10x10x8xf32, #tpu.memory_space<vmem>>, vector<1x8x8x8xf32>
    %55 = vector.shape_cast %54 : vector<1x8x8x8xf32> to vector<64x8xf32>
    %56 = arith.truncf %55 : vector<64x8xf32> to vector<64x8xbf16>
    %c5 = arith.constant 5 : index
    %c0_69 = arith.constant 0 : index
    %c0_70 = arith.constant 0 : index
    %57 = vector.load %arg5[%c5, %c0_69, %c0_70] : memref<9x8x8xbf16, #tpu.memory_space<vmem>>, vector<1x8x8xbf16>
    %58 = vector.shape_cast %57 : vector<1x8x8xbf16> to vector<8x8xbf16>
    %cst_71 = arith.constant dense<0.000000e+00> : vector<64x8xf32>
    %59 = tpu.matmul %56, %58, %cst_71 {dimension_numbers = #tpu.dot_dimension_numbers<[1], [0], [0], [1], [0, 0, 1, 1], [], []>} : vector<64x8xbf16>, vector<8x8xbf16>, vector<64x8xf32> -> vector<64x8xf32>
    %60 = arith.addf %53, %59 : vector<64x8xf32>
    %c0_72 = arith.constant 0 : index
    %c2_73 = arith.constant 2 : index
    %c0_74 = arith.constant 0 : index
    %c0_75 = arith.constant 0 : index
    %61 = vector.load %arg10[%c0_72, %c2_73, %c0_74, %c0_75] : memref<1x10x10x8xf32, #tpu.memory_space<vmem>>, vector<1x8x8x8xf32>
    %62 = vector.shape_cast %61 : vector<1x8x8x8xf32> to vector<64x8xf32>
    %63 = arith.truncf %62 : vector<64x8xf32> to vector<64x8xbf16>
    %c6 = arith.constant 6 : index
    %c0_76 = arith.constant 0 : index
    %c0_77 = arith.constant 0 : index
    %64 = vector.load %arg5[%c6, %c0_76, %c0_77] : memref<9x8x8xbf16, #tpu.memory_space<vmem>>, vector<1x8x8xbf16>
    %65 = vector.shape_cast %64 : vector<1x8x8xbf16> to vector<8x8xbf16>
    %cst_78 = arith.constant dense<0.000000e+00> : vector<64x8xf32>
    %66 = tpu.matmul %63, %65, %cst_78 {dimension_numbers = #tpu.dot_dimension_numbers<[1], [0], [0], [1], [0, 0, 1, 1], [], []>} : vector<64x8xbf16>, vector<8x8xbf16>, vector<64x8xf32> -> vector<64x8xf32>
    %67 = arith.addf %60, %66 : vector<64x8xf32>
    %c0_79 = arith.constant 0 : index
    %c2_80 = arith.constant 2 : index
    %c1_81 = arith.constant 1 : index
    %c0_82 = arith.constant 0 : index
    %68 = vector.load %arg10[%c0_79, %c2_80, %c1_81, %c0_82] : memref<1x10x10x8xf32, #tpu.memory_space<vmem>>, vector<1x8x8x8xf32>
    %69 = vector.shape_cast %68 : vector<1x8x8x8xf32> to vector<64x8xf32>
    %70 = arith.truncf %69 : vector<64x8xf32> to vector<64x8xbf16>
    %c7 = arith.constant 7 : index
    %c0_83 = arith.constant 0 : index
    %c0_84 = arith.constant 0 : index
    %71 = vector.load %arg5[%c7, %c0_83, %c0_84] : memref<9x8x8xbf16, #tpu.memory_space<vmem>>, vector<1x8x8xbf16>
    %72 = vector.shape_cast %71 : vector<1x8x8xbf16> to vector<8x8xbf16>
    %cst_85 = arith.constant dense<0.000000e+00> : vector<64x8xf32>
    %73 = tpu.matmul %70, %72, %cst_85 {dimension_numbers = #tpu.dot_dimension_numbers<[1], [0], [0], [1], [0, 0, 1, 1], [], []>} : vector<64x8xbf16>, vector<8x8xbf16>, vector<64x8xf32> -> vector<64x8xf32>
    %74 = arith.addf %67, %73 : vector<64x8xf32>
    %c0_86 = arith.constant 0 : index
    %c2_87 = arith.constant 2 : index
    %c2_88 = arith.constant 2 : index
    %c0_89 = arith.constant 0 : index
    %75 = vector.load %arg10[%c0_86, %c2_87, %c2_88, %c0_89] : memref<1x10x10x8xf32, #tpu.memory_space<vmem>>, vector<1x8x8x8xf32>
    %76 = vector.shape_cast %75 : vector<1x8x8x8xf32> to vector<64x8xf32>
    %77 = arith.truncf %76 : vector<64x8xf32> to vector<64x8xbf16>
    %c8 = arith.constant 8 : index
    %c0_90 = arith.constant 0 : index
    %c0_91 = arith.constant 0 : index
    %78 = vector.load %arg5[%c8, %c0_90, %c0_91] : memref<9x8x8xbf16, #tpu.memory_space<vmem>>, vector<1x8x8xbf16>
    %79 = vector.shape_cast %78 : vector<1x8x8xbf16> to vector<8x8xbf16>
    %cst_92 = arith.constant dense<0.000000e+00> : vector<64x8xf32>
    %80 = tpu.matmul %77, %79, %cst_92 {dimension_numbers = #tpu.dot_dimension_numbers<[1], [0], [0], [1], [0, 0, 1, 1], [], []>} : vector<64x8xbf16>, vector<8x8xbf16>, vector<64x8xf32> -> vector<64x8xf32>
    %81 = arith.addf %74, %80 : vector<64x8xf32>
    %c0_93 = arith.constant 0 : index
    %c0_94 = arith.constant 0 : index
    %82 = vector.load %arg6[%c0_93, %c0_94] : memref<1x8xf32, #tpu.memory_space<vmem>>, vector<1x8xf32>
    %83 = vector.broadcast %82 : vector<1x8xf32> to vector<64x8xf32>
    %84 = arith.addf %81, %83 : vector<64x8xf32>
    %c0_95 = arith.constant 0 : index
    %c0_96 = arith.constant 0 : index
    %c0_97 = arith.constant 0 : index
    %c0_98 = arith.constant 0 : index
    %c0_99 = arith.constant 0 : index
    %85 = vector.load %arg2[%c0_95, %c0_96, %c0_97, %c0_98, %c0_99] : memref<1x4x8x8x4xf32, #tpu.memory_space<vmem>>, vector<1x4x8x8x4xf32>
    %cst_100 = arith.constant 0.000000e+00 : f32
    %86 = vector.broadcast %cst_100 : f32 to vector<1x1x9x4xf32>
    %c0_101 = arith.constant 0 : index
    %c0_102 = arith.constant 0 : index
    %c0_103 = arith.constant 0 : index
    %c0_104 = arith.constant 0 : index
    %c0_105 = arith.constant 0 : index
    %87 = vector.load %arg11[%c0_101, %c0_102, %c0_103, %c0_104, %c0_105] : memref<1x4x9x9x4xf32, #tpu.memory_space<vmem>>, vector<1x1x1x9x4xf32>
    %88 = vector.shape_cast %87 : vector<1x1x1x9x4xf32> to vector<1x1x9x4xf32>
    %89 = vector.shape_cast %86 : vector<1x1x9x4xf32> to vector<1x1x1x9x4xf32>
    tpu.vector_store %arg11[%c0_101, %c0_102, %c0_103, %c0_104, %c0_105], %89 {strides = array<i32>} : memref<1x4x9x9x4xf32, #tpu.memory_space<vmem>>, vector<1x1x1x9x4xf32>,
    %cst_106 = arith.constant 0.000000e+00 : f32
    %90 = vector.broadcast %cst_106 : f32 to vector<1x9x1x4xf32>
    %c0_107 = arith.constant 0 : index
    %c0_108 = arith.constant 0 : index
    %c0_109 = arith.constant 0 : index
    %c0_110 = arith.constant 0 : index
    %c0_111 = arith.constant 0 : index
    %91 = vector.load %arg11[%c0_107, %c0_108, %c0_109, %c0_110, %c0_111] : memref<1x4x9x9x4xf32, #tpu.memory_space<vmem>>, vector<1x1x9x1x4xf32>
    %92 = vector.shape_cast %91 : vector<1x1x9x1x4xf32> to vector<1x9x1x4xf32>
    %93 = vector.shape_cast %90 : vector<1x9x1x4xf32> to vector<1x1x9x1x4xf32>
    tpu.vector_store %arg11[%c0_107, %c0_108, %c0_109, %c0_110, %c0_111], %93 {strides = array<i32>} : memref<1x4x9x9x4xf32, #tpu.memory_space<vmem>>, vector<1x1x9x1x4xf32>,
    %cst_112 = arith.constant 0.000000e+00 : f32
    %94 = vector.broadcast %cst_112 : f32 to vector<1x1x9x4xf32>
    %c0_113 = arith.constant 0 : index
    %c1_114 = arith.constant 1 : index
    %c0_115 = arith.constant 0 : index
    %c0_116 = arith.constant 0 : index
    %c0_117 = arith.constant 0 : index
    %95 = vector.load %arg11[%c0_113, %c1_114, %c0_115, %c0_116, %c0_117] : memref<1x4x9x9x4xf32, #tpu.memory_space<vmem>>, vector<1x1x1x9x4xf32>
    %96 = vector.shape_cast %95 : vector<1x1x1x9x4xf32> to vector<1x1x9x4xf32>
    %97 = vector.shape_cast %94 : vector<1x1x9x4xf32> to vector<1x1x1x9x4xf32>
    tpu.vector_store %arg11[%c0_113, %c1_114, %c0_115, %c0_116, %c0_117], %97 {strides = array<i32>} : memref<1x4x9x9x4xf32, #tpu.memory_space<vmem>>, vector<1x1x1x9x4xf32>,
    %cst_118 = arith.constant 0.000000e+00 : f32
    %98 = vector.broadcast %cst_118 : f32 to vector<1x9x1x4xf32>
    %c0_119 = arith.constant 0 : index
    %c1_120 = arith.constant 1 : index
    %c0_121 = arith.constant 0 : index
    %c8_122 = arith.constant 8 : index
    %c0_123 = arith.constant 0 : index
    %99 = vector.load %arg11[%c0_119, %c1_120, %c0_121, %c8_122, %c0_123] : memref<1x4x9x9x4xf32, #tpu.memory_space<vmem>>, vector<1x1x9x1x4xf32>
    %100 = vector.shape_cast %99 : vector<1x1x9x1x4xf32> to vector<1x9x1x4xf32>
    %101 = vector.shape_cast %98 : vector<1x9x1x4xf32> to vector<1x1x9x1x4xf32>
    tpu.vector_store %arg11[%c0_119, %c1_120, %c0_121, %c8_122, %c0_123], %101 {strides = array<i32>} : memref<1x4x9x9x4xf32, #tpu.memory_space<vmem>>, vector<1x1x9x1x4xf32>,
    %cst_124 = arith.constant 0.000000e+00 : f32
    %102 = vector.broadcast %cst_124 : f32 to vector<1x1x9x4xf32>
    %c0_125 = arith.constant 0 : index
    %c2_126 = arith.constant 2 : index
    %c8_127 = arith.constant 8 : index
    %c0_128 = arith.constant 0 : index
    %c0_129 = arith.constant 0 : index
    %103 = vector.load %arg11[%c0_125, %c2_126, %c8_127, %c0_128, %c0_129] : memref<1x4x9x9x4xf32, #tpu.memory_space<vmem>>, vector<1x1x1x9x4xf32>
    %104 = vector.shape_cast %103 : vector<1x1x1x9x4xf32> to vector<1x1x9x4xf32>
    %105 = vector.shape_cast %102 : vector<1x1x9x4xf32> to vector<1x1x1x9x4xf32>
    tpu.vector_store %arg11[%c0_125, %c2_126, %c8_127, %c0_128, %c0_129], %105 {strides = array<i32>} : memref<1x4x9x9x4xf32, #tpu.memory_space<vmem>>, vector<1x1x1x9x4xf32>,
    %cst_130 = arith.constant 0.000000e+00 : f32
    %106 = vector.broadcast %cst_130 : f32 to vector<1x9x1x4xf32>
    %c0_131 = arith.constant 0 : index
    %c2_132 = arith.constant 2 : index
    %c0_133 = arith.constant 0 : index
    %c0_134 = arith.constant 0 : index
    %c0_135 = arith.constant 0 : index
    %107 = vector.load %arg11[%c0_131, %c2_132, %c0_133, %c0_134, %c0_135] : memref<1x4x9x9x4xf32, #tpu.memory_space<vmem>>, vector<1x1x9x1x4xf32>
    %108 = vector.shape_cast %107 : vector<1x1x9x1x4xf32> to vector<1x9x1x4xf32>
    %109 = vector.shape_cast %106 : vector<1x9x1x4xf32> to vector<1x1x9x1x4xf32>
    tpu.vector_store %arg11[%c0_131, %c2_132, %c0_133, %c0_134, %c0_135], %109 {strides = array<i32>} : memref<1x4x9x9x4xf32, #tpu.memory_space<vmem>>, vector<1x1x9x1x4xf32>,
    %cst_136 = arith.constant 0.000000e+00 : f32
    %110 = vector.broadcast %cst_136 : f32 to vector<1x1x9x4xf32>
    %c0_137 = arith.constant 0 : index
    %c3_138 = arith.constant 3 : index
    %c8_139 = arith.constant 8 : index
    %c0_140 = arith.constant 0 : index
    %c0_141 = arith.constant 0 : index
    %111 = vector.load %arg11[%c0_137, %c3_138, %c8_139, %c0_140, %c0_141] : memref<1x4x9x9x4xf32, #tpu.memory_space<vmem>>, vector<1x1x1x9x4xf32>
    %112 = vector.shape_cast %111 : vector<1x1x1x9x4xf32> to vector<1x1x9x4xf32>
    %113 = vector.shape_cast %110 : vector<1x1x9x4xf32> to vector<1x1x1x9x4xf32>
    tpu.vector_store %arg11[%c0_137, %c3_138, %c8_139, %c0_140, %c0_141], %113 {strides = array<i32>} : memref<1x4x9x9x4xf32, #tpu.memory_space<vmem>>, vector<1x1x1x9x4xf32>,
    %cst_142 = arith.constant 0.000000e+00 : f32
    %114 = vector.broadcast %cst_142 : f32 to vector<1x9x1x4xf32>
    %c0_143 = arith.constant 0 : index
    %c3_144 = arith.constant 3 : index
    %c0_145 = arith.constant 0 : index
    %c8_146 = arith.constant 8 : index
    %c0_147 = arith.constant 0 : index
    %115 = vector.load %arg11[%c0_143, %c3_144, %c0_145, %c8_146, %c0_147] : memref<1x4x9x9x4xf32, #tpu.memory_space<vmem>>, vector<1x1x9x1x4xf32>
    %116 = vector.shape_cast %115 : vector<1x1x9x1x4xf32> to vector<1x9x1x4xf32>
    %117 = vector.shape_cast %114 : vector<1x9x1x4xf32> to vector<1x1x9x1x4xf32>
    tpu.vector_store %arg11[%c0_143, %c3_144, %c0_145, %c8_146, %c0_147], %117 {strides = array<i32>} : memref<1x4x9x9x4xf32, #tpu.memory_space<vmem>>, vector<1x1x9x1x4xf32>,
    %118 = vector.extract_strided_slice %85 {offsets = [0, 3, 0, 0, 0], sizes = [1, 1, 8, 8, 4], strides = [1, 1, 1, 1, 1]} : vector<1x4x8x8x4xf32> to vector<1x1x8x8x4xf32>
    %119 = vector.shape_cast %118 : vector<1x1x8x8x4xf32> to vector<1x8x8x4xf32>
    %c0_148 = arith.constant 0 : index
    %c0_149 = arith.constant 0 : index
    %c1_150 = arith.constant 1 : index
    %c1_151 = arith.constant 1 : index
    %c0_152 = arith.constant 0 : index
    %120 = vector.load %arg11[%c0_148, %c0_149, %c1_150, %c1_151, %c0_152] : memref<1x4x9x9x4xf32, #tpu.memory_space<vmem>>, vector<1x1x8x8x4xf32>
    %121 = vector.shape_cast %120 : vector<1x1x8x8x4xf32> to vector<1x8x8x4xf32>
    %122 = vector.shape_cast %119 : vector<1x8x8x4xf32> to vector<1x1x8x8x4xf32>
    tpu.vector_store %arg11[%c0_148, %c0_149, %c1_150, %c1_151, %c0_152], %122 {strides = array<i32>} : memref<1x4x9x9x4xf32, #tpu.memory_space<vmem>>, vector<1x1x8x8x4xf32>,
    %123 = vector.extract_strided_slice %85 {offsets = [0, 2, 0, 0, 0], sizes = [1, 1, 8, 8, 4], strides = [1, 1, 1, 1, 1]} : vector<1x4x8x8x4xf32> to vector<1x1x8x8x4xf32>
    %124 = vector.shape_cast %123 : vector<1x1x8x8x4xf32> to vector<1x8x8x4xf32>
    %c0_153 = arith.constant 0 : index
    %c1_154 = arith.constant 1 : index
    %c1_155 = arith.constant 1 : index
    %c0_156 = arith.constant 0 : index
    %c0_157 = arith.constant 0 : index
    %125 = vector.load %arg11[%c0_153, %c1_154, %c1_155, %c0_156, %c0_157] : memref<1x4x9x9x4xf32, #tpu.memory_space<vmem>>, vector<1x1x8x8x4xf32>
    %126 = vector.shape_cast %125 : vector<1x1x8x8x4xf32> to vector<1x8x8x4xf32>
    %127 = vector.shape_cast %124 : vector<1x8x8x4xf32> to vector<1x1x8x8x4xf32>
    tpu.vector_store %arg11[%c0_153, %c1_154, %c1_155, %c0_156, %c0_157], %127 {strides = array<i32>} : memref<1x4x9x9x4xf32, #tpu.memory_space<vmem>>, vector<1x1x8x8x4xf32>,
    %128 = vector.extract_strided_slice %85 {offsets = [0, 1, 0, 0, 0], sizes = [1, 1, 8, 8, 4], strides = [1, 1, 1, 1, 1]} : vector<1x4x8x8x4xf32> to vector<1x1x8x8x4xf32>
    %129 = vector.shape_cast %128 : vector<1x1x8x8x4xf32> to vector<1x8x8x4xf32>
    %c0_158 = arith.constant 0 : index
    %c2_159 = arith.constant 2 : index
    %c0_160 = arith.constant 0 : index
    %c1_161 = arith.constant 1 : index
    %c0_162 = arith.constant 0 : index
    %130 = vector.load %arg11[%c0_158, %c2_159, %c0_160, %c1_161, %c0_162] : memref<1x4x9x9x4xf32, #tpu.memory_space<vmem>>, vector<1x1x8x8x4xf32>
    %131 = vector.shape_cast %130 : vector<1x1x8x8x4xf32> to vector<1x8x8x4xf32>
    %132 = vector.shape_cast %129 : vector<1x8x8x4xf32> to vector<1x1x8x8x4xf32>
    tpu.vector_store %arg11[%c0_158, %c2_159, %c0_160, %c1_161, %c0_162], %132 {strides = array<i32>} : memref<1x4x9x9x4xf32, #tpu.memory_space<vmem>>, vector<1x1x8x8x4xf32>,
    %133 = vector.extract_strided_slice %85 {offsets = [0, 0, 0, 0, 0], sizes = [1, 1, 8, 8, 4], strides = [1, 1, 1, 1, 1]} : vector<1x4x8x8x4xf32> to vector<1x1x8x8x4xf32>
    %134 = vector.shape_cast %133 : vector<1x1x8x8x4xf32> to vector<1x8x8x4xf32>
    %c0_163 = arith.constant 0 : index
    %c3_164 = arith.constant 3 : index
    %c0_165 = arith.constant 0 : index
    %c0_166 = arith.constant 0 : index
    %c0_167 = arith.constant 0 : index
    %135 = vector.load %arg11[%c0_163, %c3_164, %c0_165, %c0_166, %c0_167] : memref<1x4x9x9x4xf32, #tpu.memory_space<vmem>>, vector<1x1x8x8x4xf32>
    %136 = vector.shape_cast %135 : vector<1x1x8x8x4xf32> to vector<1x8x8x4xf32>
    %137 = vector.shape_cast %134 : vector<1x8x8x4xf32> to vector<1x1x8x8x4xf32>
    tpu.vector_store %arg11[%c0_163, %c3_164, %c0_165, %c0_166, %c0_167], %137 {strides = array<i32>} : memref<1x4x9x9x4xf32, #tpu.memory_space<vmem>>, vector<1x1x8x8x4xf32>,
    %cst_168 = arith.constant 0.000000e+00 : f32
    %138 = vector.broadcast %cst_168 : f32 to vector<64x8xf32>
    %c0_169 = arith.constant 0 : index
    %c0_170 = arith.constant 0 : index
    %c0_171 = arith.constant 0 : index
    %c0_172 = arith.constant 0 : index
    %c0_173 = arith.constant 0 : index
    %139 = vector.load %arg11[%c0_169, %c0_170, %c0_171, %c0_172, %c0_173] : memref<1x4x9x9x4xf32, #tpu.memory_space<vmem>>, vector<1x1x8x8x4xf32>
    %140 = vector.shape_cast %139 : vector<1x1x8x8x4xf32> to vector<1x8x8x4xf32>
    %141 = vector.shape_cast %140 : vector<1x8x8x4xf32> to vector<64x4xf32>
    %142 = arith.truncf %141 : vector<64x4xf32> to vector<64x4xbf16>
    %c0_174 = arith.constant 0 : index
    %c0_175 = arith.constant 0 : index
    %c0_176 = arith.constant 0 : index
    %143 = vector.load %arg7[%c0_174, %c0_175, %c0_176] : memref<9x4x8xbf16, #tpu.memory_space<vmem>>, vector<1x4x8xbf16>
    %144 = vector.shape_cast %143 : vector<1x4x8xbf16> to vector<4x8xbf16>
    %cst_177 = arith.constant dense<0.000000e+00> : vector<64x8xf32>
    %145 = tpu.matmul %142, %144, %cst_177 {dimension_numbers = #tpu.dot_dimension_numbers<[1], [0], [0], [1], [0, 0, 1, 1], [], []>} : vector<64x4xbf16>, vector<4x8xbf16>, vector<64x8xf32> -> vector<64x8xf32>
    %146 = arith.addf %138, %145 : vector<64x8xf32>
    %c0_178 = arith.constant 0 : index
    %c1_179 = arith.constant 1 : index
    %c0_180 = arith.constant 0 : index
    %c0_181 = arith.constant 0 : index
    %c0_182 = arith.constant 0 : index
    %147 = vector.load %arg11[%c0_178, %c1_179, %c0_180, %c0_181, %c0_182] : memref<1x4x9x9x4xf32, #tpu.memory_space<vmem>>, vector<1x1x8x8x4xf32>
    %148 = vector.shape_cast %147 : vector<1x1x8x8x4xf32> to vector<1x8x8x4xf32>
    %149 = vector.shape_cast %148 : vector<1x8x8x4xf32> to vector<64x4xf32>
    %150 = arith.truncf %149 : vector<64x4xf32> to vector<64x4xbf16>
    %c1_183 = arith.constant 1 : index
    %c0_184 = arith.constant 0 : index
    %c0_185 = arith.constant 0 : index
    %151 = vector.load %arg7[%c1_183, %c0_184, %c0_185] : memref<9x4x8xbf16, #tpu.memory_space<vmem>>, vector<1x4x8xbf16>
    %152 = vector.shape_cast %151 : vector<1x4x8xbf16> to vector<4x8xbf16>
    %cst_186 = arith.constant dense<0.000000e+00> : vector<64x8xf32>
    %153 = tpu.matmul %150, %152, %cst_186 {dimension_numbers = #tpu.dot_dimension_numbers<[1], [0], [0], [1], [0, 0, 1, 1], [], []>} : vector<64x4xbf16>, vector<4x8xbf16>, vector<64x8xf32> -> vector<64x8xf32>
    %154 = arith.addf %146, %153 : vector<64x8xf32>
    %c0_187 = arith.constant 0 : index
    %c0_188 = arith.constant 0 : index
    %c0_189 = arith.constant 0 : index
    %c1_190 = arith.constant 1 : index
    %c0_191 = arith.constant 0 : index
    %155 = vector.load %arg11[%c0_187, %c0_188, %c0_189, %c1_190, %c0_191] : memref<1x4x9x9x4xf32, #tpu.memory_space<vmem>>, vector<1x1x8x8x4xf32>
    %156 = vector.shape_cast %155 : vector<1x1x8x8x4xf32> to vector<1x8x8x4xf32>
    %157 = vector.shape_cast %156 : vector<1x8x8x4xf32> to vector<64x4xf32>
    %158 = arith.truncf %157 : vector<64x4xf32> to vector<64x4xbf16>
    %c2_192 = arith.constant 2 : index
    %c0_193 = arith.constant 0 : index
    %c0_194 = arith.constant 0 : index
    %159 = vector.load %arg7[%c2_192, %c0_193, %c0_194] : memref<9x4x8xbf16, #tpu.memory_space<vmem>>, vector<1x4x8xbf16>
    %160 = vector.shape_cast %159 : vector<1x4x8xbf16> to vector<4x8xbf16>
    %cst_195 = arith.constant dense<0.000000e+00> : vector<64x8xf32>
    %161 = tpu.matmul %158, %160, %cst_195 {dimension_numbers = #tpu.dot_dimension_numbers<[1], [0], [0], [1], [0, 0, 1, 1], [], []>} : vector<64x4xbf16>, vector<4x8xbf16>, vector<64x8xf32> -> vector<64x8xf32>
    %162 = arith.addf %154, %161 : vector<64x8xf32>
    %c0_196 = arith.constant 0 : index
    %c2_197 = arith.constant 2 : index
    %c0_198 = arith.constant 0 : index
    %c0_199 = arith.constant 0 : index
    %c0_200 = arith.constant 0 : index
    %163 = vector.load %arg11[%c0_196, %c2_197, %c0_198, %c0_199, %c0_200] : memref<1x4x9x9x4xf32, #tpu.memory_space<vmem>>, vector<1x1x8x8x4xf32>
    %164 = vector.shape_cast %163 : vector<1x1x8x8x4xf32> to vector<1x8x8x4xf32>
    %165 = vector.shape_cast %164 : vector<1x8x8x4xf32> to vector<64x4xf32>
    %166 = arith.truncf %165 : vector<64x4xf32> to vector<64x4xbf16>
    %c3_201 = arith.constant 3 : index
    %c0_202 = arith.constant 0 : index
    %c0_203 = arith.constant 0 : index
    %167 = vector.load %arg7[%c3_201, %c0_202, %c0_203] : memref<9x4x8xbf16, #tpu.memory_space<vmem>>, vector<1x4x8xbf16>
    %168 = vector.shape_cast %167 : vector<1x4x8xbf16> to vector<4x8xbf16>
    %cst_204 = arith.constant dense<0.000000e+00> : vector<64x8xf32>
    %169 = tpu.matmul %166, %168, %cst_204 {dimension_numbers = #tpu.dot_dimension_numbers<[1], [0], [0], [1], [0, 0, 1, 1], [], []>} : vector<64x4xbf16>, vector<4x8xbf16>, vector<64x8xf32> -> vector<64x8xf32>
    %170 = arith.addf %162, %169 : vector<64x8xf32>
    %c0_205 = arith.constant 0 : index
    %c3_206 = arith.constant 3 : index
    %c0_207 = arith.constant 0 : index
    %c0_208 = arith.constant 0 : index
    %c0_209 = arith.constant 0 : index
    %171 = vector.load %arg11[%c0_205, %c3_206, %c0_207, %c0_208, %c0_209] : memref<1x4x9x9x4xf32, #tpu.memory_space<vmem>>, vector<1x1x8x8x4xf32>
    %172 = vector.shape_cast %171 : vector<1x1x8x8x4xf32> to vector<1x8x8x4xf32>
    %173 = vector.shape_cast %172 : vector<1x8x8x4xf32> to vector<64x4xf32>
    %174 = arith.truncf %173 : vector<64x4xf32> to vector<64x4xbf16>
    %c4_210 = arith.constant 4 : index
    %c0_211 = arith.constant 0 : index
    %c0_212 = arith.constant 0 : index
    %175 = vector.load %arg7[%c4_210, %c0_211, %c0_212] : memref<9x4x8xbf16, #tpu.memory_space<vmem>>, vector<1x4x8xbf16>
    %176 = vector.shape_cast %175 : vector<1x4x8xbf16> to vector<4x8xbf16>
    %cst_213 = arith.constant dense<0.000000e+00> : vector<64x8xf32>
    %177 = tpu.matmul %174, %176, %cst_213 {dimension_numbers = #tpu.dot_dimension_numbers<[1], [0], [0], [1], [0, 0, 1, 1], [], []>} : vector<64x4xbf16>, vector<4x8xbf16>, vector<64x8xf32> -> vector<64x8xf32>
    %178 = arith.addf %170, %177 : vector<64x8xf32>
    %c0_214 = arith.constant 0 : index
    %c2_215 = arith.constant 2 : index
    %c0_216 = arith.constant 0 : index
    %c1_217 = arith.constant 1 : index
    %c0_218 = arith.constant 0 : index
    %179 = vector.load %arg11[%c0_214, %c2_215, %c0_216, %c1_217, %c0_218] : memref<1x4x9x9x4xf32, #tpu.memory_space<vmem>>, vector<1x1x8x8x4xf32>
    %180 = vector.shape_cast %179 : vector<1x1x8x8x4xf32> to vector<1x8x8x4xf32>
    %181 = vector.shape_cast %180 : vector<1x8x8x4xf32> to vector<64x4xf32>
    %182 = arith.truncf %181 : vector<64x4xf32> to vector<64x4xbf16>
    %c5_219 = arith.constant 5 : index
    %c0_220 = arith.constant 0 : index
    %c0_221 = arith.constant 0 : index
    %183 = vector.load %arg7[%c5_219, %c0_220, %c0_221] : memref<9x4x8xbf16, #tpu.memory_space<vmem>>, vector<1x4x8xbf16>
    %184 = vector.shape_cast %183 : vector<1x4x8xbf16> to vector<4x8xbf16>
    %cst_222 = arith.constant dense<0.000000e+00> : vector<64x8xf32>
    %185 = tpu.matmul %182, %184, %cst_222 {dimension_numbers = #tpu.dot_dimension_numbers<[1], [0], [0], [1], [0, 0, 1, 1], [], []>} : vector<64x4xbf16>, vector<4x8xbf16>, vector<64x8xf32> -> vector<64x8xf32>
    %186 = arith.addf %178, %185 : vector<64x8xf32>
    %c0_223 = arith.constant 0 : index
    %c0_224 = arith.constant 0 : index
    %c1_225 = arith.constant 1 : index
    %c0_226 = arith.constant 0 : index
    %c0_227 = arith.constant 0 : index
    %187 = vector.load %arg11[%c0_223, %c0_224, %c1_225, %c0_226, %c0_227] : memref<1x4x9x9x4xf32, #tpu.memory_space<vmem>>, vector<1x1x8x8x4xf32>
    %188 = vector.shape_cast %187 : vector<1x1x8x8x4xf32> to vector<1x8x8x4xf32>
    %189 = vector.shape_cast %188 : vector<1x8x8x4xf32> to vector<64x4xf32>
    %190 = arith.truncf %189 : vector<64x4xf32> to vector<64x4xbf16>
    %c6_228 = arith.constant 6 : index
    %c0_229 = arith.constant 0 : index
    %c0_230 = arith.constant 0 : index
    %191 = vector.load %arg7[%c6_228, %c0_229, %c0_230] : memref<9x4x8xbf16, #tpu.memory_space<vmem>>, vector<1x4x8xbf16>
    %192 = vector.shape_cast %191 : vector<1x4x8xbf16> to vector<4x8xbf16>
    %cst_231 = arith.constant dense<0.000000e+00> : vector<64x8xf32>
    %193 = tpu.matmul %190, %192, %cst_231 {dimension_numbers = #tpu.dot_dimension_numbers<[1], [0], [0], [1], [0, 0, 1, 1], [], []>} : vector<64x4xbf16>, vector<4x8xbf16>, vector<64x8xf32> -> vector<64x8xf32>
    %194 = arith.addf %186, %193 : vector<64x8xf32>
    %c0_232 = arith.constant 0 : index
    %c1_233 = arith.constant 1 : index
    %c1_234 = arith.constant 1 : index
    %c0_235 = arith.constant 0 : index
    %c0_236 = arith.constant 0 : index
    %195 = vector.load %arg11[%c0_232, %c1_233, %c1_234, %c0_235, %c0_236] : memref<1x4x9x9x4xf32, #tpu.memory_space<vmem>>, vector<1x1x8x8x4xf32>
    %196 = vector.shape_cast %195 : vector<1x1x8x8x4xf32> to vector<1x8x8x4xf32>
    %197 = vector.shape_cast %196 : vector<1x8x8x4xf32> to vector<64x4xf32>
    %198 = arith.truncf %197 : vector<64x4xf32> to vector<64x4xbf16>
    %c7_237 = arith.constant 7 : index
    %c0_238 = arith.constant 0 : index
    %c0_239 = arith.constant 0 : index
    %199 = vector.load %arg7[%c7_237, %c0_238, %c0_239] : memref<9x4x8xbf16, #tpu.memory_space<vmem>>, vector<1x4x8xbf16>
    %200 = vector.shape_cast %199 : vector<1x4x8xbf16> to vector<4x8xbf16>
    %cst_240 = arith.constant dense<0.000000e+00> : vector<64x8xf32>
    %201 = tpu.matmul %198, %200, %cst_240 {dimension_numbers = #tpu.dot_dimension_numbers<[1], [0], [0], [1], [0, 0, 1, 1], [], []>} : vector<64x4xbf16>, vector<4x8xbf16>, vector<64x8xf32> -> vector<64x8xf32>
    %202 = arith.addf %194, %201 : vector<64x8xf32>
    %c0_241 = arith.constant 0 : index
    %c0_242 = arith.constant 0 : index
    %c1_243 = arith.constant 1 : index
    %c1_244 = arith.constant 1 : index
    %c0_245 = arith.constant 0 : index
    %203 = vector.load %arg11[%c0_241, %c0_242, %c1_243, %c1_244, %c0_245] : memref<1x4x9x9x4xf32, #tpu.memory_space<vmem>>, vector<1x1x8x8x4xf32>
    %204 = vector.shape_cast %203 : vector<1x1x8x8x4xf32> to vector<1x8x8x4xf32>
    %205 = vector.shape_cast %204 : vector<1x8x8x4xf32> to vector<64x4xf32>
    %206 = arith.truncf %205 : vector<64x4xf32> to vector<64x4xbf16>
    %c8_246 = arith.constant 8 : index
    %c0_247 = arith.constant 0 : index
    %c0_248 = arith.constant 0 : index
    %207 = vector.load %arg7[%c8_246, %c0_247, %c0_248] : memref<9x4x8xbf16, #tpu.memory_space<vmem>>, vector<1x4x8xbf16>
    %208 = vector.shape_cast %207 : vector<1x4x8xbf16> to vector<4x8xbf16>
    %cst_249 = arith.constant dense<0.000000e+00> : vector<64x8xf32>
    %209 = tpu.matmul %206, %208, %cst_249 {dimension_numbers = #tpu.dot_dimension_numbers<[1], [0], [0], [1], [0, 0, 1, 1], [], []>} : vector<64x4xbf16>, vector<4x8xbf16>, vector<64x8xf32> -> vector<64x8xf32>
    %210 = arith.addf %202, %209 : vector<64x8xf32>
    %211 = arith.addf %84, %210 : vector<64x8xf32>
    %c0_250 = arith.constant 0 : index
    %c0_251 = arith.constant 0 : index
    %212 = vector.load %arg8[%c0_250, %c0_251] : memref<1x8xf32, #tpu.memory_space<vmem>>, vector<1x8xf32>
    %213 = vector.broadcast %212 : vector<1x8xf32> to vector<64x8xf32>
    %214 = arith.addf %211, %213 : vector<64x8xf32>
    %215 = vector.shape_cast %214 : vector<64x8xf32> to vector<1x8x8x8xf32>
    %c0_252 = arith.constant 0 : index
    %c0_253 = arith.constant 0 : index
    %c0_254 = arith.constant 0 : index
    %c0_255 = arith.constant 0 : index
    %216 = vector.load %arg9[%c0_252, %c0_253, %c0_254, %c0_255] : memref<1x8x8x8xf32, #tpu.memory_space<vmem>>, vector<1x8x8x8xf32>
    tpu.vector_store %arg9[%c0_252, %c0_253, %c0_254, %c0_255], %215 {strides = array<i32>} : memref<1x8x8x8xf32, #tpu.memory_space<vmem>>, vector<1x8x8x8xf32>,
    return
  }
  func.func @transform_0(%arg0: i32) -> (i32, i32, i32, i32) {
    %c0_i32 = arith.constant 0 : i32
    %c0_i32_0 = arith.constant 0 : i32
    %c0_i32_1 = arith.constant 0 : i32
    %c0_i32_2 = arith.constant 0 : i32
    return %arg0, %c0_i32, %c0_i32_0, %c0_i32_1 : i32, i32, i32, i32
  }
  func.func @transform_1(%arg0: i32) -> (i32, i32, i32, i32, i32) {
    %c0_i32 = arith.constant 0 : i32
    %c0_i32_0 = arith.constant 0 : i32
    %c0_i32_1 = arith.constant 0 : i32
    %c0_i32_2 = arith.constant 0 : i32
    %c0_i32_3 = arith.constant 0 : i32
    return %arg0, %c0_i32, %c0_i32_0, %c0_i32_1, %c0_i32_2 : i32, i32, i32, i32, i32
  }
  func.func @transform_2(%arg0: i32) -> (i32, i32) {
    %c0_i32 = arith.constant 0 : i32
    %c0_i32_0 = arith.constant 0 : i32
    %c0_i32_1 = arith.constant 0 : i32
    return %c0_i32, %c0_i32_0 : i32, i32
  }
  func.func @transform_3(%arg0: i32) -> (i32, i32) {
    %c0_i32 = arith.constant 0 : i32
    %c0_i32_0 = arith.constant 0 : i32
    %c0_i32_1 = arith.constant 0 : i32
    return %c0_i32, %c0_i32_0 : i32, i32
  }
  func.func @transform_4(%arg0: i32) -> (i32, i32, i32) {
    %c0_i32 = arith.constant 0 : i32
    %c0_i32_0 = arith.constant 0 : i32
    %c0_i32_1 = arith.constant 0 : i32
    %c0_i32_2 = arith.constant 0 : i32
    return %c0_i32, %c0_i32_0, %c0_i32_1 : i32, i32, i32
  }
  func.func @transform_5(%arg0: i32) -> (i32, i32) {
    %c0_i32 = arith.constant 0 : i32
    %c0_i32_0 = arith.constant 0 : i32
    %c0_i32_1 = arith.constant 0 : i32
    return %c0_i32, %c0_i32_0 : i32, i32
  }
  func.func @transform_6(%arg0: i32) -> (i32, i32, i32) {
    %c0_i32 = arith.constant 0 : i32
    %c0_i32_0 = arith.constant 0 : i32
    %c0_i32_1 = arith.constant 0 : i32
    %c0_i32_2 = arith.constant 0 : i32
    return %c0_i32, %c0_i32_0, %c0_i32_1 : i32, i32, i32
  }
  func.func @transform_7(%arg0: i32) -> (i32, i32) {
    %c0_i32 = arith.constant 0 : i32
    %c0_i32_0 = arith.constant 0 : i32
    %c0_i32_1 = arith.constant 0 : i32
    return %c0_i32, %c0_i32_0 : i32, i32
  }
  func.func @transform_8(%arg0: i32) -> (i32, i32, i32, i32) {
    %c0_i32 = arith.constant 0 : i32
    %c0_i32_0 = arith.constant 0 : i32
    %c0_i32_1 = arith.constant 0 : i32
    %c0_i32_2 = arith.constant 0 : i32
    return %arg0, %c0_i32, %c0_i32_0, %c0_i32_1 : i32, i32, i32, i32
  }
}

</mosaic_0001>

<llo_original>
// kernel: wide_dropout_block_forward.2
$region0: #{wide_dropout_block_forward.2}
  #allocation0 [shape = 'u32[]', space=smem, size = 0x4, offset = 0x4, fixed_abs, tag = 'smem constant byte address 0x4 - core index']
  #allocation1 [shape = 'u32[144,128]{1,0:T(1,128)}', space=vmem, size = 0x12000, scoped, tag = 'internal scratch']
  #allocation2 [shape = 'f32[1,4,9,9,4]{4,3,2,1,0:T(8,128)}', space=vmem, size = 0x48000, scoped, tag = 'scratch operand']
  %s0 = inlined_call_operand.vmem [shape: f32[2,4,8,8,4], index: 0, kind: input, shape index: {}]
  %s1 = inlined_call_operand.vmem [shape: f32[1,4], index: 1, kind: input, shape index: {}]
  %s2 = inlined_call_operand.vmem [shape: f32[1,4], index: 2, kind: input, shape index: {}]
  %s3 = inlined_call_operand.vmem [shape: bf16[9,4,8], index: 3, kind: input, shape index: {}]
  %s4 = inlined_call_operand.vmem [shape: f32[1,8], index: 4, kind: input, shape index: {}]
  %s5 = inlined_call_operand.vmem [shape: f32[2,8,8,8], index: 5, kind: output, shape index: {0}]
  %s6 = inlined_call_operand.vmem [shape: f32[2,2,8], index: 6, kind: output, shape index: {1}]
  %7 = xla_tuple %s5, %s6
  %s8 = sld [smem:[#allocation0]]
  $region61: #{wide_dropout_block_forward.2} parent=0
    _
  %s10 = ssub.s32 1, %s8
  %s11 = scalar_select 0, %s10, %s8
  loop: start=0, step=1, limit=4
  $region2: #{wide_dropout_block_forward.2} parent=0 // loop_pre_header
    _
  $region3: #{wide_dropout_block_forward.2} parent=0 // loop_header
    %s13 = sphi 0, %s17
    %p14 = scmp.ge.s32.totalorder %s13, 4
    %s23 = sphi 0, %s25
    %s26 = sphi 0, %s23
    %s27 = sphi 0, %s26
    %s43 = sphi 0, %s27
    %s47 = sphi 0, %s47
    %s49 = sphi 0, %s47
    %s50 = sphi 0, %s49
    %s64 = sphi 0, %s50
    %s68 = sphi 0, %s68
    %s70 = sphi 0, %s68
    %s71 = sphi 0, %s70
    %s85 = sphi 0, %s71
    %s89 = sphi 0, %s89
    %s91 = sphi 0, %s89
    %s92 = sphi 0, %s91
    %s106 = sphi 0, %s92
    %s110 = sphi 0, %s110
    %s112 = sphi 0, %s110
    %s113 = sphi 0, %s112
    %s127 = sphi 0, %s113
    %s133 = sphi 0, %s135
    %s136 = sphi 0, %s133
    %s137 = sphi 0, %s136
    %s153 = sphi 0, %s137
    %s159 = sphi 0, %s161
    %s162 = sphi 0, %s159
    %s163 = sphi 0, %s162
    %s179 = sphi 0, %s163
  $region4: #{wide_dropout_block_forward.2} parent=0 // loop_header_branch
    %16 = sbr.rel (%p14) target = $region8
  $region5: #{wide_dropout_block_forward.2} parent=0 // loop_body
    %s18 = ssub.s32 %s13, 1
    %s19 = ssub.s32 %s13, 2
    %s20 = sadd.s32 %s13, 1
    %s21 = ssub.s32 %s13, %s20
    %p22 = scmp.eq.s32.totalorder %s21, 0
    %s24 = sadd.s32 %s23, 1
    %s25 = scalar_select %p22, %s23, %s24
    %p28 = pneg %p22
    %p29 = scmp.eq.s32.totalorder %s13, 1
    %p30 = por %p28, %p29
    %p31 = scmp.ne.s32.totalorder %s23, %s26
    %p32 = scmp.eq.s32.totalorder %s13, 0
    %p33 = por %p31, %p32
    %p34 = scmp.ne.s32.totalorder %s23, %s26
    %p35 = scmp.eq.s32.totalorder %s18, 1
    %p36 = por %p34, %p35
    %p37 = scmp.ne.s32.totalorder %s26, %s27
    %p38 = scmp.eq.s32.totalorder %s18, 0
    %p39 = por %p37, %p38
    %p40 = scmp.ne.s32.totalorder %s26, %s27
    %p41 = scmp.eq.s32.totalorder %s19, 1
    %p42 = por %p40, %p41
    %p44 = scmp.ne.s32.totalorder %s27, %s43
    %p45 = scmp.eq.s32.totalorder %s19, 0
    %p46 = por %p44, %p45
    %s48 = sadd.s32 %s47, 1
    %p51 = scmp.eq.s32.totalorder %s13, 1
    %p52 = scmp.ne.s32.totalorder %s47, %s49
    %p53 = scmp.eq.s32.totalorder %s13, 0
    %p54 = por %p52, %p53
    %p55 = scmp.ne.s32.totalorder %s47, %s49
    %p56 = scmp.eq.s32.totalorder %s18, 1
    %p57 = por %p55, %p56
    %p58 = scmp.ne.s32.totalorder %s49, %s50
    %p59 = scmp.eq.s32.totalorder %s18, 0
    %p60 = por %p58, %p59
    %p61 = scmp.ne.s32.totalorder %s49, %s50
    %p62 = scmp.eq.s32.totalorder %s19, 1
    %p63 = por %p61, %p62
    %p65 = scmp.ne.s32.totalorder %s50, %s64
    %p66 = scmp.eq.s32.totalorder %s19, 0
    %p67 = por %p65, %p66
    %s69 = sadd.s32 %s68, 1
    %p72 = scmp.eq.s32.totalorder %s13, 1
    %p73 = scmp.ne.s32.totalorder %s68, %s70
    %p74 = scmp.eq.s32.totalorder %s13, 0
    %p75 = por %p73, %p74
    %p76 = scmp.ne.s32.totalorder %s68, %s70
    %p77 = scmp.eq.s32.totalorder %s18, 1
    %p78 = por %p76, %p77
    %p79 = scmp.ne.s32.totalorder %s70, %s71
    %p80 = scmp.eq.s32.totalorder %s18, 0
    %p81 = por %p79, %p80
    %p82 = scmp.ne.s32.totalorder %s70, %s71
    %p83 = scmp.eq.s32.totalorder %s19, 1
    %p84 = por %p82, %p83
    %p86 = scmp.ne.s32.totalorder %s71, %s85
    %p87 = scmp.eq.s32.totalorder %s19, 0
    %p88 = por %p86, %p87
    %s90 = sadd.s32 %s89, 1
    %p93 = scmp.eq.s32.totalorder %s13, 1
    %p94 = scmp.ne.s32.totalorder %s89, %s91
    %p95 = scmp.eq.s32.totalorder %s13, 0
    %p96 = por %p94, %p95
    %p97 = scmp.ne.s32.totalorder %s89, %s91
    %p98 = scmp.eq.s32.totalorder %s18, 1
    %p99 = por %p97, %p98
    %p100 = scmp.ne.s32.totalorder %s91, %s92
    %p101 = scmp.eq.s32.totalorder %s18, 0
    %p102 = por %p100, %p101
    %p103 = scmp.ne.s32.totalorder %s91, %s92
    %p104 = scmp.eq.s32.totalorder %s19, 1
    %p105 = por %p103, %p104
    %p107 = scmp.ne.s32.totalorder %s92, %s106
    %p108 = scmp.eq.s32.totalorder %s19, 0
    %p109 = por %p107, %p108
    %s111 = sadd.s32 %s110, 1
    %p114 = scmp.eq.s32.totalorder %s13, 1
    %p115 = scmp.ne.s32.totalorder %s110, %s112
    %p116 = scmp.eq.s32.totalorder %s13, 0
    %p117 = por %p115, %p116
    %p118 = scmp.ne.s32.totalorder %s110, %s112
    %p119 = scmp.eq.s32.totalorder %s18, 1
    %p120 = por %p118, %p119
    %p121 = scmp.ne.s32.totalorder %s112, %s113
    %p122 = scmp.eq.s32.totalorder %s18, 0
    %p123 = por %p121, %p122
    %p124 = scmp.ne.s32.totalorder %s112, %s113
    %p125 = scmp.eq.s32.totalorder %s19, 1
    %p126 = por %p124, %p125
    %p128 = scmp.ne.s32.totalorder %s113, %s127
    %p129 = scmp.eq.s32.totalorder %s19, 0
    %p130 = por %p128, %p129
    %s131 = ssub.s32 %s13, %s20
    %p132 = scmp.eq.s32.totalorder %s131, 0
    %s134 = sadd.s32 %s133, 1
    %s135 = scalar_select %p132, %s133, %s134
    %p138 = pneg %p132
    %p139 = scmp.eq.s32.totalorder %s13, 1
    %p140 = por %p138, %p139
    %p141 = scmp.ne.s32.totalorder %s133, %s136
    %p142 = scmp.eq.s32.totalorder %s13, 0
    %p143 = por %p141, %p142
    %p144 = scmp.ne.s32.totalorder %s133, %s136
    %p145 = scmp.eq.s32.totalorder %s18, 1
    %p146 = por %p144, %p145
    %p147 = scmp.ne.s32.totalorder %s136, %s137
    %p148 = scmp.eq.s32.totalorder %s18, 0
    %p149 = por %p147, %p148
    %p150 = scmp.ne.s32.totalorder %s136, %s137
    %p151 = scmp.eq.s32.totalorder %s19, 1
    %p152 = por %p150, %p151
    %p154 = scmp.ne.s32.totalorder %s137, %s153
    %p155 = scmp.eq.s32.totalorder %s19, 0
    %p156 = por %p154, %p155
    %s157 = ssub.s32 %s13, %s20
    %p158 = scmp.eq.s32.totalorder %s157, 0
    %s160 = sadd.s32 %s159, 1
    %s161 = scalar_select %p158, %s159, %s160
    %p164 = pneg %p158
    %p165 = scmp.eq.s32.totalorder %s13, 1
    %p166 = por %p164, %p165
    %p167 = scmp.ne.s32.totalorder %s159, %s162
    %p168 = scmp.eq.s32.totalorder %s13, 0
    %p169 = por %p167, %p168
    %p170 = scmp.ne.s32.totalorder %s159, %s162
    %p171 = scmp.eq.s32.totalorder %s18, 1
    %p172 = por %p170, %p171
    %p173 = scmp.ne.s32.totalorder %s162, %s163
    %p174 = scmp.eq.s32.totalorder %s18, 0
    %p175 = por %p173, %p174
    %p176 = scmp.ne.s32.totalorder %s162, %s163
    %p177 = scmp.eq.s32.totalorder %s19, 1
    %p178 = por %p176, %p177
    %p180 = scmp.ne.s32.totalorder %s163, %s179
    %p181 = scmp.eq.s32.totalorder %s19, 0
    %p182 = por %p180, %p181
    %p183 = scmp.le.s32.totalorder 1, %s13
    %p184 = scmp.lt.s32.totalorder %s13, 3
    %p185 = pnand %p183, %p184
    %p186 = pneg %p185
    // Predicated region
    $region9: #{wide_dropout_block_forward.2} parent=5 // pred_check
      _
    $region10: #{wide_dropout_block_forward.2} parent=5 // pred_check_branch
      %188 = sbr.rel (%p185) target = $region12
    $region11: #{wide_dropout_block_forward.2} parent=5 // pred_region
      %s189 = ssub.s32 %s13, 1
      // Predicated region
      $region13: #{wide_dropout_block_forward.2} parent=11 // pred_check
        %p190 = pneg %p60
      $region14: #{wide_dropout_block_forward.2} parent=11 // pred_check_branch
        %192 = sbr.rel (%p190) target = $region16
      $region15: #{wide_dropout_block_forward.2} parent=11 // pred_region
        _
      $region16: #{wide_dropout_block_forward.2} parent=11 // pred_fallthru
        _
      // Predicated region
      $region17: #{wide_dropout_block_forward.2} parent=11 // pred_check
        %p193 = pneg %p81
      $region18: #{wide_dropout_block_forward.2} parent=11 // pred_check_branch
        %195 = sbr.rel (%p193) target = $region20
      $region19: #{wide_dropout_block_forward.2} parent=11 // pred_region
        _
      $region20: #{wide_dropout_block_forward.2} parent=11 // pred_fallthru
        _
      // Predicated region
      $region21: #{wide_dropout_block_forward.2} parent=11 // pred_check
        %p196 = pneg %p102
      $region22: #{wide_dropout_block_forward.2} parent=11 // pred_check_branch
        %198 = sbr.rel (%p196) target = $region24
      $region23: #{wide_dropout_block_forward.2} parent=11 // pred_region
        _
      $region24: #{wide_dropout_block_forward.2} parent=11 // pred_fallthru
        _
      // Predicated region
      $region25: #{wide_dropout_block_forward.2} parent=11 // pred_check
        %p199 = pneg %p123
      $region26: #{wide_dropout_block_forward.2} parent=11 // pred_check_branch
        %201 = sbr.rel (%p199) target = $region28
      $region27: #{wide_dropout_block_forward.2} parent=11 // pred_region
        _
      $region28: #{wide_dropout_block_forward.2} parent=11 // pred_fallthru
        _
    $region12: #{wide_dropout_block_forward.2} parent=5 // pred_fallthru
      _
    %p202 = scmp.lt.s32.totalorder %s13, 2
    // Predicated region
    $region29: #{wide_dropout_block_forward.2} parent=5 // pred_check
      %p203 = pneg %p202
    $region30: #{wide_dropout_block_forward.2} parent=5 // pred_check_branch
      %205 = sbr.rel (%p203) target = $region32
    $region31: #{wide_dropout_block_forward.2} parent=5 // pred_region
      // Predicated region
      $region33: #{wide_dropout_block_forward.2} parent=31 // pred_check
        %p206 = pneg %p33
      $region34: #{wide_dropout_block_forward.2} parent=31 // pred_check_branch
        %208 = sbr.rel (%p206) target = $region36
      $region35: #{wide_dropout_block_forward.2} parent=31 // pred_region
        %p209 = scmp.lt.s32.totalorder %s13, 1
        %s210 = scalar_select %p209, %s13, 1
        %s211 = smul.addr %s210, 32
        %s212 = smul.addr %s211, 8
        %s213 = scalar_lea.vmem %s0, %s212
      $region36: #{wide_dropout_block_forward.2} parent=31 // pred_fallthru
        _
    $region32: #{wide_dropout_block_forward.2} parent=5 // pred_fallthru
      _
    %p214 = scmp.le.s32.totalorder 1, %s13
    %p215 = scmp.lt.s32.totalorder %s13, 3
    %p216 = pnand %p214, %p215
    %p217 = pneg %p216
    // Predicated region
    $region37: #{wide_dropout_block_forward.2} parent=5 // pred_check
      _
    $region38: #{wide_dropout_block_forward.2} parent=5 // pred_check_branch
      %219 = sbr.rel (%p216) target = $region40
    $region39: #{wide_dropout_block_forward.2} parent=5 // pred_region
      %s220 = ssub.s32 %s13, 1
      %p221 = scmp.lt.s32.totalorder %s18, 1
      %s222 = scalar_select %p221, %s18, 1
      %s223 = smul.addr %s222, 32
      %s224 = smul.addr %s223, 8
      %s225 = scalar_lea.vmem %s0, %s224
      %p226 = pneg %p39
      %p227 = pneg %p36
      %p228 = pneg %p60
      %p229 = pneg %p57
      %p230 = pneg %p81
      %p231 = pneg %p78
      %p232 = pneg %p102
      %p233 = pneg %p99
      %p234 = pneg %p123
      %p235 = pneg %p120
      %p236 = pneg %p149
      %p237 = pneg %p146
      %p238 = scmp.lt.s32.totalorder %s18, 1
      %s239 = scalar_select %p238, %s18, 1
      %s240 = smul.addr %s239, 8
      %s241 = smul.addr %s240, 8
      %s242 = scalar_lea.vmem %s5, %s241
      %p243 = pneg %p175
      %p244 = pneg %p172
      %p245 = scmp.lt.s32.totalorder %s18, 1
      %s246 = scalar_select %p245, %s18, 1
      %s247 = smul.addr %s246, 2
      %s248 = scalar_lea.vmem %s6, %s247
      %p249 = scmp.lt.s32.totalorder %s18, 1
      %s250 = scalar_select %p249, %s18, 1
      %s251 = smul.addr %s250, 32
      %s252 = smul.addr %s251, 8
      %s253 = scalar_lea.vmem %s0, %s252
      %p254 = scmp.lt.s32.totalorder %s18, 1
      %s255 = scalar_select %p254, %s18, 1
      %s256 = smul.addr %s255, 8
      %s257 = smul.addr %s256, 8
      %s258 = scalar_lea.vmem %s5, %s257
      %p259 = scmp.lt.s32.totalorder %s18, 1
      %s260 = scalar_select %p259, %s18, 1
      %s261 = smul.addr %s260, 2
      %s262 = scalar_lea.vmem %s6, %s261
      %v264 = vld [vmem:[%s253] sm:$0xff]
      %v265 = vld [vmem:[%s253 + $0x8] sm:$0xff]
      %v266 = vld [vmem:[%s253 + $0x10] sm:$0xff]
      %v267 = vld [vmem:[%s253 + $0x18] sm:$0xff]
      %v268 = vld [vmem:[%s253 + $0x20] sm:$0xff]
      %v269 = vld [vmem:[%s253 + $0x28] sm:$0xff]
      %v270 = vld [vmem:[%s253 + $0x30] sm:$0xff]
      %v271 = vld [vmem:[%s253 + $0x38] sm:$0xff]
      %v272 = vld [vmem:[%s253 + $0x40] sm:$0xff]
      %v273 = vld [vmem:[%s253 + $0x48] sm:$0xff]
      %v274 = vld [vmem:[%s253 + $0x50] sm:$0xff]
      %v275 = vld [vmem:[%s253 + $0x58] sm:$0xff]
      %v276 = vld [vmem:[%s253 + $0x60] sm:$0xff]
      %v277 = vld [vmem:[%s253 + $0x68] sm:$0xff]
      %v278 = vld [vmem:[%s253 + $0x70] sm:$0xff]
      %v279 = vld [vmem:[%s253 + $0x78] sm:$0xff]
      %v280 = vld [vmem:[%s253 + $0x80] sm:$0xff]
      %v281 = vld [vmem:[%s253 + $0x88] sm:$0xff]
      %v282 = vld [vmem:[%s253 + $0x90] sm:$0xff]
      %v283 = vld [vmem:[%s253 + $0x98] sm:$0xff]
      %v284 = vld [vmem:[%s253 + $0xa0] sm:$0xff]
      %v285 = vld [vmem:[%s253 + $0xa8] sm:$0xff]
      %v286 = vld [vmem:[%s253 + $0xb0] sm:$0xff]
      %v287 = vld [vmem:[%s253 + $0xb8] sm:$0xff]
      %v288 = vld [vmem:[%s253 + $0xc0] sm:$0xff]
      %v289 = vld [vmem:[%s253 + $0xc8] sm:$0xff]
      %v290 = vld [vmem:[%s253 + $0xd0] sm:$0xff]
      %v291 = vld [vmem:[%s253 + $0xd8] sm:$0xff]
      %v292 = vld [vmem:[%s253 + $0xe0] sm:$0xff]
      %v293 = vld [vmem:[%s253 + $0xe8] sm:$0xff]
      %v294 = vld [vmem:[%s253 + $0xf0] sm:$0xff]
      %v295 = vld [vmem:[%s253 + $0xf8] sm:$0xff]
      %v296 = vld [vmem:[%s1] sm:$0x1]
      %v298 = vlaneseq
      %v299 = vshrl.u32 %v298, 7
      %v300 = vsub.s32 0, %v299
      %v301 = vrot.slane %v296, %v300
      %v303 = vmul.f32 %v264, %v301
      %v304 = vmul.f32 %v265, %v301
      %v305 = vmul.f32 %v266, %v301
      %v306 = vmul.f32 %v267, %v301
      %v307 = vmul.f32 %v268, %v301
      %v308 = vmul.f32 %v269, %v301
      %v309 = vmul.f32 %v270, %v301
      %v310 = vmul.f32 %v271, %v301
      %v311 = vmul.f32 %v272, %v301
      %v312 = vmul.f32 %v273, %v301
      %v313 = vmul.f32 %v274, %v301
      %v314 = vmul.f32 %v275, %v301
      %v315 = vmul.f32 %v276, %v301
      %v316 = vmul.f32 %v277, %v301
      %v317 = vmul.f32 %v278, %v301
      %v318 = vmul.f32 %v279, %v301
      %v319 = vmul.f32 %v280, %v301
      %v320 = vmul.f32 %v281, %v301
      %v321 = vmul.f32 %v282, %v301
      %v322 = vmul.f32 %v283, %v301
      %v323 = vmul.f32 %v284, %v301
      %v324 = vmul.f32 %v285, %v301
      %v325 = vmul.f32 %v286, %v301
      %v326 = vmul.f32 %v287, %v301
      %v327 = vmul.f32 %v288, %v301
      %v328 = vmul.f32 %v289, %v301
      %v329 = vmul.f32 %v290, %v301
      %v330 = vmul.f32 %v291, %v301
      %v331 = vmul.f32 %v292, %v301
      %v332 = vmul.f32 %v293, %v301
      %v333 = vmul.f32 %v294, %v301
      %v334 = vmul.f32 %v295, %v301
      %v335 = vld [vmem:[%s2] sm:$0x1]
      %v337 = vlaneseq
      %v338 = vshrl.u32 %v337, 7
      %v339 = vsub.s32 0, %v338
      %v340 = vrot.slane %v335, %v339
      %v342 = vadd.f32 %v303, %v340
      %v343 = vadd.f32 %v304, %v340
      %v344 = vadd.f32 %v305, %v340
      %v345 = vadd.f32 %v306, %v340
      %v346 = vadd.f32 %v307, %v340
      %v347 = vadd.f32 %v308, %v340
      %v348 = vadd.f32 %v309, %v340
      %v349 = vadd.f32 %v310, %v340
      %v350 = vadd.f32 %v311, %v340
      %v351 = vadd.f32 %v312, %v340
      %v352 = vadd.f32 %v313, %v340
      %v353 = vadd.f32 %v314, %v340
      %v354 = vadd.f32 %v315, %v340
      %v355 = vadd.f32 %v316, %v340
      %v356 = vadd.f32 %v317, %v340
      %v357 = vadd.f32 %v318, %v340
      %v358 = vadd.f32 %v319, %v340
      %v359 = vadd.f32 %v320, %v340
      %v360 = vadd.f32 %v321, %v340
      %v361 = vadd.f32 %v322, %v340
      %v362 = vadd.f32 %v323, %v340
      %v363 = vadd.f32 %v324, %v340
      %v364 = vadd.f32 %v325, %v340
      %v365 = vadd.f32 %v326, %v340
      %v366 = vadd.f32 %v327, %v340
      %v367 = vadd.f32 %v328, %v340
      %v368 = vadd.f32 %v329, %v340
      %v369 = vadd.f32 %v330, %v340
      %v370 = vadd.f32 %v331, %v340
      %v371 = vadd.f32 %v332, %v340
      %v372 = vadd.f32 %v333, %v340
      %v373 = vadd.f32 %v334, %v340
      %v374 = vmax.f32 %v342, 0.0
      %v375 = vmax.f32 %v343, 0.0
      %v376 = vmax.f32 %v344, 0.0
      %v377 = vmax.f32 %v345, 0.0
      %v378 = vmax.f32 %v346, 0.0
      %v379 = vmax.f32 %v347, 0.0
      %v380 = vmax.f32 %v348, 0.0
      %v381 = vmax.f32 %v349, 0.0
      %v382 = vmax.f32 %v350, 0.0
      %v383 = vmax.f32 %v351, 0.0
      %v384 = vmax.f32 %v352, 0.0
      %v385 = vmax.f32 %v353, 0.0
      %v386 = vmax.f32 %v354, 0.0
      %v387 = vmax.f32 %v355, 0.0
      %v388 = vmax.f32 %v356, 0.0
      %v389 = vmax.f32 %v357, 0.0
      %v390 = vmax.f32 %v358, 0.0
      %v391 = vmax.f32 %v359, 0.0
      %v392 = vmax.f32 %v360, 0.0
      %v393 = vmax.f32 %v361, 0.0
      %v394 = vmax.f32 %v362, 0.0
      %v395 = vmax.f32 %v363, 0.0
      %v396 = vmax.f32 %v364, 0.0
      %v397 = vmax.f32 %v365, 0.0
      %v398 = vmax.f32 %v366, 0.0
      %v399 = vmax.f32 %v367, 0.0
      %v400 = vmax.f32 %v368, 0.0
      %v401 = vmax.f32 %v369, 0.0
      %v402 = vmax.f32 %v370, 0.0
      %v403 = vmax.f32 %v371, 0.0
      %v404 = vmax.f32 %v372, 0.0
      %v405 = vmax.f32 %v373, 0.0
      %vm406 = vcmask 31744
      %407 = vst.msk [vmem:[#allocation2] sm:$0xff] %vm406, 0.0
      %vm408 = vcmask 24576
      %409 = vst.msk [vmem:[#allocation2 + $0x8] sm:$0x1] %vm408, 0.0
      %410 = vst.msk [vmem:[#allocation2] sm:$0x1] %vm408, 0.0
      %411 = vst.msk [vmem:[#allocation2 + $0x10] sm:$0x1] %vm408, 0.0
      %412 = vst.msk [vmem:[#allocation2 + $0x20] sm:$0x1] %vm408, 0.0
      %413 = vst.msk [vmem:[#allocation2 + $0x30] sm:$0x1] %vm408, 0.0
      %414 = vst.msk [vmem:[#allocation2 + $0x40] sm:$0x1] %vm408, 0.0
      %415 = vst.msk [vmem:[#allocation2 + $0x50] sm:$0x1] %vm408, 0.0
      %416 = vst.msk [vmem:[#allocation2 + $0x60] sm:$0x1] %vm408, 0.0
      %417 = vst.msk [vmem:[#allocation2 + $0x70] sm:$0x1] %vm408, 0.0
      %418 = vst.msk [vmem:[#allocation2 + $0x80] sm:$0x1] %vm408, 0.0
      %s419 = scalar_lea.vmem [#allocation2], 144
      %420 = vst.msk [vmem:[%s419] sm:$0xff] %vm406, 0.0
      %421 = vst.msk [vmem:[%s419 + $0x8] sm:$0x1] %vm408, 0.0
      %422 = vst.msk [vmem:[%s419 + $0x8] sm:$0x1] %vm408, 0.0
      %423 = vst.msk [vmem:[%s419 + $0x18] sm:$0x1] %vm408, 0.0
      %424 = vst.msk [vmem:[%s419 + $0x28] sm:$0x1] %vm408, 0.0
      %425 = vst.msk [vmem:[%s419 + $0x38] sm:$0x1] %vm408, 0.0
      %426 = vst.msk [vmem:[%s419 + $0x48] sm:$0x1] %vm408, 0.0
      %427 = vst.msk [vmem:[%s419 + $0x58] sm:$0x1] %vm408, 0.0
      %428 = vst.msk [vmem:[%s419 + $0x68] sm:$0x1] %vm408, 0.0
      %429 = vst.msk [vmem:[%s419 + $0x78] sm:$0x1] %vm408, 0.0
      %430 = vst.msk [vmem:[%s419 + $0x88] sm:$0x1] %vm408, 0.0
      %s431 = scalar_lea.vmem [#allocation2], 416
      %432 = vst.msk [vmem:[%s431] sm:$0xff] %vm406, 0.0
      %433 = vst.msk [vmem:[%s431 + $0x8] sm:$0x1] %vm408, 0.0
      %s434 = scalar_lea.vmem [#allocation2], 288
      %435 = vst.msk [vmem:[%s434] sm:$0x1] %vm408, 0.0
      %436 = vst.msk [vmem:[%s434 + $0x10] sm:$0x1] %vm408, 0.0
      %437 = vst.msk [vmem:[%s434 + $0x20] sm:$0x1] %vm408, 0.0
      %438 = vst.msk [vmem:[%s434 + $0x30] sm:$0x1] %vm408, 0.0
      %439 = vst.msk [vmem:[%s434 + $0x40] sm:$0x1] %vm408, 0.0
      %440 = vst.msk [vmem:[%s434 + $0x50] sm:$0x1] %vm408, 0.0
      %441 = vst.msk [vmem:[%s434 + $0x60] sm:$0x1] %vm408, 0.0
      %442 = vst.msk [vmem:[%s434 + $0x70] sm:$0x1] %vm408, 0.0
      %443 = vst.msk [vmem:[%s434 + $0x80] sm:$0x1] %vm408, 0.0
      %s444 = scalar_lea.vmem [#allocation2], 560
      %445 = vst.msk [vmem:[%s444] sm:$0xff] %vm406, 0.0
      %446 = vst.msk [vmem:[%s444 + $0x8] sm:$0x1] %vm408, 0.0
      %s447 = scalar_lea.vmem [#allocation2], 432
      %448 = vst.msk [vmem:[%s447 + $0x8] sm:$0x1] %vm408, 0.0
      %449 = vst.msk [vmem:[%s447 + $0x18] sm:$0x1] %vm408, 0.0
      %450 = vst.msk [vmem:[%s447 + $0x28] sm:$0x1] %vm408, 0.0
      %451 = vst.msk [vmem:[%s447 + $0x38] sm:$0x1] %vm408, 0.0
      %452 = vst.msk [vmem:[%s447 + $0x48] sm:$0x1] %vm408, 0.0
      %453 = vst.msk [vmem:[%s447 + $0x58] sm:$0x1] %vm408, 0.0
      %454 = vst.msk [vmem:[%s447 + $0x68] sm:$0x1] %vm408, 0.0
      %455 = vst.msk [vmem:[%s447 + $0x78] sm:$0x1] %vm408, 0.0
      %456 = vst.msk [vmem:[%s447 + $0x88] sm:$0x1] %vm408, 0.0
      %s457 = scalar_lea.vmem [#allocation2], 16
      %458 = vst.msk [vmem:[%s457 + $0x1] sm:$0xff] %vm406, %v398
      %459 = vst.msk [vmem:[%s457 + $0x11] sm:$0xff] %vm406, %v399
      %460 = vst.msk [vmem:[%s457 + $0x21] sm:$0xff] %vm406, %v400
      %461 = vst.msk [vmem:[%s457 + $0x31] sm:$0xff] %vm406, %v401
      %462 = vst.msk [vmem:[%s457 + $0x41] sm:$0xff] %vm406, %v402
      %463 = vst.msk [vmem:[%s457 + $0x51] sm:$0xff] %vm406, %v403
      %464 = vst.msk [vmem:[%s457 + $0x61] sm:$0xff] %vm406, %v404
      %465 = vst.msk [vmem:[%s457 + $0x71] sm:$0xff] %vm406, %v405
      %s466 = scalar_lea.vmem [#allocation2], 160
      %467 = vst.msk [vmem:[%s466] sm:$0xff] %vm406, %v390
      %468 = vst.msk [vmem:[%s466 + $0x10] sm:$0xff] %vm406, %v391
      %469 = vst.msk [vmem:[%s466 + $0x20] sm:$0xff] %vm406, %v392
      %470 = vst.msk [vmem:[%s466 + $0x30] sm:$0xff] %vm406, %v393
      %471 = vst.msk [vmem:[%s466 + $0x40] sm:$0xff] %vm406, %v394
      %472 = vst.msk [vmem:[%s466 + $0x50] sm:$0xff] %vm406, %v395
      %473 = vst.msk [vmem:[%s466 + $0x60] sm:$0xff] %vm406, %v396
      %474 = vst.msk [vmem:[%s466 + $0x70] sm:$0xff] %vm406, %v397
      %475 = vst.msk [vmem:[%s434 + $0x1] sm:$0xff] %vm406, %v382
      %476 = vst.msk [vmem:[%s434 + $0x11] sm:$0xff] %vm406, %v383
      %477 = vst.msk [vmem:[%s434 + $0x21] sm:$0xff] %vm406, %v384
      %478 = vst.msk [vmem:[%s434 + $0x31] sm:$0xff] %vm406, %v385
      %479 = vst.msk [vmem:[%s434 + $0x41] sm:$0xff] %vm406, %v386
      %480 = vst.msk [vmem:[%s434 + $0x51] sm:$0xff] %vm406, %v387
      %481 = vst.msk [vmem:[%s434 + $0x61] sm:$0xff] %vm406, %v388
      %482 = vst.msk [vmem:[%s434 + $0x71] sm:$0xff] %vm406, %v389
      %483 = vst.msk [vmem:[%s447] sm:$0xff] %vm406, %v374
      %484 = vst.msk [vmem:[%s447 + $0x10] sm:$0xff] %vm406, %v375
      %485 = vst.msk [vmem:[%s447 + $0x20] sm:$0xff] %vm406, %v376
      %486 = vst.msk [vmem:[%s447 + $0x30] sm:$0xff] %vm406, %v377
      %487 = vst.msk [vmem:[%s447 + $0x40] sm:$0xff] %vm406, %v378
      %488 = vst.msk [vmem:[%s447 + $0x50] sm:$0xff] %vm406, %v379
      %489 = vst.msk [vmem:[%s447 + $0x60] sm:$0xff] %vm406, %v380
      %490 = vst.msk [vmem:[%s447 + $0x70] sm:$0xff] %vm406, %v381
      %v491 = vld [vmem:[#allocation2] sm:$0xff]
      %v492 = vld [vmem:[#allocation2 + $0x10] sm:$0xff]
      %v493 = vld [vmem:[#allocation2 + $0x20] sm:$0xff]
      %v494 = vld [vmem:[#allocation2 + $0x30] sm:$0xff]
      %v495 = vld [vmem:[#allocation2 + $0x40] sm:$0xff]
      %v496 = vld [vmem:[#allocation2 + $0x50] sm:$0xff]
      %v497 = vld [vmem:[#allocation2 + $0x60] sm:$0xff]
      %v498 = vld [vmem:[#allocation2 + $0x70] sm:$0xff]
      %v499 = vpack.c.bf16 %v492, %v491
      %v500 = vpack.c.bf16 %v494, %v493
      %v501 = vpack.c.bf16 %v496, %v495
      %v502 = vpack.c.bf16 %v498, %v497
      %v503 = vld [vmem:[%s3] sm:$0x3]
      %v504 = vld [vmem:[%s419] sm:$0xff]
      %v505 = vld [vmem:[%s419 + $0x10] sm:$0xff]
      %v506 = vld [vmem:[%s419 + $0x20] sm:$0xff]
      %v507 = vld [vmem:[%s419 + $0x30] sm:$0xff]
      %v508 = vld [vmem:[%s419 + $0x40] sm:$0xff]
      %v509 = vld [vmem:[%s419 + $0x50] sm:$0xff]
      %v510 = vld [vmem:[%s419 + $0x60] sm:$0xff]
      %v511 = vld [vmem:[%s419 + $0x70] sm:$0xff]
      %v512 = vpack.c.bf16 %v505, %v504
      %v513 = vpack.c.bf16 %v507, %v506
      %v514 = vpack.c.bf16 %v509, %v508
      %v515 = vpack.c.bf16 %v511, %v510
      %s516 = scalar_lea.vmem %s3, 2
      %v517 = vld [vmem:[%s516] sm:$0x3]
      %v519 = vsel %vm406, %v512, 0
      %v522 = vsel %vm406, %v513, 0
      %v525 = vsel %vm406, %v514, 0
      %v528 = vsel %vm406, %v515, 0
      %vm530 = vcmask 1041408
      %v532 = vsel %vm530, %v517, 0
      %534 = vmatprep.subr.bf16.mxu0 0
      %535 = vmatpush1.bf16.msra.mxu0 %v532
      %536 = vmatprep.subr.bf16.mxu0 0
      %537 = vmatpush1.bf16.msra.mxu0 0
      %538 = vmatprep.subr.bf16.mxu0 0
      %539 = vmatpush1.bf16.msra.mxu0 0
      %540 = vmatprep.subr.bf16.mxu0 0
      %541 = vmatpush1.bf16.msra.mxu0 0
      %542 = vmatprep.subr.bf16.mxu0 0
      %543 = vmatpush1.bf16.msra.mxu0 0
      %544 = vmatprep.subr.bf16.mxu0 0
      %545 = vmatpush1.bf16.msra.mxu0 0
      %546 = vmatprep.subr.bf16.mxu0 0
      %547 = vmatpush1.bf16.msra.mxu0 0
      %548 = vmatprep.subr.bf16.mxu0 0
      %549 = vmatpush1.bf16.msra.mxu0 0
      %550 = vmatprep.subr.bf16.mxu0 0
      %551 = vmatpush1.bf16.msra.mxu0 0
      %552 = vmatprep.subr.bf16.mxu0 0
      %553 = vmatpush1.bf16.msra.mxu0 0
      %554 = vmatprep.subr.bf16.mxu0 0
      %555 = vmatpush1.bf16.msra.mxu0 0
      %556 = vmatprep.subr.bf16.mxu0 0
      %557 = vmatpush1.bf16.msra.mxu0 0
      %558 = vmatprep.subr.bf16.mxu0 0
      %559 = vmatpush1.bf16.msra.mxu0 0
      %560 = vmatprep.subr.bf16.mxu0 0
      %561 = vmatpush1.bf16.msra.mxu0 0
      %562 = vmatprep.subr.bf16.mxu0 0
      %563 = vmatpush1.bf16.msra.mxu0 0
      %564 = vmatprep.subr.bf16.mxu0 0
      %565 = vmatpush1.bf16.msra.mxu0 0
      %566 = vmatprep.mubr.bf16.mxu0 0
      %567 = vmatmul.mubr.bf16.gmra.mrb[0].mxu0 %v519
      %v568 = vpop.f32.mrb[0].mxu0
      %v569 = vadd.f32 0.0, %v568
      %v570 = vpop.f32.mrb[0].mxu0
      %v571 = vpop.f32.mrb[0].mxu0
      %v572 = vadd.f32 0.0, %v571
      %v573 = vpop.f32.mrb[0].mxu0
      %574 = vmatprep.mubr.bf16.mxu0 0
      %575 = vmatmul.mubr.bf16.gmra.mrb[0].mxu0 %v522
      %v576 = vpop.f32.mrb[0].mxu0
      %v577 = vadd.f32 0.0, %v576
      %v578 = vpop.f32.mrb[0].mxu0
      %v579 = vpop.f32.mrb[0].mxu0
      %v580 = vadd.f32 0.0, %v579
      %v581 = vpop.f32.mrb[0].mxu0
      %582 = vmatprep.mubr.bf16.mxu0 0
      %583 = vmatmul.mubr.bf16.gmra.mrb[0].mxu0 %v525
      %v584 = vpop.f32.mrb[0].mxu0
      %v585 = vadd.f32 0.0, %v584
      %v586 = vpop.f32.mrb[0].mxu0
      %v587 = vpop.f32.mrb[0].mxu0
      %v588 = vadd.f32 0.0, %v587
      %v589 = vpop.f32.mrb[0].mxu0
      %590 = vmatprep.mubr.bf16.mxu0 0
      %591 = vmatmul.mubr.bf16.gmra.mrb[0].mxu0 %v528
      %v592 = vpop.f32.mrb[0].mxu0
      %v593 = vadd.f32 0.0, %v592
      %v594 = vpop.f32.mrb[0].mxu0
      %v595 = vpop.f32.mrb[0].mxu0
      %v596 = vadd.f32 0.0, %v595
      %v597 = vpop.f32.mrb[0].mxu0
      %598 = vdwg.mxu0
      %v600 = vsel %vm406, %v499, 0
      %v603 = vsel %vm406, %v500, 0
      %v606 = vsel %vm406, %v501, 0
      %v609 = vsel %vm406, %v502, 0
      %v612 = vsel %vm530, %v503, 0
      %614 = vmatprep.subr.bf16.mxu0 0
      %615 = vmatpush1.bf16.msra.mxu0 %v612
      %616 = vmatprep.subr.bf16.mxu0 0
      %617 = vmatpush1.bf16.msra.mxu0 0
      %618 = vmatprep.subr.bf16.mxu0 0
      %619 = vmatpush1.bf16.msra.mxu0 0
      %620 = vmatprep.subr.bf16.mxu0 0
      %621 = vmatpush1.bf16.msra.mxu0 0
      %622 = vmatprep.subr.bf16.mxu0 0
      %623 = vmatpush1.bf16.msra.mxu0 0
      %624 = vmatprep.subr.bf16.mxu0 0
      %625 = vmatpush1.bf16.msra.mxu0 0
      %626 = vmatprep.subr.bf16.mxu0 0
      %627 = vmatpush1.bf16.msra.mxu0 0
      %628 = vmatprep.subr.bf16.mxu0 0
      %629 = vmatpush1.bf16.msra.mxu0 0
      %630 = vmatprep.subr.bf16.mxu0 0
      %631 = vmatpush1.bf16.msra.mxu0 0
      %632 = vmatprep.subr.bf16.mxu0 0
      %633 = vmatpush1.bf16.msra.mxu0 0
      %634 = vmatprep.subr.bf16.mxu0 0
      %635 = vmatpush1.bf16.msra.mxu0 0
      %636 = vmatprep.subr.bf16.mxu0 0
      %637 = vmatpush1.bf16.msra.mxu0 0
      %638 = vmatprep.subr.bf16.mxu0 0
      %639 = vmatpush1.bf16.msra.mxu0 0
      %640 = vmatprep.subr.bf16.mxu0 0
      %641 = vmatpush1.bf16.msra.mxu0 0
      %642 = vmatprep.subr.bf16.mxu0 0
      %643 = vmatpush1.bf16.msra.mxu0 0
      %644 = vmatprep.subr.bf16.mxu0 0
      %645 = vmatpush1.bf16.msra.mxu0 0
      %646 = vmatprep.mubr.bf16.mxu0 0
      %647 = vmatmul.mubr.bf16.gmra.mrb[0].mxu0 %v600
      %v648 = vpop.f32.mrb[0].mxu0
      %v649 = vadd.f32 %v569, %v648
      %v650 = vpop.f32.mrb[0].mxu0
      %v651 = vpop.f32.mrb[0].mxu0
      %v652 = vadd.f32 %v572, %v651
      %v653 = vpop.f32.mrb[0].mxu0
      %654 = vmatprep.mubr.bf16.mxu0 0
      %655 = vmatmul.mubr.bf16.gmra.mrb[0].mxu0 %v603
      %v656 = vpop.f32.mrb[0].mxu0
      %v657 = vadd.f32 %v577, %v656
      %v658 = vpop.f32.mrb[0].mxu0
      %v659 = vpop.f32.mrb[0].mxu0
      %v660 = vadd.f32 %v580, %v659
      %v661 = vpop.f32.mrb[0].mxu0
      %662 = vmatprep.mubr.bf16.mxu0 0
      %663 = vmatmul.mubr.bf16.gmra.mrb[0].mxu0 %v606
      %v664 = vpop.f32.mrb[0].mxu0
      %v665 = vadd.f32 %v585, %v664
      %v666 = vpop.f32.mrb[0].mxu0
      %v667 = vpop.f32.mrb[0].mxu0
      %v668 = vadd.f32 %v588, %v667
      %v669 = vpop.f32.mrb[0].mxu0
      %670 = vmatprep.mubr.bf16.mxu0 0
      %671 = vmatmul.mubr.bf16.gmra.mrb[0].mxu0 %v609
      %v672 = vpop.f32.mrb[0].mxu0
      %v673 = vadd.f32 %v593, %v672
      %v674 = vpop.f32.mrb[0].mxu0
      %v675 = vpop.f32.mrb[0].mxu0
      %v676 = vadd.f32 %v596, %v675
      %v677 = vpop.f32.mrb[0].mxu0
      %678 = vdwg.mxu0
      %v679 = vld [vmem:[#allocation2 + $0x1] sm:$0xff]
      %v680 = vld [vmem:[#allocation2 + $0x11] sm:$0xff]
      %v681 = vld [vmem:[#allocation2 + $0x21] sm:$0xff]
      %v682 = vld [vmem:[#allocation2 + $0x31] sm:$0xff]
      %v683 = vld [vmem:[#allocation2 + $0x41] sm:$0xff]
      %v684 = vld [vmem:[#allocation2 + $0x51] sm:$0xff]
      %v685 = vld [vmem:[#allocation2 + $0x61] sm:$0xff]
      %v686 = vld [vmem:[#allocation2 + $0x71] sm:$0xff]
      %v687 = vpack.c.bf16 %v680, %v679
      %v688 = vpack.c.bf16 %v682, %v681
      %v689 = vpack.c.bf16 %v684, %v683
      %v690 = vpack.c.bf16 %v686, %v685
      %s691 = scalar_lea.vmem %s3, 4
      %v692 = vld [vmem:[%s691] sm:$0x3]
      %v694 = vsel %vm406, %v687, 0
      %v697 = vsel %vm406, %v688, 0
      %v700 = vsel %vm406, %v689, 0
      %v703 = vsel %vm406, %v690, 0
      %v706 = vsel %vm530, %v692, 0
      %708 = vmatprep.subr.bf16.mxu0 0
      %709 = vmatpush1.bf16.msra.mxu0 %v706
      %710 = vmatprep.subr.bf16.mxu0 0
      %711 = vmatpush1.bf16.msra.mxu0 0
      %712 = vmatprep.subr.bf16.mxu0 0
      %713 = vmatpush1.bf16.msra.mxu0 0
      %714 = vmatprep.subr.bf16.mxu0 0
      %715 = vmatpush1.bf16.msra.mxu0 0
      %716 = vmatprep.subr.bf16.mxu0 0
      %717 = vmatpush1.bf16.msra.mxu0 0
      %718 = vmatprep.subr.bf16.mxu0 0
      %719 = vmatpush1.bf16.msra.mxu0 0
      %720 = vmatprep.subr.bf16.mxu0 0
      %721 = vmatpush1.bf16.msra.mxu0 0
      %722 = vmatprep.subr.bf16.mxu0 0
      %723 = vmatpush1.bf16.msra.mxu0 0
      %724 = vmatprep.subr.bf16.mxu0 0
      %725 = vmatpush1.bf16.msra.mxu0 0
      %726 = vmatprep.subr.bf16.mxu0 0
      %727 = vmatpush1.bf16.msra.mxu0 0
      %728 = vmatprep.subr.bf16.mxu0 0
      %729 = vmatpush1.bf16.msra.mxu0 0
      %730 = vmatprep.subr.bf16.mxu0 0
      %731 = vmatpush1.bf16.msra.mxu0 0
      %732 = vmatprep.subr.bf16.mxu0 0
      %733 = vmatpush1.bf16.msra.mxu0 0
      %734 = vmatprep.subr.bf16.mxu0 0
      %735 = vmatpush1.bf16.msra.mxu0 0
      %736 = vmatprep.subr.bf16.mxu0 0
      %737 = vmatpush1.bf16.msra.mxu0 0
      %738 = vmatprep.subr.bf16.mxu0 0
      %739 = vmatpush1.bf16.msra.mxu0 0
      %740 = vmatprep.mubr.bf16.mxu0 0
      %741 = vmatmul.mubr.bf16.gmra.mrb[0].mxu0 %v694
      %v742 = vpop.f32.mrb[0].mxu0
      %v743 = vadd.f32 0.0, %v742
      %v744 = vpop.f32.mrb[0].mxu0
      %v745 = vpop.f32.mrb[0].mxu0
      %v746 = vadd.f32 0.0, %v745
      %v747 = vpop.f32.mrb[0].mxu0
      %748 = vmatprep.mubr.bf16.mxu0 0
      %749 = vmatmul.mubr.bf16.gmra.mrb[0].mxu0 %v697
      %v750 = vpop.f32.mrb[0].mxu0
      %v751 = vadd.f32 0.0, %v750
      %v752 = vpop.f32.mrb[0].mxu0
      %v753 = vpop.f32.mrb[0].mxu0
      %v754 = vadd.f32 0.0, %v753
      %v755 = vpop.f32.mrb[0].mxu0
      %756 = vmatprep.mubr.bf16.mxu0 0
      %757 = vmatmul.mubr.bf16.gmra.mrb[0].mxu0 %v700
      %v758 = vpop.f32.mrb[0].mxu0
      %v759 = vadd.f32 0.0, %v758
      %v760 = vpop.f32.mrb[0].mxu0
      %v761 = vpop.f32.mrb[0].mxu0
      %v762 = vadd.f32 0.0, %v761
      %v763 = vpop.f32.mrb[0].mxu0
      %764 = vmatprep.mubr.bf16.mxu0 0
      %765 = vmatmul.mubr.bf16.gmra.mrb[0].mxu0 %v703
      %v766 = vpop.f32.mrb[0].mxu0
      %v767 = vadd.f32 0.0, %v766
      %v768 = vpop.f32.mrb[0].mxu0
      %v769 = vpop.f32.mrb[0].mxu0
      %v770 = vadd.f32 0.0, %v769
      %v771 = vpop.f32.mrb[0].mxu0
      %772 = vdwg.mxu0
      %v773 = vadd.f32 %v649, %v743
      %v774 = vadd.f32 %v652, %v746
      %v775 = vadd.f32 %v657, %v751
      %v776 = vadd.f32 %v660, %v754
      %v777 = vadd.f32 %v665, %v759
      %v778 = vadd.f32 %v668, %v762
      %v779 = vadd.f32 %v673, %v767
      %v780 = vadd.f32 %v676, %v770
      %v781 = vld [vmem:[%s434] sm:$0xff]
      %v782 = vld [vmem:[%s434 + $0x10] sm:$0xff]
      %v783 = vld [vmem:[%s434 + $0x20] sm:$0xff]
      %v784 = vld [vmem:[%s434 + $0x30] sm:$0xff]
      %v785 = vld [vmem:[%s434 + $0x40] sm:$0xff]
      %v786 = vld [vmem:[%s434 + $0x50] sm:$0xff]
      %v787 = vld [vmem:[%s434 + $0x60] sm:$0xff]
      %v788 = vld [vmem:[%s434 + $0x70] sm:$0xff]
      %v789 = vpack.c.bf16 %v782, %v781
      %v790 = vpack.c.bf16 %v784, %v783
      %v791 = vpack.c.bf16 %v786, %v785
      %v792 = vpack.c.bf16 %v788, %v787
      %s793 = scalar_lea.vmem %s3, 6
      %v794 = vld [vmem:[%s793] sm:$0x3]
      %v796 = vsel %vm406, %v789, 0
      %v799 = vsel %vm406, %v790, 0
      %v802 = vsel %vm406, %v791, 0
      %v805 = vsel %vm406, %v792, 0
      %v808 = vsel %vm530, %v794, 0
      %810 = vmatprep.subr.bf16.mxu0 0
      %811 = vmatpush1.bf16.msra.mxu0 %v808
      %812 = vmatprep.subr.bf16.mxu0 0
      %813 = vmatpush1.bf16.msra.mxu0 0
      %814 = vmatprep.subr.bf16.mxu0 0
      %815 = vmatpush1.bf16.msra.mxu0 0
      %816 = vmatprep.subr.bf16.mxu0 0
      %817 = vmatpush1.bf16.msra.mxu0 0
      %818 = vmatprep.subr.bf16.mxu0 0
      %819 = vmatpush1.bf16.msra.mxu0 0
      %820 = vmatprep.subr.bf16.mxu0 0
      %821 = vmatpush1.bf16.msra.mxu0 0
      %822 = vmatprep.subr.bf16.mxu0 0
      %823 = vmatpush1.bf16.msra.mxu0 0
      %824 = vmatprep.subr.bf16.mxu0 0
      %825 = vmatpush1.bf16.msra.mxu0 0
      %826 = vmatprep.subr.bf16.mxu0 0
      %827 = vmatpush1.bf16.msra.mxu0 0
      %828 = vmatprep.subr.bf16.mxu0 0
      %829 = vmatpush1.bf16.msra.mxu0 0
      %830 = vmatprep.subr.bf16.mxu0 0
      %831 = vmatpush1.bf16.msra.mxu0 0
      %832 = vmatprep.subr.bf16.mxu0 0
      %833 = vmatpush1.bf16.msra.mxu0 0
      %834 = vmatprep.subr.bf16.mxu0 0
      %835 = vmatpush1.bf16.msra.mxu0 0
      %836 = vmatprep.subr.bf16.mxu0 0
      %837 = vmatpush1.bf16.msra.mxu0 0
      %838 = vmatprep.subr.bf16.mxu0 0
      %839 = vmatpush1.bf16.msra.mxu0 0
      %840 = vmatprep.subr.bf16.mxu0 0
      %841 = vmatpush1.bf16.msra.mxu0 0
      %842 = vmatprep.mubr.bf16.mxu0 0
      %843 = vmatmul.mubr.bf16.gmra.mrb[0].mxu0 %v796
      %v844 = vpop.f32.mrb[0].mxu0
      %v845 = vadd.f32 0.0, %v844
      %v846 = vpop.f32.mrb[0].mxu0
      %v847 = vpop.f32.mrb[0].mxu0
      %v848 = vadd.f32 0.0, %v847
      %v849 = vpop.f32.mrb[0].mxu0
      %850 = vmatprep.mubr.bf16.mxu0 0
      %851 = vmatmul.mubr.bf16.gmra.mrb[0].mxu0 %v799
      %v852 = vpop.f32.mrb[0].mxu0
      %v853 = vadd.f32 0.0, %v852
      %v854 = vpop.f32.mrb[0].mxu0
      %v855 = vpop.f32.mrb[0].mxu0
      %v856 = vadd.f32 0.0, %v855
      %v857 = vpop.f32.mrb[0].mxu0
      %858 = vmatprep.mubr.bf16.mxu0 0
      %859 = vmatmul.mubr.bf16.gmra.mrb[0].mxu0 %v802
      %v860 = vpop.f32.mrb[0].mxu0
      %v861 = vadd.f32 0.0, %v860
      %v862 = vpop.f32.mrb[0].mxu0
      %v863 = vpop.f32.mrb[0].mxu0
      %v864 = vadd.f32 0.0, %v863
      %v865 = vpop.f32.mrb[0].mxu0
      %866 = vmatprep.mubr.bf16.mxu0 0
      %867 = vmatmul.mubr.bf16.gmra.mrb[0].mxu0 %v805
      %v868 = vpop.f32.mrb[0].mxu0
      %v869 = vadd.f32 0.0, %v868
      %v870 = vpop.f32.mrb[0].mxu0
      %v871 = vpop.f32.mrb[0].mxu0
      %v872 = vadd.f32 0.0, %v871
      %v873 = vpop.f32.mrb[0].mxu0
      %874 = vdwg.mxu0
      %v875 = vadd.f32 %v773, %v845
      %v876 = vadd.f32 %v774, %v848
      %v877 = vadd.f32 %v775, %v853
      %v878 = vadd.f32 %v776, %v856
      %v879 = vadd.f32 %v777, %v861
      %v880 = vadd.f32 %v778, %v864
      %v881 = vadd.f32 %v779, %v869
      %v882 = vadd.f32 %v780, %v872
      %v883 = vld [vmem:[%s447] sm:$0xff]
      %v884 = vld [vmem:[%s447 + $0x10] sm:$0xff]
      %v885 = vld [vmem:[%s447 + $0x20] sm:$0xff]
      %v886 = vld [vmem:[%s447 + $0x30] sm:$0xff]
      %v887 = vld [vmem:[%s447 + $0x40] sm:$0xff]
      %v888 = vld [vmem:[%s447 + $0x50] sm:$0xff]
      %v889 = vld [vmem:[%s447 + $0x60] sm:$0xff]
      %v890 = vld [vmem:[%s447 + $0x70] sm:$0xff]
      %v891 = vpack.c.bf16 %v884, %v883
      %v892 = vpack.c.bf16 %v886, %v885
      %v893 = vpack.c.bf16 %v888, %v887
      %v894 = vpack.c.bf16 %v890, %v889
      %s895 = scalar_lea.vmem %s3, 8
      %v896 = vld [vmem:[%s895] sm:$0x3]
      %v898 = vsel %vm406, %v891, 0
      %v901 = vsel %vm406, %v892, 0
      %v904 = vsel %vm406, %v893, 0
      %v907 = vsel %vm406, %v894, 0
      %v910 = vsel %vm530, %v896, 0
      %912 = vmatprep.subr.bf16.mxu0 0
      %913 = vmatpush1.bf16.msra.mxu0 %v910
      %914 = vmatprep.subr.bf16.mxu0 0
      %915 = vmatpush1.bf16.msra.mxu0 0
      %916 = vmatprep.subr.bf16.mxu0 0
      %917 = vmatpush1.bf16.msra.mxu0 0
      %918 = vmatprep.subr.bf16.mxu0 0
      %919 = vmatpush1.bf16.msra.mxu0 0
      %920 = vmatprep.subr.bf16.mxu0 0
      %921 = vmatpush1.bf16.msra.mxu0 0
      %922 = vmatprep.subr.bf16.mxu0 0
      %923 = vmatpush1.bf16.msra.mxu0 0
      %924 = vmatprep.subr.bf16.mxu0 0
      %925 = vmatpush1.bf16.msra.mxu0 0
      %926 = vmatprep.subr.bf16.mxu0 0
      %927 = vmatpush1.bf16.msra.mxu0 0
      %928 = vmatprep.subr.bf16.mxu0 0
      %929 = vmatpush1.bf16.msra.mxu0 0
      %930 = vmatprep.subr.bf16.mxu0 0
      %931 = vmatpush1.bf16.msra.mxu0 0
      %932 = vmatprep.subr.bf16.mxu0 0
      %933 = vmatpush1.bf16.msra.mxu0 0
      %934 = vmatprep.subr.bf16.mxu0 0
      %935 = vmatpush1.bf16.msra.mxu0 0
      %936 = vmatprep.subr.bf16.mxu0 0
      %937 = vmatpush1.bf16.msra.mxu0 0
      %938 = vmatprep.subr.bf16.mxu0 0
      %939 = vmatpush1.bf16.msra.mxu0 0
      %940 = vmatprep.subr.bf16.mxu0 0
      %941 = vmatpush1.bf16.msra.mxu0 0
      %942 = vmatprep.subr.bf16.mxu0 0
      %943 = vmatpush1.bf16.msra.mxu0 0
      %944 = vmatprep.mubr.bf16.mxu0 0
      %945 = vmatmul.mubr.bf16.gmra.mrb[0].mxu0 %v898
      %v946 = vpop.f32.mrb[0].mxu0
      %v947 = vadd.f32 0.0, %v946
      %v948 = vpop.f32.mrb[0].mxu0
      %v949 = vpop.f32.mrb[0].mxu0
      %v950 = vadd.f32 0.0, %v949
      %v951 = vpop.f32.mrb[0].mxu0
      %952 = vmatprep.mubr.bf16.mxu0 0
      %953 = vmatmul.mubr.bf16.gmra.mrb[0].mxu0 %v901
      %v954 = vpop.f32.mrb[0].mxu0
      %v955 = vadd.f32 0.0, %v954
      %v956 = vpop.f32.mrb[0].mxu0
      %v957 = vpop.f32.mrb[0].mxu0
      %v958 = vadd.f32 0.0, %v957
      %v959 = vpop.f32.mrb[0].mxu0
      %960 = vmatprep.mubr.bf16.mxu0 0
      %961 = vmatmul.mubr.bf16.gmra.mrb[0].mxu0 %v904
      %v962 = vpop.f32.mrb[0].mxu0
      %v963 = vadd.f32 0.0, %v962
      %v964 = vpop.f32.mrb[0].mxu0
      %v965 = vpop.f32.mrb[0].mxu0
      %v966 = vadd.f32 0.0, %v965
      %v967 = vpop.f32.mrb[0].mxu0
      %968 = vmatprep.mubr.bf16.mxu0 0
      %969 = vmatmul.mubr.bf16.gmra.mrb[0].mxu0 %v907
      %v970 = vpop.f32.mrb[0].mxu0
      %v971 = vadd.f32 0.0, %v970
      %v972 = vpop.f32.mrb[0].mxu0
      %v973 = vpop.f32.mrb[0].mxu0
      %v974 = vadd.f32 0.0, %v973
      %v975 = vpop.f32.mrb[0].mxu0
      %976 = vdwg.mxu0
      %v977 = vadd.f32 %v875, %v947
      %v978 = vadd.f32 %v876, %v950
      %v979 = vadd.f32 %v877, %v955
      %v980 = vadd.f32 %v878, %v958
      %v981 = vadd.f32 %v879, %v963
      %v982 = vadd.f32 %v880, %v966
      %v983 = vadd.f32 %v881, %v971
      %v984 = vadd.f32 %v882, %v974
      %v985 = vld [vmem:[%s434 + $0x1] sm:$0xff]
      %v986 = vld [vmem:[%s434 + $0x11] sm:$0xff]
      %v987 = vld [vmem:[%s434 + $0x21] sm:$0xff]
      %v988 = vld [vmem:[%s434 + $0x31] sm:$0xff]
      %v989 = vld [vmem:[%s434 + $0x41] sm:$0xff]
      %v990 = vld [vmem:[%s434 + $0x51] sm:$0xff]
      %v991 = vld [vmem:[%s434 + $0x61] sm:$0xff]
      %v992 = vld [vmem:[%s434 + $0x71] sm:$0xff]
      %v993 = vpack.c.bf16 %v986, %v985
      %v994 = vpack.c.bf16 %v988, %v987
      %v995 = vpack.c.bf16 %v990, %v989
      %v996 = vpack.c.bf16 %v992, %v991
      %s997 = scalar_lea.vmem %s3, 10
      %v998 = vld [vmem:[%s997] sm:$0x3]
      %v1000 = vsel %vm406, %v993, 0
      %v1003 = vsel %vm406, %v994, 0
      %v1006 = vsel %vm406, %v995, 0
      %v1009 = vsel %vm406, %v996, 0
      %v1012 = vsel %vm530, %v998, 0
      %1014 = vmatprep.subr.bf16.mxu0 0
      %1015 = vmatpush1.bf16.msra.mxu0 %v1012
      %1016 = vmatprep.subr.bf16.mxu0 0
      %1017 = vmatpush1.bf16.msra.mxu0 0
      %1018 = vmatprep.subr.bf16.mxu0 0
      %1019 = vmatpush1.bf16.msra.mxu0 0
      %1020 = vmatprep.subr.bf16.mxu0 0
      %1021 = vmatpush1.bf16.msra.mxu0 0
      %1022 = vmatprep.subr.bf16.mxu0 0
      %1023 = vmatpush1.bf16.msra.mxu0 0
      %1024 = vmatprep.subr.bf16.mxu0 0
      %1025 = vmatpush1.bf16.msra.mxu0 0
      %1026 = vmatprep.subr.bf16.mxu0 0
      %1027 = vmatpush1.bf16.msra.mxu0 0
      %1028 = vmatprep.subr.bf16.mxu0 0
      %1029 = vmatpush1.bf16.msra.mxu0 0
      %1030 = vmatprep.subr.bf16.mxu0 0
      %1031 = vmatpush1.bf16.msra.mxu0 0
      %1032 = vmatprep.subr.bf16.mxu0 0
      %1033 = vmatpush1.bf16.msra.mxu0 0
      %1034 = vmatprep.subr.bf16.mxu0 0
      %1035 = vmatpush1.bf16.msra.mxu0 0
      %1036 = vmatprep.subr.bf16.mxu0 0
      %1037 = vmatpush1.bf16.msra.mxu0 0
      %1038 = vmatprep.subr.bf16.mxu0 0
      %1039 = vmatpush1.bf16.msra.mxu0 0
      %1040 = vmatprep.subr.bf16.mxu0 0
      %1041 = vmatpush1.bf16.msra.mxu0 0
      %1042 = vmatprep.subr.bf16.mxu0 0
      %1043 = vmatpush1.bf16.msra.mxu0 0
      %1044 = vmatprep.subr.bf16.mxu0 0
      %1045 = vmatpush1.bf16.msra.mxu0 0
      %1046 = vmatprep.mubr.bf16.mxu0 0
      %1047 = vmatmul.mubr.bf16.gmra.mrb[0].mxu0 %v1000
      %v1048 = vpop.f32.mrb[0].mxu0
      %v1049 = vadd.f32 0.0, %v1048
      %v1050 = vpop.f32.mrb[0].mxu0
      %v1051 = vpop.f32.mrb[0].mxu0
      %v1052 = vadd.f32 0.0, %v1051
      %v1053 = vpop.f32.mrb[0].mxu0
      %1054 = vmatprep.mubr.bf16.mxu0 0
      %1055 = vmatmul.mubr.bf16.gmra.mrb[0].mxu0 %v1003
      %v1056 = vpop.f32.mrb[0].mxu0
      %v1057 = vadd.f32 0.0, %v1056
      %v1058 = vpop.f32.mrb[0].mxu0
      %v1059 = vpop.f32.mrb[0].mxu0
      %v1060 = vadd.f32 0.0, %v1059
      %v1061 = vpop.f32.mrb[0].mxu0
      %1062 = vmatprep.mubr.bf16.mxu0 0
      %1063 = vmatmul.mubr.bf16.gmra.mrb[0].mxu0 %v1006
      %v1064 = vpop.f32.mrb[0].mxu0
      %v1065 = vadd.f32 0.0, %v1064
      %v1066 = vpop.f32.mrb[0].mxu0
      %v1067 = vpop.f32.mrb[0].mxu0
      %v1068 = vadd.f32 0.0, %v1067
      %v1069 = vpop.f32.mrb[0].mxu0
      %1070 = vmatprep.mubr.bf16.mxu0 0
      %1071 = vmatmul.mubr.bf16.gmra.mrb[0].mxu0 %v1009
      %v1072 = vpop.f32.mrb[0].mxu0
      %v1073 = vadd.f32 0.0, %v1072
      %v1074 = vpop.f32.mrb[0].mxu0
      %v1075 = vpop.f32.mrb[0].mxu0
      %v1076 = vadd.f32 0.0, %v1075
      %v1077 = vpop.f32.mrb[0].mxu0
      %1078 = vdwg.mxu0
      %v1079 = vadd.f32 %v977, %v1049
      %v1080 = vadd.f32 %v978, %v1052
      %v1081 = vadd.f32 %v979, %v1057
      %v1082 = vadd.f32 %v980, %v1060
      %v1083 = vadd.f32 %v981, %v1065
      %v1084 = vadd.f32 %v982, %v1068
      %v1085 = vadd.f32 %v983, %v1073
      %v1086 = vadd.f32 %v984, %v1076
      %v1087 = vld [vmem:[%s457] sm:$0xff]
      %v1088 = vld [vmem:[%s457 + $0x10] sm:$0xff]
      %v1089 = vld [vmem:[%s457 + $0x20] sm:$0xff]
      %v1090 = vld [vmem:[%s457 + $0x30] sm:$0xff]
      %v1091 = vld [vmem:[%s457 + $0x40] sm:$0xff]
      %v1092 = vld [vmem:[%s457 + $0x50] sm:$0xff]
      %v1093 = vld [vmem:[%s457 + $0x60] sm:$0xff]
      %v1094 = vld [vmem:[%s457 + $0x70] sm:$0xff]
      %v1095 = vpack.c.bf16 %v1088, %v1087
      %v1096 = vpack.c.bf16 %v1090, %v1089
      %v1097 = vpack.c.bf16 %v1092, %v1091
      %v1098 = vpack.c.bf16 %v1094, %v1093
      %s1099 = scalar_lea.vmem %s3, 12
      %v1100 = vld [vmem:[%s1099] sm:$0x3]
      %v1102 = vsel %vm406, %v1095, 0
      %v1105 = vsel %vm406, %v1096, 0
      %v1108 = vsel %vm406, %v1097, 0
      %v1111 = vsel %vm406, %v1098, 0
      %v1114 = vsel %vm530, %v1100, 0
      %1116 = vmatprep.subr.bf16.mxu0 0
      %1117 = vmatpush1.bf16.msra.mxu0 %v1114
      %1118 = vmatprep.subr.bf16.mxu0 0
      %1119 = vmatpush1.bf16.msra.mxu0 0
      %1120 = vmatprep.subr.bf16.mxu0 0
      %1121 = vmatpush1.bf16.msra.mxu0 0
      %1122 = vmatprep.subr.bf16.mxu0 0
      %1123 = vmatpush1.bf16.msra.mxu0 0
      %1124 = vmatprep.subr.bf16.mxu0 0
      %1125 = vmatpush1.bf16.msra.mxu0 0
      %1126 = vmatprep.subr.bf16.mxu0 0
      %1127 = vmatpush1.bf16.msra.mxu0 0
      %1128 = vmatprep.subr.bf16.mxu0 0
      %1129 = vmatpush1.bf16.msra.mxu0 0
      %1130 = vmatprep.subr.bf16.mxu0 0
      %1131 = vmatpush1.bf16.msra.mxu0 0
      %1132 = vmatprep.subr.bf16.mxu0 0
      %1133 = vmatpush1.bf16.msra.mxu0 0
      %1134 = vmatprep.subr.bf16.mxu0 0
      %1135 = vmatpush1.bf16.msra.mxu0 0
      %1136 = vmatprep.subr.bf16.mxu0 0
      %1137 = vmatpush1.bf16.msra.mxu0 0
      %1138 = vmatprep.subr.bf16.mxu0 0
      %1139 = vmatpush1.bf16.msra.mxu0 0
      %1140 = vmatprep.subr.bf16.mxu0 0
      %1141 = vmatpush1.bf16.msra.mxu0 0
      %1142 = vmatprep.subr.bf16.mxu0 0
      %1143 = vmatpush1.bf16.msra.mxu0 0
      %1144 = vmatprep.subr.bf16.mxu0 0
      %1145 = vmatpush1.bf16.msra.mxu0 0
      %1146 = vmatprep.subr.bf16.mxu0 0
      %1147 = vmatpush1.bf16.msra.mxu0 0
      %1148 = vmatprep.mubr.bf16.mxu0 0
      %1149 = vmatmul.mubr.bf16.gmra.mrb[0].mxu0 %v1102
      %v1150 = vpop.f32.mrb[0].mxu0
      %v1151 = vadd.f32 0.0, %v1150
      %v1152 = vpop.f32.mrb[0].mxu0
      %v1153 = vpop.f32.mrb[0].mxu0
      %v1154 = vadd.f32 0.0, %v1153
      %v1155 = vpop.f32.mrb[0].mxu0
      %1156 = vmatprep.mubr.bf16.mxu0 0
      %1157 = vmatmul.mubr.bf16.gmra.mrb[0].mxu0 %v1105
      %v1158 = vpop.f32.mrb[0].mxu0
      %v1159 = vadd.f32 0.0, %v1158
      %v1160 = vpop.f32.mrb[0].mxu0
      %v1161 = vpop.f32.mrb[0].mxu0
      %v1162 = vadd.f32 0.0, %v1161
      %v1163 = vpop.f32.mrb[0].mxu0
      %1164 = vmatprep.mubr.bf16.mxu0 0
      %1165 = vmatmul.mubr.bf16.gmra.mrb[0].mxu0 %v1108
      %v1166 = vpop.f32.mrb[0].mxu0
      %v1167 = vadd.f32 0.0, %v1166
      %v1168 = vpop.f32.mrb[0].mxu0
      %v1169 = vpop.f32.mrb[0].mxu0
      %v1170 = vadd.f32 0.0, %v1169
      %v1171 = vpop.f32.mrb[0].mxu0
      %1172 = vmatprep.mubr.bf16.mxu0 0
      %1173 = vmatmul.mubr.bf16.gmra.mrb[0].mxu0 %v1111
      %v1174 = vpop.f32.mrb[0].mxu0
      %v1175 = vadd.f32 0.0, %v1174
      %v1176 = vpop.f32.mrb[0].mxu0
      %v1177 = vpop.f32.mrb[0].mxu0
      %v1178 = vadd.f32 0.0, %v1177
      %v1179 = vpop.f32.mrb[0].mxu0
      %1180 = vdwg.mxu0
      %v1181 = vadd.f32 %v1079, %v1151
      %v1182 = vadd.f32 %v1080, %v1154
      %v1183 = vadd.f32 %v1081, %v1159
      %v1184 = vadd.f32 %v1082, %v1162
      %v1185 = vadd.f32 %v1083, %v1167
      %v1186 = vadd.f32 %v1084, %v1170
      %v1187 = vadd.f32 %v1085, %v1175
      %v1188 = vadd.f32 %v1086, %v1178
      %v1189 = vld [vmem:[%s466] sm:$0xff]
      %v1190 = vld [vmem:[%s466 + $0x10] sm:$0xff]
      %v1191 = vld [vmem:[%s466 + $0x20] sm:$0xff]
      %v1192 = vld [vmem:[%s466 + $0x30] sm:$0xff]
      %v1193 = vld [vmem:[%s466 + $0x40] sm:$0xff]
      %v1194 = vld [vmem:[%s466 + $0x50] sm:$0xff]
      %v1195 = vld [vmem:[%s466 + $0x60] sm:$0xff]
      %v1196 = vld [vmem:[%s466 + $0x70] sm:$0xff]
      %v1197 = vpack.c.bf16 %v1190, %v1189
      %v1198 = vpack.c.bf16 %v1192, %v1191
      %v1199 = vpack.c.bf16 %v1194, %v1193
      %v1200 = vpack.c.bf16 %v1196, %v1195
      %s1201 = scalar_lea.vmem %s3, 14
      %v1202 = vld [vmem:[%s1201] sm:$0x3]
      %v1204 = vsel %vm406, %v1197, 0
      %v1207 = vsel %vm406, %v1198, 0
      %v1210 = vsel %vm406, %v1199, 0
      %v1213 = vsel %vm406, %v1200, 0
      %v1216 = vsel %vm530, %v1202, 0
      %1218 = vmatprep.subr.bf16.mxu0 0
      %1219 = vmatpush1.bf16.msra.mxu0 %v1216
      %1220 = vmatprep.subr.bf16.mxu0 0
      %1221 = vmatpush1.bf16.msra.mxu0 0
      %1222 = vmatprep.subr.bf16.mxu0 0
      %1223 = vmatpush1.bf16.msra.mxu0 0
      %1224 = vmatprep.subr.bf16.mxu0 0
      %1225 = vmatpush1.bf16.msra.mxu0 0
      %1226 = vmatprep.subr.bf16.mxu0 0
      %1227 = vmatpush1.bf16.msra.mxu0 0
      %1228 = vmatprep.subr.bf16.mxu0 0
      %1229 = vmatpush1.bf16.msra.mxu0 0
      %1230 = vmatprep.subr.bf16.mxu0 0
      %1231 = vmatpush1.bf16.msra.mxu0 0
      %1232 = vmatprep.subr.bf16.mxu0 0
      %1233 = vmatpush1.bf16.msra.mxu0 0
      %1234 = vmatprep.subr.bf16.mxu0 0
      %1235 = vmatpush1.bf16.msra.mxu0 0
      %1236 = vmatprep.subr.bf16.mxu0 0
      %1237 = vmatpush1.bf16.msra.mxu0 0
      %1238 = vmatprep.subr.bf16.mxu0 0
      %1239 = vmatpush1.bf16.msra.mxu0 0
      %1240 = vmatprep.subr.bf16.mxu0 0
      %1241 = vmatpush1.bf16.msra.mxu0 0
      %1242 = vmatprep.subr.bf16.mxu0 0
      %1243 = vmatpush1.bf16.msra.mxu0 0
      %1244 = vmatprep.subr.bf16.mxu0 0
      %1245 = vmatpush1.bf16.msra.mxu0 0
      %1246 = vmatprep.subr.bf16.mxu0 0
      %1247 = vmatpush1.bf16.msra.mxu0 0
      %1248 = vmatprep.subr.bf16.mxu0 0
      %1249 = vmatpush1.bf16.msra.mxu0 0
      %1250 = vmatprep.mubr.bf16.mxu0 0
      %1251 = vmatmul.mubr.bf16.gmra.mrb[0].mxu0 %v1204
      %v1252 = vpop.f32.mrb[0].mxu0
      %v1253 = vadd.f32 0.0, %v1252
      %v1254 = vpop.f32.mrb[0].mxu0
      %v1255 = vpop.f32.mrb[0].mxu0
      %v1256 = vadd.f32 0.0, %v1255
      %v1257 = vpop.f32.mrb[0].mxu0
      %1258 = vmatprep.mubr.bf16.mxu0 0
      %1259 = vmatmul.mubr.bf16.gmra.mrb[0].mxu0 %v1207
      %v1260 = vpop.f32.mrb[0].mxu0
      %v1261 = vadd.f32 0.0, %v1260
      %v1262 = vpop.f32.mrb[0].mxu0
      %v1263 = vpop.f32.mrb[0].mxu0
      %v1264 = vadd.f32 0.0, %v1263
      %v1265 = vpop.f32.mrb[0].mxu0
      %1266 = vmatprep.mubr.bf16.mxu0 0
      %1267 = vmatmul.mubr.bf16.gmra.mrb[0].mxu0 %v1210
      %v1268 = vpop.f32.mrb[0].mxu0
      %v1269 = vadd.f32 0.0, %v1268
      %v1270 = vpop.f32.mrb[0].mxu0
      %v1271 = vpop.f32.mrb[0].mxu0
      %v1272 = vadd.f32 0.0, %v1271
      %v1273 = vpop.f32.mrb[0].mxu0
      %1274 = vmatprep.mubr.bf16.mxu0 0
      %1275 = vmatmul.mubr.bf16.gmra.mrb[0].mxu0 %v1213
      %v1276 = vpop.f32.mrb[0].mxu0
      %v1277 = vadd.f32 0.0, %v1276
      %v1278 = vpop.f32.mrb[0].mxu0
      %v1279 = vpop.f32.mrb[0].mxu0
      %v1280 = vadd.f32 0.0, %v1279
      %v1281 = vpop.f32.mrb[0].mxu0
      %1282 = vdwg.mxu0
      %v1283 = vadd.f32 %v1181, %v1253
      %v1284 = vadd.f32 %v1182, %v1256
      %v1285 = vadd.f32 %v1183, %v1261
      %v1286 = vadd.f32 %v1184, %v1264
      %v1287 = vadd.f32 %v1185, %v1269
      %v1288 = vadd.f32 %v1186, %v1272
      %v1289 = vadd.f32 %v1187, %v1277
      %v1290 = vadd.f32 %v1188, %v1280
      %v1291 = vld [vmem:[%s457 + $0x1] sm:$0xff]
      %v1292 = vld [vmem:[%s457 + $0x11] sm:$0xff]
      %v1293 = vld [vmem:[%s457 + $0x21] sm:$0xff]
      %v1294 = vld [vmem:[%s457 + $0x31] sm:$0xff]
      %v1295 = vld [vmem:[%s457 + $0x41] sm:$0xff]
      %v1296 = vld [vmem:[%s457 + $0x51] sm:$0xff]
      %v1297 = vld [vmem:[%s457 + $0x61] sm:$0xff]
      %v1298 = vld [vmem:[%s457 + $0x71] sm:$0xff]
      %v1299 = vpack.c.bf16 %v1292, %v1291
      %v1300 = vpack.c.bf16 %v1294, %v1293
      %v1301 = vpack.c.bf16 %v1296, %v1295
      %v1302 = vpack.c.bf16 %v1298, %v1297
      %s1303 = scalar_lea.vmem %s3, 16
      %v1304 = vld [vmem:[%s1303] sm:$0x3]
      %v1306 = vsel %vm406, %v1299, 0
      %v1309 = vsel %vm406, %v1300, 0
      %v1312 = vsel %vm406, %v1301, 0
      %v1315 = vsel %vm406, %v1302, 0
      %v1318 = vsel %vm530, %v1304, 0
      %1320 = vmatprep.subr.bf16.mxu0 0
      %1321 = vmatpush1.bf16.msra.mxu0 %v1318
      %1322 = vmatprep.subr.bf16.mxu0 0
      %1323 = vmatpush1.bf16.msra.mxu0 0
      %1324 = vmatprep.subr.bf16.mxu0 0
      %1325 = vmatpush1.bf16.msra.mxu0 0
      %1326 = vmatprep.subr.bf16.mxu0 0
      %1327 = vmatpush1.bf16.msra.mxu0 0
      %1328 = vmatprep.subr.bf16.mxu0 0
      %1329 = vmatpush1.bf16.msra.mxu0 0
      %1330 = vmatprep.subr.bf16.mxu0 0
      %1331 = vmatpush1.bf16.msra.mxu0 0
      %1332 = vmatprep.subr.bf16.mxu0 0
      %1333 = vmatpush1.bf16.msra.mxu0 0
      %1334 = vmatprep.subr.bf16.mxu0 0
      %1335 = vmatpush1.bf16.msra.mxu0 0
      %1336 = vmatprep.subr.bf16.mxu0 0
      %1337 = vmatpush1.bf16.msra.mxu0 0
      %1338 = vmatprep.subr.bf16.mxu0 0
      %1339 = vmatpush1.bf16.msra.mxu0 0
      %1340 = vmatprep.subr.bf16.mxu0 0
      %1341 = vmatpush1.bf16.msra.mxu0 0
      %1342 = vmatprep.subr.bf16.mxu0 0
      %1343 = vmatpush1.bf16.msra.mxu0 0
      %1344 = vmatprep.subr.bf16.mxu0 0
      %1345 = vmatpush1.bf16.msra.mxu0 0
      %1346 = vmatprep.subr.bf16.mxu0 0
      %1347 = vmatpush1.bf16.msra.mxu0 0
      %1348 = vmatprep.subr.bf16.mxu0 0
      %1349 = vmatpush1.bf16.msra.mxu0 0
      %1350 = vmatprep.subr.bf16.mxu0 0
      %1351 = vmatpush1.bf16.msra.mxu0 0
      %1352 = vmatprep.mubr.bf16.mxu0 0
      %1353 = vmatmul.mubr.bf16.gmra.mrb[0].mxu0 %v1306
      %v1354 = vpop.f32.mrb[0].mxu0
      %v1355 = vadd.f32 0.0, %v1354
      %v1356 = vpop.f32.mrb[0].mxu0
      %v1357 = vpop.f32.mrb[0].mxu0
      %v1358 = vadd.f32 0.0, %v1357
      %v1359 = vpop.f32.mrb[0].mxu0
      %1360 = vmatprep.mubr.bf16.mxu0 0
      %1361 = vmatmul.mubr.bf16.gmra.mrb[0].mxu0 %v1309
      %v1362 = vpop.f32.mrb[0].mxu0
      %v1363 = vadd.f32 0.0, %v1362
      %v1364 = vpop.f32.mrb[0].mxu0
      %v1365 = vpop.f32.mrb[0].mxu0
      %v1366 = vadd.f32 0.0, %v1365
      %v1367 = vpop.f32.mrb[0].mxu0
      %1368 = vmatprep.mubr.bf16.mxu0 0
      %1369 = vmatmul.mubr.bf16.gmra.mrb[0].mxu0 %v1312
      %v1370 = vpop.f32.mrb[0].mxu0
      %v1371 = vadd.f32 0.0, %v1370
      %v1372 = vpop.f32.mrb[0].mxu0
      %v1373 = vpop.f32.mrb[0].mxu0
      %v1374 = vadd.f32 0.0, %v1373
      %v1375 = vpop.f32.mrb[0].mxu0
      %1376 = vmatprep.mubr.bf16.mxu0 0
      %1377 = vmatmul.mubr.bf16.gmra.mrb[0].mxu0 %v1315
      %v1378 = vpop.f32.mrb[0].mxu0
      %v1379 = vadd.f32 0.0, %v1378
      %v1380 = vpop.f32.mrb[0].mxu0
      %v1381 = vpop.f32.mrb[0].mxu0
      %v1382 = vadd.f32 0.0, %v1381
      %v1383 = vpop.f32.mrb[0].mxu0
      %1384 = vdwg.mxu0
      %v1385 = vadd.f32 %v1283, %v1355
      %v1386 = vadd.f32 %v1284, %v1358
      %v1387 = vadd.f32 %v1285, %v1363
      %v1388 = vadd.f32 %v1286, %v1366
      %v1389 = vadd.f32 %v1287, %v1371
      %v1390 = vadd.f32 %v1288, %v1374
      %v1391 = vadd.f32 %v1289, %v1379
      %v1392 = vadd.f32 %v1290, %v1382
      %v1393 = vld [vmem:[%s4] sm:$0x1]
      %v1395 = vlaneseq
      %v1396 = vshrl.u32 %v1395, 7
      %v1397 = vsub.s32 0, %v1396
      %v1398 = vrot.slane %v1393, %v1397
      %v1400 = vadd.f32 %v1385, %v1398
      %v1401 = vadd.f32 %v1386, %v1398
      %v1402 = vadd.f32 %v1387, %v1398
      %v1403 = vadd.f32 %v1388, %v1398
      %v1404 = vadd.f32 %v1389, %v1398
      %v1405 = vadd.f32 %v1390, %v1398
      %v1406 = vadd.f32 %v1391, %v1398
      %v1407 = vadd.f32 %v1392, %v1398
      %vm1408 = vcmask 64512
      %1409 = vst.msk [vmem:[%s258] sm:$0xff] %vm1408, %v1400
      %1410 = vst.msk [vmem:[%s258 + $0x8] sm:$0xff] %vm1408, %v1401
      %1411 = vst.msk [vmem:[%s258 + $0x10] sm:$0xff] %vm1408, %v1402
      %1412 = vst.msk [vmem:[%s258 + $0x18] sm:$0xff] %vm1408, %v1403
      %1413 = vst.msk [vmem:[%s258 + $0x20] sm:$0xff] %vm1408, %v1404
      %1414 = vst.msk [vmem:[%s258 + $0x28] sm:$0xff] %vm1408, %v1405
      %1415 = vst.msk [vmem:[%s258 + $0x30] sm:$0xff] %vm1408, %v1406
      %1416 = vst.msk [vmem:[%s258 + $0x38] sm:$0xff] %vm1408, %v1407
      %v1417 = vsel %vm1408, %v1400, 0.0
      %v1418 = vsel %vm1408, %v1401, 0.0
      %v1419 = vadd.f32 %v1417, %v1418
      %v1420 = vsel %vm1408, %v1402, 0.0
      %v1421 = vadd.f32 %v1419, %v1420
      %v1422 = vsel %vm1408, %v1403, 0.0
      %v1423 = vadd.f32 %v1421, %v1422
      %v1424 = vsel %vm1408, %v1404, 0.0
      %v1425 = vadd.f32 %v1423, %v1424
      %v1426 = vsel %vm1408, %v1405, 0.0
      %v1427 = vadd.f32 %v1425, %v1426
      %v1428 = vsel %vm1408, %v1406, 0.0
      %v1429 = vadd.f32 %v1427, %v1428
      %v1430 = vsel %vm1408, %v1407, 0.0
      %v1431 = vadd.f32 %v1429, %v1430
      %v1432 = vrot.slane %v1431, 4
      %v1433 = vadd.f32 %v1431, %v1432
      %v1434 = vrot.slane %v1433, 2
      %v1435 = vadd.f32 %v1433, %v1434
      %v1436 = vrot.slane %v1435, 1
      %v1437 = vadd.f32 %v1435, %v1436
      %v1438 = vmul.f32 %v1400, %v1400
      %v1439 = vmul.f32 %v1401, %v1401
      %v1440 = vmul.f32 %v1402, %v1402
      %v1441 = vmul.f32 %v1403, %v1403
      %v1442 = vmul.f32 %v1404, %v1404
      %v1443 = vmul.f32 %v1405, %v1405
      %v1444 = vmul.f32 %v1406, %v1406
      %v1445 = vmul.f32 %v1407, %v1407
      %v1446 = vsel %vm1408, %v1438, 0.0
      %v1447 = vsel %vm1408, %v1439, 0.0
      %v1448 = vadd.f32 %v1446, %v1447
      %v1449 = vsel %vm1408, %v1440, 0.0
      %v1450 = vadd.f32 %v1448, %v1449
      %v1451 = vsel %vm1408, %v1441, 0.0
      %v1452 = vadd.f32 %v1450, %v1451
      %v1453 = vsel %vm1408, %v1442, 0.0
      %v1454 = vadd.f32 %v1452, %v1453
      %v1455 = vsel %vm1408, %v1443, 0.0
      %v1456 = vadd.f32 %v1454, %v1455
      %v1457 = vsel %vm1408, %v1444, 0.0
      %v1458 = vadd.f32 %v1456, %v1457
      %v1459 = vsel %vm1408, %v1445, 0.0
      %v1460 = vadd.f32 %v1458, %v1459
      %v1461 = vrot.slane %v1460, 4
      %v1462 = vadd.f32 %v1460, %v1461
      %v1463 = vrot.slane %v1462, 2
      %v1464 = vadd.f32 %v1462, %v1463
      %v1465 = vrot.slane %v1464, 1
      %v1466 = vadd.f32 %v1464, %v1465
      %vm1467 = vcmask 1040384
      %v1468 = vsel %vm1467, %v1437, %v1466
      %vm1469 = vcmask 58368
      %1470 = vst.msk [vmem:[%s262] sm:$0x3] %vm1469, %v1468
      %p1471 = scmp.lt.s32.totalorder %s18, 1
      %s1472 = scalar_select %p1471, %s18, 1
      %s1473 = smul.addr %s1472, 8
      %s1474 = smul.addr %s1473, 8
      %s1475 = scalar_lea.vmem %s5, %s1474
      %p1476 = scmp.lt.s32.totalorder %s18, 1
      %s1477 = scalar_select %p1476, %s18, 1
      %s1478 = smul.addr %s1477, 2
      %s1479 = scalar_lea.vmem %s6, %s1478
      // Predicated region
      $region41: #{wide_dropout_block_forward.2} parent=39 // pred_check
        %p1480 = pneg %p146
      $region42: #{wide_dropout_block_forward.2} parent=39 // pred_check_branch
        %1482 = sbr.rel (%p1480) target = $region44
      $region43: #{wide_dropout_block_forward.2} parent=39 // pred_region
        _
      $region44: #{wide_dropout_block_forward.2} parent=39 // pred_fallthru
        _
      // Predicated region
      $region45: #{wide_dropout_block_forward.2} parent=39 // pred_check
        %p1483 = pneg %p172
      $region46: #{wide_dropout_block_forward.2} parent=39 // pred_check_branch
        %1485 = sbr.rel (%p1483) target = $region48
      $region47: #{wide_dropout_block_forward.2} parent=39 // pred_region
        _
      $region48: #{wide_dropout_block_forward.2} parent=39 // pred_fallthru
        _
    $region40: #{wide_dropout_block_forward.2} parent=5 // pred_fallthru
      _
    %p1486 = scmp.le.s32.totalorder 2, %s13
    // Predicated region
    $region49: #{wide_dropout_block_forward.2} parent=5 // pred_check
      %p1487 = pneg %p1486
    $region50: #{wide_dropout_block_forward.2} parent=5 // pred_check_branch
      %1489 = sbr.rel (%p1487) target = $region52
    $region51: #{wide_dropout_block_forward.2} parent=5 // pred_region
      %s1490 = ssub.s32 %s13, 2
      // Predicated region
      $region53: #{wide_dropout_block_forward.2} parent=51 // pred_check
        %p1491 = pneg %p152
      $region54: #{wide_dropout_block_forward.2} parent=51 // pred_check_branch
        %1493 = sbr.rel (%p1491) target = $region56
      $region55: #{wide_dropout_block_forward.2} parent=51 // pred_region
        %p1494 = scmp.lt.s32.totalorder %s19, 1
        %s1495 = scalar_select %p1494, %s19, 1
        %s1496 = smul.addr %s1495, 8
        %s1497 = smul.addr %s1496, 8
        %s1498 = scalar_lea.vmem %s5, %s1497
      $region56: #{wide_dropout_block_forward.2} parent=51 // pred_fallthru
        _
      // Predicated region
      $region57: #{wide_dropout_block_forward.2} parent=51 // pred_check
        %p1499 = pneg %p178
      $region58: #{wide_dropout_block_forward.2} parent=51 // pred_check_branch
        %1501 = sbr.rel (%p1499) target = $region60
      $region59: #{wide_dropout_block_forward.2} parent=51 // pred_region
        %p1502 = scmp.lt.s32.totalorder %s19, 1
        %s1503 = scalar_select %p1502, %s19, 1
        %s1504 = smul.addr %s1503, 2
        %s1505 = scalar_lea.vmem %s6, %s1504
      $region60: #{wide_dropout_block_forward.2} parent=51 // pred_fallthru
        _
    $region52: #{wide_dropout_block_forward.2} parent=5 // pred_fallthru
      _
  $region6: #{wide_dropout_block_forward.2} parent=0 // loop_footer
    %s17 = sadd.s32 1, %s13
  $region7: #{wide_dropout_block_forward.2} parent=0 // loop_footer_branch
    %12 = sbr.rel target = $region3
  $region8: #{wide_dropout_block_forward.2} parent=0 // loop_exit
    _

// kernel: wide_dropout_block_forward.3
$region0: #{wide_dropout_block_forward.3}
  #allocation0 [shape = 'u32[]', space=smem, size = 0x4, offset = 0x4, fixed_abs, tag = 'smem constant byte address 0x4 - core index']
  #allocation1 [shape = 'u32[144,128]{1,0:T(1,128)}', space=vmem, size = 0x12000, scoped, tag = 'internal scratch']
  #allocation2 [shape = 'f32[1,10,10,8]{3,2,1,0:T(8,128)}', space=vmem, size = 0x14000, scoped, tag = 'scratch operand']
  #allocation3 [shape = 'f32[1,4,9,9,4]{4,3,2,1,0:T(8,128)}', space=vmem, size = 0x48000, scoped, tag = 'scratch operand']
  %s0 = inlined_call_operand.vmem [shape: f32[2,8,8,8], index: 0, kind: input, shape index: {}]
  %s1 = inlined_call_operand.vmem [shape: f32[2,4,8,8,4], index: 1, kind: input, shape index: {}]
  %s2 = inlined_call_operand.vmem [shape: f32[1,8], index: 2, kind: input, shape index: {}]
  %s3 = inlined_call_operand.vmem [shape: f32[1,8], index: 3, kind: input, shape index: {}]
  %s4 = inlined_call_operand.vmem [shape: bf16[9,8,8], index: 4, kind: input, shape index: {}]
  %s5 = inlined_call_operand.vmem [shape: f32[1,8], index: 5, kind: input, shape index: {}]
  %s6 = inlined_call_operand.vmem [shape: bf16[9,4,8], index: 6, kind: input, shape index: {}]
  %s7 = inlined_call_operand.vmem [shape: f32[1,8], index: 7, kind: input, shape index: {}]
  %s8 = inlined_call_operand.vmem [shape: f32[2,8,8,8], index: 8, kind: output, shape index: {}]
  %s9 = sld [smem:[#allocation0]]
  $region65: #{wide_dropout_block_forward.3} parent=0
    _
  %s11 = ssub.s32 1, %s9
  %s12 = scalar_select 0, %s11, %s9
  loop: start=0, step=1, limit=4
  $region2: #{wide_dropout_block_forward.3} parent=0 // loop_pre_header
    _
  $region3: #{wide_dropout_block_forward.3} parent=0 // loop_header
    %s14 = sphi 0, %s18
    %p15 = scmp.ge.s32.totalorder %s14, 4
    %s24 = sphi 0, %s26
    %s27 = sphi 0, %s24
    %s28 = sphi 0, %s27
    %s44 = sphi 0, %s28
    %s50 = sphi 0, %s52
    %s53 = sphi 0, %s50
    %s54 = sphi 0, %s53
    %s70 = sphi 0, %s54
    %s74 = sphi 0, %s74
    %s76 = sphi 0, %s74
    %s77 = sphi 0, %s76
    %s91 = sphi 0, %s77
    %s95 = sphi 0, %s95
    %s97 = sphi 0, %s95
    %s98 = sphi 0, %s97
    %s112 = sphi 0, %s98
    %s116 = sphi 0, %s116
    %s118 = sphi 0, %s116
    %s119 = sphi 0, %s118
    %s133 = sphi 0, %s119
    %s137 = sphi 0, %s137
    %s139 = sphi 0, %s137
    %s140 = sphi 0, %s139
    %s154 = sphi 0, %s140
    %s158 = sphi 0, %s158
    %s160 = sphi 0, %s158
    %s161 = sphi 0, %s160
    %s175 = sphi 0, %s161
    %s179 = sphi 0, %s179
    %s181 = sphi 0, %s179
    %s182 = sphi 0, %s181
    %s196 = sphi 0, %s182
    %s202 = sphi 0, %s204
    %s205 = sphi 0, %s202
    %s206 = sphi 0, %s205
    %s222 = sphi 0, %s206
  $region4: #{wide_dropout_block_forward.3} parent=0 // loop_header_branch
    %17 = sbr.rel (%p15) target = $region8
  $region5: #{wide_dropout_block_forward.3} parent=0 // loop_body
    %s19 = ssub.s32 %s14, 1
    %s20 = ssub.s32 %s14, 2
    %s21 = sadd.s32 %s14, 1
    %s22 = ssub.s32 %s14, %s21
    %p23 = scmp.eq.s32.totalorder %s22, 0
    %s25 = sadd.s32 %s24, 1
    %s26 = scalar_select %p23, %s24, %s25
    %p29 = pneg %p23
    %p30 = scmp.eq.s32.totalorder %s14, 1
    %p31 = por %p29, %p30
    %p32 = scmp.ne.s32.totalorder %s24, %s27
    %p33 = scmp.eq.s32.totalorder %s14, 0
    %p34 = por %p32, %p33
    %p35 = scmp.ne.s32.totalorder %s24, %s27
    %p36 = scmp.eq.s32.totalorder %s19, 1
    %p37 = por %p35, %p36
    %p38 = scmp.ne.s32.totalorder %s27, %s28
    %p39 = scmp.eq.s32.totalorder %s19, 0
    %p40 = por %p38, %p39
    %p41 = scmp.ne.s32.totalorder %s27, %s28
    %p42 = scmp.eq.s32.totalorder %s20, 1
    %p43 = por %p41, %p42
    %p45 = scmp.ne.s32.totalorder %s28, %s44
    %p46 = scmp.eq.s32.totalorder %s20, 0
    %p47 = por %p45, %p46
    %s48 = ssub.s32 %s14, %s21
    %p49 = scmp.eq.s32.totalorder %s48, 0
    %s51 = sadd.s32 %s50, 1
    %s52 = scalar_select %p49, %s50, %s51
    %p55 = pneg %p49
    %p56 = scmp.eq.s32.totalorder %s14, 1
    %p57 = por %p55, %p56
    %p58 = scmp.ne.s32.totalorder %s50, %s53
    %p59 = scmp.eq.s32.totalorder %s14, 0
    %p60 = por %p58, %p59
    %p61 = scmp.ne.s32.totalorder %s50, %s53
    %p62 = scmp.eq.s32.totalorder %s19, 1
    %p63 = por %p61, %p62
    %p64 = scmp.ne.s32.totalorder %s53, %s54
    %p65 = scmp.eq.s32.totalorder %s19, 0
    %p66 = por %p64, %p65
    %p67 = scmp.ne.s32.totalorder %s53, %s54
    %p68 = scmp.eq.s32.totalorder %s20, 1
    %p69 = por %p67, %p68
    %p71 = scmp.ne.s32.totalorder %s54, %s70
    %p72 = scmp.eq.s32.totalorder %s20, 0
    %p73 = por %p71, %p72
    %s75 = sadd.s32 %s74, 1
    %p78 = scmp.eq.s32.totalorder %s14, 1
    %p79 = scmp.ne.s32.totalorder %s74, %s76
    %p80 = scmp.eq.s32.totalorder %s14, 0
    %p81 = por %p79, %p80
    %p82 = scmp.ne.s32.totalorder %s74, %s76
    %p83 = scmp.eq.s32.totalorder %s19, 1
    %p84 = por %p82, %p83
    %p85 = scmp.ne.s32.totalorder %s76, %s77
    %p86 = scmp.eq.s32.totalorder %s19, 0
    %p87 = por %p85, %p86
    %p88 = scmp.ne.s32.totalorder %s76, %s77
    %p89 = scmp.eq.s32.totalorder %s20, 1
    %p90 = por %p88, %p89
    %p92 = scmp.ne.s32.totalorder %s77, %s91
    %p93 = scmp.eq.s32.totalorder %s20, 0
    %p94 = por %p92, %p93
    %s96 = sadd.s32 %s95, 1
    %p99 = scmp.eq.s32.totalorder %s14, 1
    %p100 = scmp.ne.s32.totalorder %s95, %s97
    %p101 = scmp.eq.s32.totalorder %s14, 0
    %p102 = por %p100, %p101
    %p103 = scmp.ne.s32.totalorder %s95, %s97
    %p104 = scmp.eq.s32.totalorder %s19, 1
    %p105 = por %p103, %p104
    %p106 = scmp.ne.s32.totalorder %s97, %s98
    %p107 = scmp.eq.s32.totalorder %s19, 0
    %p108 = por %p106, %p107
    %p109 = scmp.ne.s32.totalorder %s97, %s98
    %p110 = scmp.eq.s32.totalorder %s20, 1
    %p111 = por %p109, %p110
    %p113 = scmp.ne.s32.totalorder %s98, %s112
    %p114 = scmp.eq.s32.totalorder %s20, 0
    %p115 = por %p113, %p114
    %s117 = sadd.s32 %s116, 1
    %p120 = scmp.eq.s32.totalorder %s14, 1
    %p121 = scmp.ne.s32.totalorder %s116, %s118
    %p122 = scmp.eq.s32.totalorder %s14, 0
    %p123 = por %p121, %p122
    %p124 = scmp.ne.s32.totalorder %s116, %s118
    %p125 = scmp.eq.s32.totalorder %s19, 1
    %p126 = por %p124, %p125
    %p127 = scmp.ne.s32.totalorder %s118, %s119
    %p128 = scmp.eq.s32.totalorder %s19, 0
    %p129 = por %p127, %p128
    %p130 = scmp.ne.s32.totalorder %s118, %s119
    %p131 = scmp.eq.s32.totalorder %s20, 1
    %p132 = por %p130, %p131
    %p134 = scmp.ne.s32.totalorder %s119, %s133
    %p135 = scmp.eq.s32.totalorder %s20, 0
    %p136 = por %p134, %p135
    %s138 = sadd.s32 %s137, 1
    %p141 = scmp.eq.s32.totalorder %s14, 1
    %p142 = scmp.ne.s32.totalorder %s137, %s139
    %p143 = scmp.eq.s32.totalorder %s14, 0
    %p144 = por %p142, %p143
    %p145 = scmp.ne.s32.totalorder %s137, %s139
    %p146 = scmp.eq.s32.totalorder %s19, 1
    %p147 = por %p145, %p146
    %p148 = scmp.ne.s32.totalorder %s139, %s140
    %p149 = scmp.eq.s32.totalorder %s19, 0
    %p150 = por %p148, %p149
    %p151 = scmp.ne.s32.totalorder %s139, %s140
    %p152 = scmp.eq.s32.totalorder %s20, 1
    %p153 = por %p151, %p152
    %p155 = scmp.ne.s32.totalorder %s140, %s154
    %p156 = scmp.eq.s32.totalorder %s20, 0
    %p157 = por %p155, %p156
    %s159 = sadd.s32 %s158, 1
    %p162 = scmp.eq.s32.totalorder %s14, 1
    %p163 = scmp.ne.s32.totalorder %s158, %s160
    %p164 = scmp.eq.s32.totalorder %s14, 0
    %p165 = por %p163, %p164
    %p166 = scmp.ne.s32.totalorder %s158, %s160
    %p167 = scmp.eq.s32.totalorder %s19, 1
    %p168 = por %p166, %p167
    %p169 = scmp.ne.s32.totalorder %s160, %s161
    %p170 = scmp.eq.s32.totalorder %s19, 0
    %p171 = por %p169, %p170
    %p172 = scmp.ne.s32.totalorder %s160, %s161
    %p173 = scmp.eq.s32.totalorder %s20, 1
    %p174 = por %p172, %p173
    %p176 = scmp.ne.s32.totalorder %s161, %s175
    %p177 = scmp.eq.s32.totalorder %s20, 0
    %p178 = por %p176, %p177
    %s180 = sadd.s32 %s179, 1
    %p183 = scmp.eq.s32.totalorder %s14, 1
    %p184 = scmp.ne.s32.totalorder %s179, %s181
    %p185 = scmp.eq.s32.totalorder %s14, 0
    %p186 = por %p184, %p185
    %p187 = scmp.ne.s32.totalorder %s179, %s181
    %p188 = scmp.eq.s32.totalorder %s19, 1
    %p189 = por %p187, %p188
    %p190 = scmp.ne.s32.totalorder %s181, %s182
    %p191 = scmp.eq.s32.totalorder %s19, 0
    %p192 = por %p190, %p191
    %p193 = scmp.ne.s32.totalorder %s181, %s182
    %p194 = scmp.eq.s32.totalorder %s20, 1
    %p195 = por %p193, %p194
    %p197 = scmp.ne.s32.totalorder %s182, %s196
    %p198 = scmp.eq.s32.totalorder %s20, 0
    %p199 = por %p197, %p198
    %s200 = ssub.s32 %s14, %s21
    %p201 = scmp.eq.s32.totalorder %s200, 0
    %s203 = sadd.s32 %s202, 1
    %s204 = scalar_select %p201, %s202, %s203
    %p207 = pneg %p201
    %p208 = scmp.eq.s32.totalorder %s14, 1
    %p209 = por %p207, %p208
    %p210 = scmp.ne.s32.totalorder %s202, %s205
    %p211 = scmp.eq.s32.totalorder %s14, 0
    %p212 = por %p210, %p211
    %p213 = scmp.ne.s32.totalorder %s202, %s205
    %p214 = scmp.eq.s32.totalorder %s19, 1
    %p215 = por %p213, %p214
    %p216 = scmp.ne.s32.totalorder %s205, %s206
    %p217 = scmp.eq.s32.totalorder %s19, 0
    %p218 = por %p216, %p217
    %p219 = scmp.ne.s32.totalorder %s205, %s206
    %p220 = scmp.eq.s32.totalorder %s20, 1
    %p221 = por %p219, %p220
    %p223 = scmp.ne.s32.totalorder %s206, %s222
    %p224 = scmp.eq.s32.totalorder %s20, 0
    %p225 = por %p223, %p224
    %p226 = scmp.le.s32.totalorder 1, %s14
    %p227 = scmp.lt.s32.totalorder %s14, 3
    %p228 = pnand %p226, %p227
    %p229 = pneg %p228
    // Predicated region
    $region9: #{wide_dropout_block_forward.3} parent=5 // pred_check
      _
    $region10: #{wide_dropout_block_forward.3} parent=5 // pred_check_branch
      %231 = sbr.rel (%p228) target = $region12
    $region11: #{wide_dropout_block_forward.3} parent=5 // pred_region
      %s232 = ssub.s32 %s14, 1
      // Predicated region
      $region13: #{wide_dropout_block_forward.3} parent=11 // pred_check
        %p233 = pneg %p87
      $region14: #{wide_dropout_block_forward.3} parent=11 // pred_check_branch
        %235 = sbr.rel (%p233) target = $region16
      $region15: #{wide_dropout_block_forward.3} parent=11 // pred_region
        _
      $region16: #{wide_dropout_block_forward.3} parent=11 // pred_fallthru
        _
      // Predicated region
      $region17: #{wide_dropout_block_forward.3} parent=11 // pred_check
        %p236 = pneg %p108
      $region18: #{wide_dropout_block_forward.3} parent=11 // pred_check_branch
        %238 = sbr.rel (%p236) target = $region20
      $region19: #{wide_dropout_block_forward.3} parent=11 // pred_region
        _
      $region20: #{wide_dropout_block_forward.3} parent=11 // pred_fallthru
        _
      // Predicated region
      $region21: #{wide_dropout_block_forward.3} parent=11 // pred_check
        %p239 = pneg %p129
      $region22: #{wide_dropout_block_forward.3} parent=11 // pred_check_branch
        %241 = sbr.rel (%p239) target = $region24
      $region23: #{wide_dropout_block_forward.3} parent=11 // pred_region
        _
      $region24: #{wide_dropout_block_forward.3} parent=11 // pred_fallthru
        _
      // Predicated region
      $region25: #{wide_dropout_block_forward.3} parent=11 // pred_check
        %p242 = pneg %p150
      $region26: #{wide_dropout_block_forward.3} parent=11 // pred_check_branch
        %244 = sbr.rel (%p242) target = $region28
      $region27: #{wide_dropout_block_forward.3} parent=11 // pred_region
        _
      $region28: #{wide_dropout_block_forward.3} parent=11 // pred_fallthru
        _
      // Predicated region
      $region29: #{wide_dropout_block_forward.3} parent=11 // pred_check
        %p245 = pneg %p171
      $region30: #{wide_dropout_block_forward.3} parent=11 // pred_check_branch
        %247 = sbr.rel (%p245) target = $region32
      $region31: #{wide_dropout_block_forward.3} parent=11 // pred_region
        _
      $region32: #{wide_dropout_block_forward.3} parent=11 // pred_fallthru
        _
      // Predicated region
      $region33: #{wide_dropout_block_forward.3} parent=11 // pred_check
        %p248 = pneg %p192
      $region34: #{wide_dropout_block_forward.3} parent=11 // pred_check_branch
        %250 = sbr.rel (%p248) target = $region36
      $region35: #{wide_dropout_block_forward.3} parent=11 // pred_region
        _
      $region36: #{wide_dropout_block_forward.3} parent=11 // pred_fallthru
        _
    $region12: #{wide_dropout_block_forward.3} parent=5 // pred_fallthru
      _
    %p251 = scmp.lt.s32.totalorder %s14, 2
    // Predicated region
    $region37: #{wide_dropout_block_forward.3} parent=5 // pred_check
      %p252 = pneg %p251
    $region38: #{wide_dropout_block_forward.3} parent=5 // pred_check_branch
      %254 = sbr.rel (%p252) target = $region40
    $region39: #{wide_dropout_block_forward.3} parent=5 // pred_region
      // Predicated region
      $region41: #{wide_dropout_block_forward.3} parent=39 // pred_check
        %p255 = pneg %p34
      $region42: #{wide_dropout_block_forward.3} parent=39 // pred_check_branch
        %257 = sbr.rel (%p255) target = $region44
      $region43: #{wide_dropout_block_forward.3} parent=39 // pred_region
        %p258 = scmp.lt.s32.totalorder %s14, 1
        %s259 = scalar_select %p258, %s14, 1
        %s260 = smul.addr %s259, 8
        %s261 = smul.addr %s260, 8
        %s262 = scalar_lea.vmem %s0, %s261
      $region44: #{wide_dropout_block_forward.3} parent=39 // pred_fallthru
        _
      // Predicated region
      $region45: #{wide_dropout_block_forward.3} parent=39 // pred_check
        %p263 = pneg %p60
      $region46: #{wide_dropout_block_forward.3} parent=39 // pred_check_branch
        %265 = sbr.rel (%p263) target = $region48
      $region47: #{wide_dropout_block_forward.3} parent=39 // pred_region
        %p266 = scmp.lt.s32.totalorder %s14, 1
        %s267 = scalar_select %p266, %s14, 1
        %s268 = smul.addr %s267, 32
        %s269 = smul.addr %s268, 8
        %s270 = scalar_lea.vmem %s1, %s269
      $region48: #{wide_dropout_block_forward.3} parent=39 // pred_fallthru
        _
    $region40: #{wide_dropout_block_forward.3} parent=5 // pred_fallthru
      _
    %p271 = scmp.le.s32.totalorder 1, %s14
    %p272 = scmp.lt.s32.totalorder %s14, 3
    %p273 = pnand %p271, %p272
    %p274 = pneg %p273
    // Predicated region
    $region49: #{wide_dropout_block_forward.3} parent=5 // pred_check
      _
    $region50: #{wide_dropout_block_forward.3} parent=5 // pred_check_branch
      %276 = sbr.rel (%p273) target = $region52
    $region51: #{wide_dropout_block_forward.3} parent=5 // pred_region
      %s277 = ssub.s32 %s14, 1
      %p278 = scmp.lt.s32.totalorder %s19, 1
      %s279 = scalar_select %p278, %s19, 1
      %s280 = smul.addr %s279, 8
      %s281 = smul.addr %s280, 8
      %s282 = scalar_lea.vmem %s0, %s281
      %p283 = pneg %p40
      %p284 = pneg %p37
      %p285 = scmp.lt.s32.totalorder %s19, 1
      %s286 = scalar_select %p285, %s19, 1
      %s287 = smul.addr %s286, 32
      %s288 = smul.addr %s287, 8
      %s289 = scalar_lea.vmem %s1, %s288
      %p290 = pneg %p66
      %p291 = pneg %p63
      %p292 = pneg %p87
      %p293 = pneg %p84
      %p294 = pneg %p108
      %p295 = pneg %p105
      %p296 = pneg %p129
      %p297 = pneg %p126
      %p298 = pneg %p150
      %p299 = pneg %p147
      %p300 = pneg %p171
      %p301 = pneg %p168
      %p302 = pneg %p192
      %p303 = pneg %p189
      %p304 = pneg %p218
      %p305 = pneg %p215
      %p306 = scmp.lt.s32.totalorder %s19, 1
      %s307 = scalar_select %p306, %s19, 1
      %s308 = smul.addr %s307, 8
      %s309 = smul.addr %s308, 8
      %s310 = scalar_lea.vmem %s8, %s309
      %p311 = scmp.lt.s32.totalorder %s19, 1
      %s312 = scalar_select %p311, %s19, 1
      %s313 = smul.addr %s312, 8
      %s314 = smul.addr %s313, 8
      %s315 = scalar_lea.vmem %s0, %s314
      %p316 = scmp.lt.s32.totalorder %s19, 1
      %s317 = scalar_select %p316, %s19, 1
      %s318 = smul.addr %s317, 32
      %s319 = smul.addr %s318, 8
      %s320 = scalar_lea.vmem %s1, %s319
      %p321 = scmp.lt.s32.totalorder %s19, 1
      %s322 = scalar_select %p321, %s19, 1
      %s323 = smul.addr %s322, 8
      %s324 = smul.addr %s323, 8
      %s325 = scalar_lea.vmem %s8, %s324
      %v327 = vld [vmem:[%s315] sm:$0xff]
      %v328 = vld [vmem:[%s315 + $0x8] sm:$0xff]
      %v329 = vld [vmem:[%s315 + $0x10] sm:$0xff]
      %v330 = vld [vmem:[%s315 + $0x18] sm:$0xff]
      %v331 = vld [vmem:[%s315 + $0x20] sm:$0xff]
      %v332 = vld [vmem:[%s315 + $0x28] sm:$0xff]
      %v333 = vld [vmem:[%s315 + $0x30] sm:$0xff]
      %v334 = vld [vmem:[%s315 + $0x38] sm:$0xff]
      %v335 = vld [vmem:[%s2] sm:$0x1]
      %v337 = vlaneseq
      %v338 = vshrl.u32 %v337, 7
      %v339 = vsub.s32 0, %v338
      %v340 = vrot.slane %v335, %v339
      %v342 = vmul.f32 %v327, %v340
      %v343 = vmul.f32 %v328, %v340
      %v344 = vmul.f32 %v329, %v340
      %v345 = vmul.f32 %v330, %v340
      %v346 = vmul.f32 %v331, %v340
      %v347 = vmul.f32 %v332, %v340
      %v348 = vmul.f32 %v333, %v340
      %v349 = vmul.f32 %v334, %v340
      %v350 = vld [vmem:[%s3] sm:$0x1]
      %v352 = vlaneseq
      %v353 = vshrl.u32 %v352, 7
      %v354 = vsub.s32 0, %v353
      %v355 = vrot.slane %v350, %v354
      %v357 = vadd.f32 %v342, %v355
      %v358 = vadd.f32 %v343, %v355
      %v359 = vadd.f32 %v344, %v355
      %v360 = vadd.f32 %v345, %v355
      %v361 = vadd.f32 %v346, %v355
      %v362 = vadd.f32 %v347, %v355
      %v363 = vadd.f32 %v348, %v355
      %v364 = vadd.f32 %v349, %v355
      %v365 = vmax.f32 %v357, 0.0
      %v366 = vmax.f32 %v358, 0.0
      %v367 = vmax.f32 %v359, 0.0
      %v368 = vmax.f32 %v360, 0.0
      %v369 = vmax.f32 %v361, 0.0
      %v370 = vmax.f32 %v362, 0.0
      %v371 = vmax.f32 %v363, 0.0
      %v372 = vmax.f32 %v364, 0.0
      %vm373 = vcmask 64512
      %374 = vst.msk [vmem:[#allocation2] sm:$0xff] %vm373, 0.0
      %vm375 = vcmask 58368
      %376 = vst.msk [vmem:[#allocation2 + $0x8] sm:$0x3] %vm375, 0.0
      %s377 = scalar_lea.vmem [#allocation2], 144
      %378 = vst.msk [vmem:[%s377] sm:$0xff] %vm373, 0.0
      %379 = vst.msk [vmem:[%s377 + $0x8] sm:$0x3] %vm375, 0.0
      %vm380 = vcmask 57344
      %381 = vst.msk [vmem:[#allocation2] sm:$0x1] %vm380, 0.0
      %382 = vst.msk [vmem:[#allocation2 + $0x10] sm:$0x1] %vm380, 0.0
      %383 = vst.msk [vmem:[#allocation2 + $0x20] sm:$0x1] %vm380, 0.0
      %384 = vst.msk [vmem:[#allocation2 + $0x30] sm:$0x1] %vm380, 0.0
      %385 = vst.msk [vmem:[#allocation2 + $0x40] sm:$0x1] %vm380, 0.0
      %386 = vst.msk [vmem:[#allocation2 + $0x50] sm:$0x1] %vm380, 0.0
      %387 = vst.msk [vmem:[#allocation2 + $0x60] sm:$0x1] %vm380, 0.0
      %388 = vst.msk [vmem:[#allocation2 + $0x70] sm:$0x1] %vm380, 0.0
      %389 = vst.msk [vmem:[#allocation2 + $0x80] sm:$0x1] %vm380, 0.0
      %390 = vst.msk [vmem:[#allocation2 + $0x90] sm:$0x1] %vm380, 0.0
      %391 = vst.msk [vmem:[#allocation2 + $0x9] sm:$0x1] %vm380, 0.0
      %392 = vst.msk [vmem:[#allocation2 + $0x19] sm:$0x1] %vm380, 0.0
      %393 = vst.msk [vmem:[#allocation2 + $0x29] sm:$0x1] %vm380, 0.0
      %394 = vst.msk [vmem:[#allocation2 + $0x39] sm:$0x1] %vm380, 0.0
      %395 = vst.msk [vmem:[#allocation2 + $0x49] sm:$0x1] %vm380, 0.0
      %396 = vst.msk [vmem:[#allocation2 + $0x59] sm:$0x1] %vm380, 0.0
      %397 = vst.msk [vmem:[#allocation2 + $0x69] sm:$0x1] %vm380, 0.0
      %398 = vst.msk [vmem:[#allocation2 + $0x79] sm:$0x1] %vm380, 0.0
      %399 = vst.msk [vmem:[#allocation2 + $0x89] sm:$0x1] %vm380, 0.0
      %400 = vst.msk [vmem:[#allocation2 + $0x99] sm:$0x1] %vm380, 0.0
      %s401 = scalar_lea.vmem [#allocation2], 16
      %402 = vst.msk [vmem:[%s401 + $0x1] sm:$0xff] %vm373, %v365
      %403 = vst.msk [vmem:[%s401 + $0x11] sm:$0xff] %vm373, %v366
      %404 = vst.msk [vmem:[%s401 + $0x21] sm:$0xff] %vm373, %v367
      %405 = vst.msk [vmem:[%s401 + $0x31] sm:$0xff] %vm373, %v368
      %406 = vst.msk [vmem:[%s401 + $0x41] sm:$0xff] %vm373, %v369
      %407 = vst.msk [vmem:[%s401 + $0x51] sm:$0xff] %vm373, %v370
      %408 = vst.msk [vmem:[%s401 + $0x61] sm:$0xff] %vm373, %v371
      %409 = vst.msk [vmem:[%s401 + $0x71] sm:$0xff] %vm373, %v372
      %v410 = vld [vmem:[#allocation2] sm:$0xff]
      %v411 = vld [vmem:[#allocation2 + $0x10] sm:$0xff]
      %v412 = vld [vmem:[#allocation2 + $0x20] sm:$0xff]
      %v413 = vld [vmem:[#allocation2 + $0x30] sm:$0xff]
      %v414 = vld [vmem:[#allocation2 + $0x40] sm:$0xff]
      %v415 = vld [vmem:[#allocation2 + $0x50] sm:$0xff]
      %v416 = vld [vmem:[#allocation2 + $0x60] sm:$0xff]
      %v417 = vld [vmem:[#allocation2 + $0x70] sm:$0xff]
      %v418 = vpack.c.bf16 %v411, %v410
      %v419 = vpack.c.bf16 %v413, %v412
      %v420 = vpack.c.bf16 %v415, %v414
      %v421 = vpack.c.bf16 %v417, %v416
      %v422 = vld [vmem:[%s4] sm:$0xf]
      %v423 = vld [vmem:[#allocation2 + $0x1] sm:$0xff]
      %v424 = vld [vmem:[#allocation2 + $0x11] sm:$0xff]
      %v425 = vld [vmem:[#allocation2 + $0x21] sm:$0xff]
      %v426 = vld [vmem:[#allocation2 + $0x31] sm:$0xff]
      %v427 = vld [vmem:[#allocation2 + $0x41] sm:$0xff]
      %v428 = vld [vmem:[#allocation2 + $0x51] sm:$0xff]
      %v429 = vld [vmem:[#allocation2 + $0x61] sm:$0xff]
      %v430 = vld [vmem:[#allocation2 + $0x71] sm:$0xff]
      %v431 = vpack.c.bf16 %v424, %v423
      %v432 = vpack.c.bf16 %v426, %v425
      %v433 = vpack.c.bf16 %v428, %v427
      %v434 = vpack.c.bf16 %v430, %v429
      %s435 = scalar_lea.vmem %s4, 4
      %v436 = vld [vmem:[%s435] sm:$0xf]
      %v438 = vsel %vm373, %v431, 0
      %v441 = vsel %vm373, %v432, 0
      %v444 = vsel %vm373, %v433, 0
      %v447 = vsel %vm373, %v434, 0
      %vm449 = vcmask 1043456
      %v451 = vsel %vm449, %v436, 0
      %453 = vmatprep.subr.bf16.mxu0 0
      %454 = vmatpush1.bf16.msra.mxu0 %v451
      %455 = vmatprep.subr.bf16.mxu0 0
      %456 = vmatpush1.bf16.msra.mxu0 0
      %457 = vmatprep.subr.bf16.mxu0 0
      %458 = vmatpush1.bf16.msra.mxu0 0
      %459 = vmatprep.subr.bf16.mxu0 0
      %460 = vmatpush1.bf16.msra.mxu0 0
      %461 = vmatprep.subr.bf16.mxu0 0
      %462 = vmatpush1.bf16.msra.mxu0 0
      %463 = vmatprep.subr.bf16.mxu0 0
      %464 = vmatpush1.bf16.msra.mxu0 0
      %465 = vmatprep.subr.bf16.mxu0 0
      %466 = vmatpush1.bf16.msra.mxu0 0
      %467 = vmatprep.subr.bf16.mxu0 0
      %468 = vmatpush1.bf16.msra.mxu0 0
      %469 = vmatprep.subr.bf16.mxu0 0
      %470 = vmatpush1.bf16.msra.mxu0 0
      %471 = vmatprep.subr.bf16.mxu0 0
      %472 = vmatpush1.bf16.msra.mxu0 0
      %473 = vmatprep.subr.bf16.mxu0 0
      %474 = vmatpush1.bf16.msra.mxu0 0
      %475 = vmatprep.subr.bf16.mxu0 0
      %476 = vmatpush1.bf16.msra.mxu0 0
      %477 = vmatprep.subr.bf16.mxu0 0
      %478 = vmatpush1.bf16.msra.mxu0 0
      %479 = vmatprep.subr.bf16.mxu0 0
      %480 = vmatpush1.bf16.msra.mxu0 0
      %481 = vmatprep.subr.bf16.mxu0 0
      %482 = vmatpush1.bf16.msra.mxu0 0
      %483 = vmatprep.subr.bf16.mxu0 0
      %484 = vmatpush1.bf16.msra.mxu0 0
      %485 = vmatprep.mubr.bf16.mxu0 0
      %486 = vmatmul.mubr.bf16.gmra.mrb[0].mxu0 %v438
      %v487 = vpop.f32.mrb[0].mxu0
      %v488 = vadd.f32 0.0, %v487
      %v489 = vpop.f32.mrb[0].mxu0
      %v490 = vpop.f32.mrb[0].mxu0
      %v491 = vadd.f32 0.0, %v490
      %v492 = vpop.f32.mrb[0].mxu0
      %493 = vmatprep.mubr.bf16.mxu0 0
      %494 = vmatmul.mubr.bf16.gmra.mrb[0].mxu0 %v441
      %v495 = vpop.f32.mrb[0].mxu0
      %v496 = vadd.f32 0.0, %v495
      %v497 = vpop.f32.mrb[0].mxu0
      %v498 = vpop.f32.mrb[0].mxu0
      %v499 = vadd.f32 0.0, %v498
      %v500 = vpop.f32.mrb[0].mxu0
      %501 = vmatprep.mubr.bf16.mxu0 0
      %502 = vmatmul.mubr.bf16.gmra.mrb[0].mxu0 %v444
      %v503 = vpop.f32.mrb[0].mxu0
      %v504 = vadd.f32 0.0, %v503
      %v505 = vpop.f32.mrb[0].mxu0
      %v506 = vpop.f32.mrb[0].mxu0
      %v507 = vadd.f32 0.0, %v506
      %v508 = vpop.f32.mrb[0].mxu0
      %509 = vmatprep.mubr.bf16.mxu0 0
      %510 = vmatmul.mubr.bf16.gmra.mrb[0].mxu0 %v447
      %v511 = vpop.f32.mrb[0].mxu0
      %v512 = vadd.f32 0.0, %v511
      %v513 = vpop.f32.mrb[0].mxu0
      %v514 = vpop.f32.mrb[0].mxu0
      %v515 = vadd.f32 0.0, %v514
      %v516 = vpop.f32.mrb[0].mxu0
      %517 = vdwg.mxu0
      %v519 = vsel %vm373, %v418, 0
      %v522 = vsel %vm373, %v419, 0
      %v525 = vsel %vm373, %v420, 0
      %v528 = vsel %vm373, %v421, 0
      %v531 = vsel %vm449, %v422, 0
      %533 = vmatprep.subr.bf16.mxu0 0
      %534 = vmatpush1.bf16.msra.mxu0 %v531
      %535 = vmatprep.subr.bf16.mxu0 0
      %536 = vmatpush1.bf16.msra.mxu0 0
      %537 = vmatprep.subr.bf16.mxu0 0
      %538 = vmatpush1.bf16.msra.mxu0 0
      %539 = vmatprep.subr.bf16.mxu0 0
      %540 = vmatpush1.bf16.msra.mxu0 0
      %541 = vmatprep.subr.bf16.mxu0 0
      %542 = vmatpush1.bf16.msra.mxu0 0
      %543 = vmatprep.subr.bf16.mxu0 0
      %544 = vmatpush1.bf16.msra.mxu0 0
      %545 = vmatprep.subr.bf16.mxu0 0
      %546 = vmatpush1.bf16.msra.mxu0 0
      %547 = vmatprep.subr.bf16.mxu0 0
      %548 = vmatpush1.bf16.msra.mxu0 0
      %549 = vmatprep.subr.bf16.mxu0 0
      %550 = vmatpush1.bf16.msra.mxu0 0
      %551 = vmatprep.subr.bf16.mxu0 0
      %552 = vmatpush1.bf16.msra.mxu0 0
      %553 = vmatprep.subr.bf16.mxu0 0
      %554 = vmatpush1.bf16.msra.mxu0 0
      %555 = vmatprep.subr.bf16.mxu0 0
      %556 = vmatpush1.bf16.msra.mxu0 0
      %557 = vmatprep.subr.bf16.mxu0 0
      %558 = vmatpush1.bf16.msra.mxu0 0
      %559 = vmatprep.subr.bf16.mxu0 0
      %560 = vmatpush1.bf16.msra.mxu0 0
      %561 = vmatprep.subr.bf16.mxu0 0
      %562 = vmatpush1.bf16.msra.mxu0 0
      %563 = vmatprep.subr.bf16.mxu0 0
      %564 = vmatpush1.bf16.msra.mxu0 0
      %565 = vmatprep.mubr.bf16.mxu0 0
      %566 = vmatmul.mubr.bf16.gmra.mrb[0].mxu0 %v519
      %v567 = vpop.f32.mrb[0].mxu0
      %v568 = vadd.f32 %v488, %v567
      %v569 = vpop.f32.mrb[0].mxu0
      %v570 = vpop.f32.mrb[0].mxu0
      %v571 = vadd.f32 %v491, %v570
      %v572 = vpop.f32.mrb[0].mxu0
      %573 = vmatprep.mubr.bf16.mxu0 0
      %574 = vmatmul.mubr.bf16.gmra.mrb[0].mxu0 %v522
      %v575 = vpop.f32.mrb[0].mxu0
      %v576 = vadd.f32 %v496, %v575
      %v577 = vpop.f32.mrb[0].mxu0
      %v578 = vpop.f32.mrb[0].mxu0
      %v579 = vadd.f32 %v499, %v578
      %v580 = vpop.f32.mrb[0].mxu0
      %581 = vmatprep.mubr.bf16.mxu0 0
      %582 = vmatmul.mubr.bf16.gmra.mrb[0].mxu0 %v525
      %v583 = vpop.f32.mrb[0].mxu0
      %v584 = vadd.f32 %v504, %v583
      %v585 = vpop.f32.mrb[0].mxu0
      %v586 = vpop.f32.mrb[0].mxu0
      %v587 = vadd.f32 %v507, %v586
      %v588 = vpop.f32.mrb[0].mxu0
      %589 = vmatprep.mubr.bf16.mxu0 0
      %590 = vmatmul.mubr.bf16.gmra.mrb[0].mxu0 %v528
      %v591 = vpop.f32.mrb[0].mxu0
      %v592 = vadd.f32 %v512, %v591
      %v593 = vpop.f32.mrb[0].mxu0
      %v594 = vpop.f32.mrb[0].mxu0
      %v595 = vadd.f32 %v515, %v594
      %v596 = vpop.f32.mrb[0].mxu0
      %597 = vdwg.mxu0
      %v598 = vld [vmem:[#allocation2 + $0x2] sm:$0xff]
      %v599 = vld [vmem:[#allocation2 + $0x12] sm:$0xff]
      %v600 = vld [vmem:[#allocation2 + $0x22] sm:$0xff]
      %v601 = vld [vmem:[#allocation2 + $0x32] sm:$0xff]
      %v602 = vld [vmem:[#allocation2 + $0x42] sm:$0xff]
      %v603 = vld [vmem:[#allocation2 + $0x52] sm:$0xff]
      %v604 = vld [vmem:[#allocation2 + $0x62] sm:$0xff]
      %v605 = vld [vmem:[#allocation2 + $0x72] sm:$0xff]
      %v606 = vpack.c.bf16 %v599, %v598
      %v607 = vpack.c.bf16 %v601, %v600
      %v608 = vpack.c.bf16 %v603, %v602
      %v609 = vpack.c.bf16 %v605, %v604
      %s610 = scalar_lea.vmem %s4, 8
      %v611 = vld [vmem:[%s610] sm:$0xf]
      %v613 = vsel %vm373, %v606, 0
      %v616 = vsel %vm373, %v607, 0
      %v619 = vsel %vm373, %v608, 0
      %v622 = vsel %vm373, %v609, 0
      %v625 = vsel %vm449, %v611, 0
      %627 = vmatprep.subr.bf16.mxu0 0
      %628 = vmatpush1.bf16.msra.mxu0 %v625
      %629 = vmatprep.subr.bf16.mxu0 0
      %630 = vmatpush1.bf16.msra.mxu0 0
      %631 = vmatprep.subr.bf16.mxu0 0
      %632 = vmatpush1.bf16.msra.mxu0 0
      %633 = vmatprep.subr.bf16.mxu0 0
      %634 = vmatpush1.bf16.msra.mxu0 0
      %635 = vmatprep.subr.bf16.mxu0 0
      %636 = vmatpush1.bf16.msra.mxu0 0
      %637 = vmatprep.subr.bf16.mxu0 0
      %638 = vmatpush1.bf16.msra.mxu0 0
      %639 = vmatprep.subr.bf16.mxu0 0
      %640 = vmatpush1.bf16.msra.mxu0 0
      %641 = vmatprep.subr.bf16.mxu0 0
      %642 = vmatpush1.bf16.msra.mxu0 0
      %643 = vmatprep.subr.bf16.mxu0 0
      %644 = vmatpush1.bf16.msra.mxu0 0
      %645 = vmatprep.subr.bf16.mxu0 0
      %646 = vmatpush1.bf16.msra.mxu0 0
      %647 = vmatprep.subr.bf16.mxu0 0
      %648 = vmatpush1.bf16.msra.mxu0 0
      %649 = vmatprep.subr.bf16.mxu0 0
      %650 = vmatpush1.bf16.msra.mxu0 0
      %651 = vmatprep.subr.bf16.mxu0 0
      %652 = vmatpush1.bf16.msra.mxu0 0
      %653 = vmatprep.subr.bf16.mxu0 0
      %654 = vmatpush1.bf16.msra.mxu0 0
      %655 = vmatprep.subr.bf16.mxu0 0
      %656 = vmatpush1.bf16.msra.mxu0 0
      %657 = vmatprep.subr.bf16.mxu0 0
      %658 = vmatpush1.bf16.msra.mxu0 0
      %659 = vmatprep.mubr.bf16.mxu0 0
      %660 = vmatmul.mubr.bf16.gmra.mrb[0].mxu0 %v613
      %v661 = vpop.f32.mrb[0].mxu0
      %v662 = vadd.f32 0.0, %v661
      %v663 = vpop.f32.mrb[0].mxu0
      %v664 = vpop.f32.mrb[0].mxu0
      %v665 = vadd.f32 0.0, %v664
      %v666 = vpop.f32.mrb[0].mxu0
      %667 = vmatprep.mubr.bf16.mxu0 0
      %668 = vmatmul.mubr.bf16.gmra.mrb[0].mxu0 %v616
      %v669 = vpop.f32.mrb[0].mxu0
      %v670 = vadd.f32 0.0, %v669
      %v671 = vpop.f32.mrb[0].mxu0
      %v672 = vpop.f32.mrb[0].mxu0
      %v673 = vadd.f32 0.0, %v672
      %v674 = vpop.f32.mrb[0].mxu0
      %675 = vmatprep.mubr.bf16.mxu0 0
      %676 = vmatmul.mubr.bf16.gmra.mrb[0].mxu0 %v619
      %v677 = vpop.f32.mrb[0].mxu0
      %v678 = vadd.f32 0.0, %v677
      %v679 = vpop.f32.mrb[0].mxu0
      %v680 = vpop.f32.mrb[0].mxu0
      %v681 = vadd.f32 0.0, %v680
      %v682 = vpop.f32.mrb[0].mxu0
      %683 = vmatprep.mubr.bf16.mxu0 0
      %684 = vmatmul.mubr.bf16.gmra.mrb[0].mxu0 %v622
      %v685 = vpop.f32.mrb[0].mxu0
      %v686 = vadd.f32 0.0, %v685
      %v687 = vpop.f32.mrb[0].mxu0
      %v688 = vpop.f32.mrb[0].mxu0
      %v689 = vadd.f32 0.0, %v688
      %v690 = vpop.f32.mrb[0].mxu0
      %691 = vdwg.mxu0
      %v692 = vadd.f32 %v568, %v662
      %v693 = vadd.f32 %v571, %v665
      %v694 = vadd.f32 %v576, %v670
      %v695 = vadd.f32 %v579, %v673
      %v696 = vadd.f32 %v584, %v678
      %v697 = vadd.f32 %v587, %v681
      %v698 = vadd.f32 %v592, %v686
      %v699 = vadd.f32 %v595, %v689
      %v700 = vld [vmem:[%s401] sm:$0xff]
      %v701 = vld [vmem:[%s401 + $0x10] sm:$0xff]
      %v702 = vld [vmem:[%s401 + $0x20] sm:$0xff]
      %v703 = vld [vmem:[%s401 + $0x30] sm:$0xff]
      %v704 = vld [vmem:[%s401 + $0x40] sm:$0xff]
      %v705 = vld [vmem:[%s401 + $0x50] sm:$0xff]
      %v706 = vld [vmem:[%s401 + $0x60] sm:$0xff]
      %v707 = vld [vmem:[%s401 + $0x70] sm:$0xff]
      %v708 = vpack.c.bf16 %v701, %v700
      %v709 = vpack.c.bf16 %v703, %v702
      %v710 = vpack.c.bf16 %v705, %v704
      %v711 = vpack.c.bf16 %v707, %v706
      %s712 = scalar_lea.vmem %s4, 12
      %v713 = vld [vmem:[%s712] sm:$0xf]
      %v715 = vsel %vm373, %v708, 0
      %v718 = vsel %vm373, %v709, 0
      %v721 = vsel %vm373, %v710, 0
      %v724 = vsel %vm373, %v711, 0
      %v727 = vsel %vm449, %v713, 0
      %729 = vmatprep.subr.bf16.mxu0 0
      %730 = vmatpush1.bf16.msra.mxu0 %v727
      %731 = vmatprep.subr.bf16.mxu0 0
      %732 = vmatpush1.bf16.msra.mxu0 0
      %733 = vmatprep.subr.bf16.mxu0 0
      %734 = vmatpush1.bf16.msra.mxu0 0
      %735 = vmatprep.subr.bf16.mxu0 0
      %736 = vmatpush1.bf16.msra.mxu0 0
      %737 = vmatprep.subr.bf16.mxu0 0
      %738 = vmatpush1.bf16.msra.mxu0 0
      %739 = vmatprep.subr.bf16.mxu0 0
      %740 = vmatpush1.bf16.msra.mxu0 0
      %741 = vmatprep.subr.bf16.mxu0 0
      %742 = vmatpush1.bf16.msra.mxu0 0
      %743 = vmatprep.subr.bf16.mxu0 0
      %744 = vmatpush1.bf16.msra.mxu0 0
      %745 = vmatprep.subr.bf16.mxu0 0
      %746 = vmatpush1.bf16.msra.mxu0 0
      %747 = vmatprep.subr.bf16.mxu0 0
      %748 = vmatpush1.bf16.msra.mxu0 0
      %749 = vmatprep.subr.bf16.mxu0 0
      %750 = vmatpush1.bf16.msra.mxu0 0
      %751 = vmatprep.subr.bf16.mxu0 0
      %752 = vmatpush1.bf16.msra.mxu0 0
      %753 = vmatprep.subr.bf16.mxu0 0
      %754 = vmatpush1.bf16.msra.mxu0 0
      %755 = vmatprep.subr.bf16.mxu0 0
      %756 = vmatpush1.bf16.msra.mxu0 0
      %757 = vmatprep.subr.bf16.mxu0 0
      %758 = vmatpush1.bf16.msra.mxu0 0
      %759 = vmatprep.subr.bf16.mxu0 0
      %760 = vmatpush1.bf16.msra.mxu0 0
      %761 = vmatprep.mubr.bf16.mxu0 0
      %762 = vmatmul.mubr.bf16.gmra.mrb[0].mxu0 %v715
      %v763 = vpop.f32.mrb[0].mxu0
      %v764 = vadd.f32 0.0, %v763
      %v765 = vpop.f32.mrb[0].mxu0
      %v766 = vpop.f32.mrb[0].mxu0
      %v767 = vadd.f32 0.0, %v766
      %v768 = vpop.f32.mrb[0].mxu0
      %769 = vmatprep.mubr.bf16.mxu0 0
      %770 = vmatmul.mubr.bf16.gmra.mrb[0].mxu0 %v718
      %v771 = vpop.f32.mrb[0].mxu0
      %v772 = vadd.f32 0.0, %v771
      %v773 = vpop.f32.mrb[0].mxu0
      %v774 = vpop.f32.mrb[0].mxu0
      %v775 = vadd.f32 0.0, %v774
      %v776 = vpop.f32.mrb[0].mxu0
      %777 = vmatprep.mubr.bf16.mxu0 0
      %778 = vmatmul.mubr.bf16.gmra.mrb[0].mxu0 %v721
      %v779 = vpop.f32.mrb[0].mxu0
      %v780 = vadd.f32 0.0, %v779
      %v781 = vpop.f32.mrb[0].mxu0
      %v782 = vpop.f32.mrb[0].mxu0
      %v783 = vadd.f32 0.0, %v782
      %v784 = vpop.f32.mrb[0].mxu0
      %785 = vmatprep.mubr.bf16.mxu0 0
      %786 = vmatmul.mubr.bf16.gmra.mrb[0].mxu0 %v724
      %v787 = vpop.f32.mrb[0].mxu0
      %v788 = vadd.f32 0.0, %v787
      %v789 = vpop.f32.mrb[0].mxu0
      %v790 = vpop.f32.mrb[0].mxu0
      %v791 = vadd.f32 0.0, %v790
      %v792 = vpop.f32.mrb[0].mxu0
      %793 = vdwg.mxu0
      %v794 = vadd.f32 %v692, %v764
      %v795 = vadd.f32 %v693, %v767
      %v796 = vadd.f32 %v694, %v772
      %v797 = vadd.f32 %v695, %v775
      %v798 = vadd.f32 %v696, %v780
      %v799 = vadd.f32 %v697, %v783
      %v800 = vadd.f32 %v698, %v788
      %v801 = vadd.f32 %v699, %v791
      %v802 = vld [vmem:[%s401 + $0x1] sm:$0xff]
      %v803 = vld [vmem:[%s401 + $0x11] sm:$0xff]
      %v804 = vld [vmem:[%s401 + $0x21] sm:$0xff]
      %v805 = vld [vmem:[%s401 + $0x31] sm:$0xff]
      %v806 = vld [vmem:[%s401 + $0x41] sm:$0xff]
      %v807 = vld [vmem:[%s401 + $0x51] sm:$0xff]
      %v808 = vld [vmem:[%s401 + $0x61] sm:$0xff]
      %v809 = vld [vmem:[%s401 + $0x71] sm:$0xff]
      %v810 = vpack.c.bf16 %v803, %v802
      %v811 = vpack.c.bf16 %v805, %v804
      %v812 = vpack.c.bf16 %v807, %v806
      %v813 = vpack.c.bf16 %v809, %v808
      %s814 = scalar_lea.vmem %s4, 16
      %v815 = vld [vmem:[%s814] sm:$0xf]
      %v817 = vsel %vm373, %v810, 0
      %v820 = vsel %vm373, %v811, 0
      %v823 = vsel %vm373, %v812, 0
      %v826 = vsel %vm373, %v813, 0
      %v829 = vsel %vm449, %v815, 0
      %831 = vmatprep.subr.bf16.mxu0 0
      %832 = vmatpush1.bf16.msra.mxu0 %v829
      %833 = vmatprep.subr.bf16.mxu0 0
      %834 = vmatpush1.bf16.msra.mxu0 0
      %835 = vmatprep.subr.bf16.mxu0 0
      %836 = vmatpush1.bf16.msra.mxu0 0
      %837 = vmatprep.subr.bf16.mxu0 0
      %838 = vmatpush1.bf16.msra.mxu0 0
      %839 = vmatprep.subr.bf16.mxu0 0
      %840 = vmatpush1.bf16.msra.mxu0 0
      %841 = vmatprep.subr.bf16.mxu0 0
      %842 = vmatpush1.bf16.msra.mxu0 0
      %843 = vmatprep.subr.bf16.mxu0 0
      %844 = vmatpush1.bf16.msra.mxu0 0
      %845 = vmatprep.subr.bf16.mxu0 0
      %846 = vmatpush1.bf16.msra.mxu0 0
      %847 = vmatprep.subr.bf16.mxu0 0
      %848 = vmatpush1.bf16.msra.mxu0 0
      %849 = vmatprep.subr.bf16.mxu0 0
      %850 = vmatpush1.bf16.msra.mxu0 0
      %851 = vmatprep.subr.bf16.mxu0 0
      %852 = vmatpush1.bf16.msra.mxu0 0
      %853 = vmatprep.subr.bf16.mxu0 0
      %854 = vmatpush1.bf16.msra.mxu0 0
      %855 = vmatprep.subr.bf16.mxu0 0
      %856 = vmatpush1.bf16.msra.mxu0 0
      %857 = vmatprep.subr.bf16.mxu0 0
      %858 = vmatpush1.bf16.msra.mxu0 0
      %859 = vmatprep.subr.bf16.mxu0 0
      %860 = vmatpush1.bf16.msra.mxu0 0
      %861 = vmatprep.subr.bf16.mxu0 0
      %862 = vmatpush1.bf16.msra.mxu0 0
      %863 = vmatprep.mubr.bf16.mxu0 0
      %864 = vmatmul.mubr.bf16.gmra.mrb[0].mxu0 %v817
      %v865 = vpop.f32.mrb[0].mxu0
      %v866 = vadd.f32 0.0, %v865
      %v867 = vpop.f32.mrb[0].mxu0
      %v868 = vpop.f32.mrb[0].mxu0
      %v869 = vadd.f32 0.0, %v868
      %v870 = vpop.f32.mrb[0].mxu0
      %871 = vmatprep.mubr.bf16.mxu0 0
      %872 = vmatmul.mubr.bf16.gmra.mrb[0].mxu0 %v820
      %v873 = vpop.f32.mrb[0].mxu0
      %v874 = vadd.f32 0.0, %v873
      %v875 = vpop.f32.mrb[0].mxu0
      %v876 = vpop.f32.mrb[0].mxu0
      %v877 = vadd.f32 0.0, %v876
      %v878 = vpop.f32.mrb[0].mxu0
      %879 = vmatprep.mubr.bf16.mxu0 0
      %880 = vmatmul.mubr.bf16.gmra.mrb[0].mxu0 %v823
      %v881 = vpop.f32.mrb[0].mxu0
      %v882 = vadd.f32 0.0, %v881
      %v883 = vpop.f32.mrb[0].mxu0
      %v884 = vpop.f32.mrb[0].mxu0
      %v885 = vadd.f32 0.0, %v884
      %v886 = vpop.f32.mrb[0].mxu0
      %887 = vmatprep.mubr.bf16.mxu0 0
      %888 = vmatmul.mubr.bf16.gmra.mrb[0].mxu0 %v826
      %v889 = vpop.f32.mrb[0].mxu0
      %v890 = vadd.f32 0.0, %v889
      %v891 = vpop.f32.mrb[0].mxu0
      %v892 = vpop.f32.mrb[0].mxu0
      %v893 = vadd.f32 0.0, %v892
      %v894 = vpop.f32.mrb[0].mxu0
      %895 = vdwg.mxu0
      %v896 = vadd.f32 %v794, %v866
      %v897 = vadd.f32 %v795, %v869
      %v898 = vadd.f32 %v796, %v874
      %v899 = vadd.f32 %v797, %v877
      %v900 = vadd.f32 %v798, %v882
      %v901 = vadd.f32 %v799, %v885
      %v902 = vadd.f32 %v800, %v890
      %v903 = vadd.f32 %v801, %v893
      %v904 = vld [vmem:[%s401 + $0x2] sm:$0xff]
      %v905 = vld [vmem:[%s401 + $0x12] sm:$0xff]
      %v906 = vld [vmem:[%s401 + $0x22] sm:$0xff]
      %v907 = vld [vmem:[%s401 + $0x32] sm:$0xff]
      %v908 = vld [vmem:[%s401 + $0x42] sm:$0xff]
      %v909 = vld [vmem:[%s401 + $0x52] sm:$0xff]
      %v910 = vld [vmem:[%s401 + $0x62] sm:$0xff]
      %v911 = vld [vmem:[%s401 + $0x72] sm:$0xff]
      %v912 = vpack.c.bf16 %v905, %v904
      %v913 = vpack.c.bf16 %v907, %v906
      %v914 = vpack.c.bf16 %v909, %v908
      %v915 = vpack.c.bf16 %v911, %v910
      %s916 = scalar_lea.vmem %s4, 20
      %v917 = vld [vmem:[%s916] sm:$0xf]
      %v919 = vsel %vm373, %v912, 0
      %v922 = vsel %vm373, %v913, 0
      %v925 = vsel %vm373, %v914, 0
      %v928 = vsel %vm373, %v915, 0
      %v931 = vsel %vm449, %v917, 0
      %933 = vmatprep.subr.bf16.mxu0 0
      %934 = vmatpush1.bf16.msra.mxu0 %v931
      %935 = vmatprep.subr.bf16.mxu0 0
      %936 = vmatpush1.bf16.msra.mxu0 0
      %937 = vmatprep.subr.bf16.mxu0 0
      %938 = vmatpush1.bf16.msra.mxu0 0
      %939 = vmatprep.subr.bf16.mxu0 0
      %940 = vmatpush1.bf16.msra.mxu0 0
      %941 = vmatprep.subr.bf16.mxu0 0
      %942 = vmatpush1.bf16.msra.mxu0 0
      %943 = vmatprep.subr.bf16.mxu0 0
      %944 = vmatpush1.bf16.msra.mxu0 0
      %945 = vmatprep.subr.bf16.mxu0 0
      %946 = vmatpush1.bf16.msra.mxu0 0
      %947 = vmatprep.subr.bf16.mxu0 0
      %948 = vmatpush1.bf16.msra.mxu0 0
      %949 = vmatprep.subr.bf16.mxu0 0
      %950 = vmatpush1.bf16.msra.mxu0 0
      %951 = vmatprep.subr.bf16.mxu0 0
      %952 = vmatpush1.bf16.msra.mxu0 0
      %953 = vmatprep.subr.bf16.mxu0 0
      %954 = vmatpush1.bf16.msra.mxu0 0
      %955 = vmatprep.subr.bf16.mxu0 0
      %956 = vmatpush1.bf16.msra.mxu0 0
      %957 = vmatprep.subr.bf16.mxu0 0
      %958 = vmatpush1.bf16.msra.mxu0 0
      %959 = vmatprep.subr.bf16.mxu0 0
      %960 = vmatpush1.bf16.msra.mxu0 0
      %961 = vmatprep.subr.bf16.mxu0 0
      %962 = vmatpush1.bf16.msra.mxu0 0
      %963 = vmatprep.subr.bf16.mxu0 0
      %964 = vmatpush1.bf16.msra.mxu0 0
      %965 = vmatprep.mubr.bf16.mxu0 0
      %966 = vmatmul.mubr.bf16.gmra.mrb[0].mxu0 %v919
      %v967 = vpop.f32.mrb[0].mxu0
      %v968 = vadd.f32 0.0, %v967
      %v969 = vpop.f32.mrb[0].mxu0
      %v970 = vpop.f32.mrb[0].mxu0
      %v971 = vadd.f32 0.0, %v970
      %v972 = vpop.f32.mrb[0].mxu0
      %973 = vmatprep.mubr.bf16.mxu0 0
      %974 = vmatmul.mubr.bf16.gmra.mrb[0].mxu0 %v922
      %v975 = vpop.f32.mrb[0].mxu0
      %v976 = vadd.f32 0.0, %v975
      %v977 = vpop.f32.mrb[0].mxu0
      %v978 = vpop.f32.mrb[0].mxu0
      %v979 = vadd.f32 0.0, %v978
      %v980 = vpop.f32.mrb[0].mxu0
      %981 = vmatprep.mubr.bf16.mxu0 0
      %982 = vmatmul.mubr.bf16.gmra.mrb[0].mxu0 %v925
      %v983 = vpop.f32.mrb[0].mxu0
      %v984 = vadd.f32 0.0, %v983
      %v985 = vpop.f32.mrb[0].mxu0
      %v986 = vpop.f32.mrb[0].mxu0
      %v987 = vadd.f32 0.0, %v986
      %v988 = vpop.f32.mrb[0].mxu0
      %989 = vmatprep.mubr.bf16.mxu0 0
      %990 = vmatmul.mubr.bf16.gmra.mrb[0].mxu0 %v928
      %v991 = vpop.f32.mrb[0].mxu0
      %v992 = vadd.f32 0.0, %v991
      %v993 = vpop.f32.mrb[0].mxu0
      %v994 = vpop.f32.mrb[0].mxu0
      %v995 = vadd.f32 0.0, %v994
      %v996 = vpop.f32.mrb[0].mxu0
      %997 = vdwg.mxu0
      %v998 = vadd.f32 %v896, %v968
      %v999 = vadd.f32 %v897, %v971
      %v1000 = vadd.f32 %v898, %v976
      %v1001 = vadd.f32 %v899, %v979
      %v1002 = vadd.f32 %v900, %v984
      %v1003 = vadd.f32 %v901, %v987
      %v1004 = vadd.f32 %v902, %v992
      %v1005 = vadd.f32 %v903, %v995
      %s1006 = scalar_lea.vmem [#allocation2], 32
      %v1007 = vld [vmem:[%s1006] sm:$0xff]
      %v1008 = vld [vmem:[%s1006 + $0x10] sm:$0xff]
      %v1009 = vld [vmem:[%s1006 + $0x20] sm:$0xff]
      %v1010 = vld [vmem:[%s1006 + $0x30] sm:$0xff]
      %v1011 = vld [vmem:[%s1006 + $0x40] sm:$0xff]
      %v1012 = vld [vmem:[%s1006 + $0x50] sm:$0xff]
      %v1013 = vld [vmem:[%s1006 + $0x60] sm:$0xff]
      %v1014 = vld [vmem:[%s1006 + $0x70] sm:$0xff]
      %v1015 = vpack.c.bf16 %v1008, %v1007
      %v1016 = vpack.c.bf16 %v1010, %v1009
      %v1017 = vpack.c.bf16 %v1012, %v1011
      %v1018 = vpack.c.bf16 %v1014, %v1013
      %s1019 = scalar_lea.vmem %s4, 24
      %v1020 = vld [vmem:[%s1019] sm:$0xf]
      %v1022 = vsel %vm373, %v1015, 0
      %v1025 = vsel %vm373, %v1016, 0
      %v1028 = vsel %vm373, %v1017, 0
      %v1031 = vsel %vm373, %v1018, 0
      %v1034 = vsel %vm449, %v1020, 0
      %1036 = vmatprep.subr.bf16.mxu0 0
      %1037 = vmatpush1.bf16.msra.mxu0 %v1034
      %1038 = vmatprep.subr.bf16.mxu0 0
      %1039 = vmatpush1.bf16.msra.mxu0 0
      %1040 = vmatprep.subr.bf16.mxu0 0
      %1041 = vmatpush1.bf16.msra.mxu0 0
      %1042 = vmatprep.subr.bf16.mxu0 0
      %1043 = vmatpush1.bf16.msra.mxu0 0
      %1044 = vmatprep.subr.bf16.mxu0 0
      %1045 = vmatpush1.bf16.msra.mxu0 0
      %1046 = vmatprep.subr.bf16.mxu0 0
      %1047 = vmatpush1.bf16.msra.mxu0 0
      %1048 = vmatprep.subr.bf16.mxu0 0
      %1049 = vmatpush1.bf16.msra.mxu0 0
      %1050 = vmatprep.subr.bf16.mxu0 0
      %1051 = vmatpush1.bf16.msra.mxu0 0
      %1052 = vmatprep.subr.bf16.mxu0 0
      %1053 = vmatpush1.bf16.msra.mxu0 0
      %1054 = vmatprep.subr.bf16.mxu0 0
      %1055 = vmatpush1.bf16.msra.mxu0 0
      %1056 = vmatprep.subr.bf16.mxu0 0
      %1057 = vmatpush1.bf16.msra.mxu0 0
      %1058 = vmatprep.subr.bf16.mxu0 0
      %1059 = vmatpush1.bf16.msra.mxu0 0
      %1060 = vmatprep.subr.bf16.mxu0 0
      %1061 = vmatpush1.bf16.msra.mxu0 0
      %1062 = vmatprep.subr.bf16.mxu0 0
      %1063 = vmatpush1.bf16.msra.mxu0 0
      %1064 = vmatprep.subr.bf16.mxu0 0
      %1065 = vmatpush1.bf16.msra.mxu0 0
      %1066 = vmatprep.subr.bf16.mxu0 0
      %1067 = vmatpush1.bf16.msra.mxu0 0
      %1068 = vmatprep.mubr.bf16.mxu0 0
      %1069 = vmatmul.mubr.bf16.gmra.mrb[0].mxu0 %v1022
      %v1070 = vpop.f32.mrb[0].mxu0
      %v1071 = vadd.f32 0.0, %v1070
      %v1072 = vpop.f32.mrb[0].mxu0
      %v1073 = vpop.f32.mrb[0].mxu0
      %v1074 = vadd.f32 0.0, %v1073
      %v1075 = vpop.f32.mrb[0].mxu0
      %1076 = vmatprep.mubr.bf16.mxu0 0
      %1077 = vmatmul.mubr.bf16.gmra.mrb[0].mxu0 %v1025
      %v1078 = vpop.f32.mrb[0].mxu0
      %v1079 = vadd.f32 0.0, %v1078
      %v1080 = vpop.f32.mrb[0].mxu0
      %v1081 = vpop.f32.mrb[0].mxu0
      %v1082 = vadd.f32 0.0, %v1081
      %v1083 = vpop.f32.mrb[0].mxu0
      %1084 = vmatprep.mubr.bf16.mxu0 0
      %1085 = vmatmul.mubr.bf16.gmra.mrb[0].mxu0 %v1028
      %v1086 = vpop.f32.mrb[0].mxu0
      %v1087 = vadd.f32 0.0, %v1086
      %v1088 = vpop.f32.mrb[0].mxu0
      %v1089 = vpop.f32.mrb[0].mxu0
      %v1090 = vadd.f32 0.0, %v1089
      %v1091 = vpop.f32.mrb[0].mxu0
      %1092 = vmatprep.mubr.bf16.mxu0 0
      %1093 = vmatmul.mubr.bf16.gmra.mrb[0].mxu0 %v1031
      %v1094 = vpop.f32.mrb[0].mxu0
      %v1095 = vadd.f32 0.0, %v1094
      %v1096 = vpop.f32.mrb[0].mxu0
      %v1097 = vpop.f32.mrb[0].mxu0
      %v1098 = vadd.f32 0.0, %v1097
      %v1099 = vpop.f32.mrb[0].mxu0
      %1100 = vdwg.mxu0
      %v1101 = vadd.f32 %v998, %v1071
      %v1102 = vadd.f32 %v999, %v1074
      %v1103 = vadd.f32 %v1000, %v1079
      %v1104 = vadd.f32 %v1001, %v1082
      %v1105 = vadd.f32 %v1002, %v1087
      %v1106 = vadd.f32 %v1003, %v1090
      %v1107 = vadd.f32 %v1004, %v1095
      %v1108 = vadd.f32 %v1005, %v1098
      %v1109 = vld [vmem:[%s1006 + $0x1] sm:$0xff]
      %v1110 = vld [vmem:[%s1006 + $0x11] sm:$0xff]
      %v1111 = vld [vmem:[%s1006 + $0x21] sm:$0xff]
      %v1112 = vld [vmem:[%s1006 + $0x31] sm:$0xff]
      %v1113 = vld [vmem:[%s1006 + $0x41] sm:$0xff]
      %v1114 = vld [vmem:[%s1006 + $0x51] sm:$0xff]
      %v1115 = vld [vmem:[%s1006 + $0x61] sm:$0xff]
      %v1116 = vld [vmem:[%s1006 + $0x71] sm:$0xff]
      %v1117 = vpack.c.bf16 %v1110, %v1109
      %v1118 = vpack.c.bf16 %v1112, %v1111
      %v1119 = vpack.c.bf16 %v1114, %v1113
      %v1120 = vpack.c.bf16 %v1116, %v1115
      %s1121 = scalar_lea.vmem %s4, 28
      %v1122 = vld [vmem:[%s1121] sm:$0xf]
      %v1124 = vsel %vm373, %v1117, 0
      %v1127 = vsel %vm373, %v1118, 0
      %v1130 = vsel %vm373, %v1119, 0
      %v1133 = vsel %vm373, %v1120, 0
      %v1136 = vsel %vm449, %v1122, 0
      %1138 = vmatprep.subr.bf16.mxu0 0
      %1139 = vmatpush1.bf16.msra.mxu0 %v1136
      %1140 = vmatprep.subr.bf16.mxu0 0
      %1141 = vmatpush1.bf16.msra.mxu0 0
      %1142 = vmatprep.subr.bf16.mxu0 0
      %1143 = vmatpush1.bf16.msra.mxu0 0
      %1144 = vmatprep.subr.bf16.mxu0 0
      %1145 = vmatpush1.bf16.msra.mxu0 0
      %1146 = vmatprep.subr.bf16.mxu0 0
      %1147 = vmatpush1.bf16.msra.mxu0 0
      %1148 = vmatprep.subr.bf16.mxu0 0
      %1149 = vmatpush1.bf16.msra.mxu0 0
      %1150 = vmatprep.subr.bf16.mxu0 0
      %1151 = vmatpush1.bf16.msra.mxu0 0
      %1152 = vmatprep.subr.bf16.mxu0 0
      %1153 = vmatpush1.bf16.msra.mxu0 0
      %1154 = vmatprep.subr.bf16.mxu0 0
      %1155 = vmatpush1.bf16.msra.mxu0 0
      %1156 = vmatprep.subr.bf16.mxu0 0
      %1157 = vmatpush1.bf16.msra.mxu0 0
      %1158 = vmatprep.subr.bf16.mxu0 0
      %1159 = vmatpush1.bf16.msra.mxu0 0
      %1160 = vmatprep.subr.bf16.mxu0 0
      %1161 = vmatpush1.bf16.msra.mxu0 0
      %1162 = vmatprep.subr.bf16.mxu0 0
      %1163 = vmatpush1.bf16.msra.mxu0 0
      %1164 = vmatprep.subr.bf16.mxu0 0
      %1165 = vmatpush1.bf16.msra.mxu0 0
      %1166 = vmatprep.subr.bf16.mxu0 0
      %1167 = vmatpush1.bf16.msra.mxu0 0
      %1168 = vmatprep.subr.bf16.mxu0 0
      %1169 = vmatpush1.bf16.msra.mxu0 0
      %1170 = vmatprep.mubr.bf16.mxu0 0
      %1171 = vmatmul.mubr.bf16.gmra.mrb[0].mxu0 %v1124
      %v1172 = vpop.f32.mrb[0].mxu0
      %v1173 = vadd.f32 0.0, %v1172
      %v1174 = vpop.f32.mrb[0].mxu0
      %v1175 = vpop.f32.mrb[0].mxu0
      %v1176 = vadd.f32 0.0, %v1175
      %v1177 = vpop.f32.mrb[0].mxu0
      %1178 = vmatprep.mubr.bf16.mxu0 0
      %1179 = vmatmul.mubr.bf16.gmra.mrb[0].mxu0 %v1127
      %v1180 = vpop.f32.mrb[0].mxu0
      %v1181 = vadd.f32 0.0, %v1180
      %v1182 = vpop.f32.mrb[0].mxu0
      %v1183 = vpop.f32.mrb[0].mxu0
      %v1184 = vadd.f32 0.0, %v1183
      %v1185 = vpop.f32.mrb[0].mxu0
      %1186 = vmatprep.mubr.bf16.mxu0 0
      %1187 = vmatmul.mubr.bf16.gmra.mrb[0].mxu0 %v1130
      %v1188 = vpop.f32.mrb[0].mxu0
      %v1189 = vadd.f32 0.0, %v1188
      %v1190 = vpop.f32.mrb[0].mxu0
      %v1191 = vpop.f32.mrb[0].mxu0
      %v1192 = vadd.f32 0.0, %v1191
      %v1193 = vpop.f32.mrb[0].mxu0
      %1194 = vmatprep.mubr.bf16.mxu0 0
      %1195 = vmatmul.mubr.bf16.gmra.mrb[0].mxu0 %v1133
      %v1196 = vpop.f32.mrb[0].mxu0
      %v1197 = vadd.f32 0.0, %v1196
      %v1198 = vpop.f32.mrb[0].mxu0
      %v1199 = vpop.f32.mrb[0].mxu0
      %v1200 = vadd.f32 0.0, %v1199
      %v1201 = vpop.f32.mrb[0].mxu0
      %1202 = vdwg.mxu0
      %v1203 = vadd.f32 %v1101, %v1173
      %v1204 = vadd.f32 %v1102, %v1176
      %v1205 = vadd.f32 %v1103, %v1181
      %v1206 = vadd.f32 %v1104, %v1184
      %v1207 = vadd.f32 %v1105, %v1189
      %v1208 = vadd.f32 %v1106, %v1192
      %v1209 = vadd.f32 %v1107, %v1197
      %v1210 = vadd.f32 %v1108, %v1200
      %v1211 = vld [vmem:[%s1006 + $0x2] sm:$0xff]
      %v1212 = vld [vmem:[%s1006 + $0x12] sm:$0xff]
      %v1213 = vld [vmem:[%s1006 + $0x22] sm:$0xff]
      %v1214 = vld [vmem:[%s1006 + $0x32] sm:$0xff]
      %v1215 = vld [vmem:[%s1006 + $0x42] sm:$0xff]
      %v1216 = vld [vmem:[%s1006 + $0x52] sm:$0xff]
      %v1217 = vld [vmem:[%s1006 + $0x62] sm:$0xff]
      %v1218 = vld [vmem:[%s1006 + $0x72] sm:$0xff]
      %v1219 = vpack.c.bf16 %v1212, %v1211
      %v1220 = vpack.c.bf16 %v1214, %v1213
      %v1221 = vpack.c.bf16 %v1216, %v1215
      %v1222 = vpack.c.bf16 %v1218, %v1217
      %s1223 = scalar_lea.vmem %s4, 32
      %v1224 = vld [vmem:[%s1223] sm:$0xf]
      %v1226 = vsel %vm373, %v1219, 0
      %v1229 = vsel %vm373, %v1220, 0
      %v1232 = vsel %vm373, %v1221, 0
      %v1235 = vsel %vm373, %v1222, 0
      %v1238 = vsel %vm449, %v1224, 0
      %1240 = vmatprep.subr.bf16.mxu0 0
      %1241 = vmatpush1.bf16.msra.mxu0 %v1238
      %1242 = vmatprep.subr.bf16.mxu0 0
      %1243 = vmatpush1.bf16.msra.mxu0 0
      %1244 = vmatprep.subr.bf16.mxu0 0
      %1245 = vmatpush1.bf16.msra.mxu0 0
      %1246 = vmatprep.subr.bf16.mxu0 0
      %1247 = vmatpush1.bf16.msra.mxu0 0
      %1248 = vmatprep.subr.bf16.mxu0 0
      %1249 = vmatpush1.bf16.msra.mxu0 0
      %1250 = vmatprep.subr.bf16.mxu0 0
      %1251 = vmatpush1.bf16.msra.mxu0 0
      %1252 = vmatprep.subr.bf16.mxu0 0
      %1253 = vmatpush1.bf16.msra.mxu0 0
      %1254 = vmatprep.subr.bf16.mxu0 0
      %1255 = vmatpush1.bf16.msra.mxu0 0
      %1256 = vmatprep.subr.bf16.mxu0 0
      %1257 = vmatpush1.bf16.msra.mxu0 0
      %1258 = vmatprep.subr.bf16.mxu0 0
      %1259 = vmatpush1.bf16.msra.mxu0 0
      %1260 = vmatprep.subr.bf16.mxu0 0
      %1261 = vmatpush1.bf16.msra.mxu0 0
      %1262 = vmatprep.subr.bf16.mxu0 0
      %1263 = vmatpush1.bf16.msra.mxu0 0
      %1264 = vmatprep.subr.bf16.mxu0 0
      %1265 = vmatpush1.bf16.msra.mxu0 0
      %1266 = vmatprep.subr.bf16.mxu0 0
      %1267 = vmatpush1.bf16.msra.mxu0 0
      %1268 = vmatprep.subr.bf16.mxu0 0
      %1269 = vmatpush1.bf16.msra.mxu0 0
      %1270 = vmatprep.subr.bf16.mxu0 0
      %1271 = vmatpush1.bf16.msra.mxu0 0
      %1272 = vmatprep.mubr.bf16.mxu0 0
      %1273 = vmatmul.mubr.bf16.gmra.mrb[0].mxu0 %v1226
      %v1274 = vpop.f32.mrb[0].mxu0
      %v1275 = vadd.f32 0.0, %v1274
      %v1276 = vpop.f32.mrb[0].mxu0
      %v1277 = vpop.f32.mrb[0].mxu0
      %v1278 = vadd.f32 0.0, %v1277
      %v1279 = vpop.f32.mrb[0].mxu0
      %1280 = vmatprep.mubr.bf16.mxu0 0
      %1281 = vmatmul.mubr.bf16.gmra.mrb[0].mxu0 %v1229
      %v1282 = vpop.f32.mrb[0].mxu0
      %v1283 = vadd.f32 0.0, %v1282
      %v1284 = vpop.f32.mrb[0].mxu0
      %v1285 = vpop.f32.mrb[0].mxu0
      %v1286 = vadd.f32 0.0, %v1285
      %v1287 = vpop.f32.mrb[0].mxu0
      %1288 = vmatprep.mubr.bf16.mxu0 0
      %1289 = vmatmul.mubr.bf16.gmra.mrb[0].mxu0 %v1232
      %v1290 = vpop.f32.mrb[0].mxu0
      %v1291 = vadd.f32 0.0, %v1290
      %v1292 = vpop.f32.mrb[0].mxu0
      %v1293 = vpop.f32.mrb[0].mxu0
      %v1294 = vadd.f32 0.0, %v1293
      %v1295 = vpop.f32.mrb[0].mxu0
      %1296 = vmatprep.mubr.bf16.mxu0 0
      %1297 = vmatmul.mubr.bf16.gmra.mrb[0].mxu0 %v1235
      %v1298 = vpop.f32.mrb[0].mxu0
      %v1299 = vadd.f32 0.0, %v1298
      %v1300 = vpop.f32.mrb[0].mxu0
      %v1301 = vpop.f32.mrb[0].mxu0
      %v1302 = vadd.f32 0.0, %v1301
      %v1303 = vpop.f32.mrb[0].mxu0
      %1304 = vdwg.mxu0
      %v1305 = vadd.f32 %v1203, %v1275
      %v1306 = vadd.f32 %v1204, %v1278
      %v1307 = vadd.f32 %v1205, %v1283
      %v1308 = vadd.f32 %v1206, %v1286
      %v1309 = vadd.f32 %v1207, %v1291
      %v1310 = vadd.f32 %v1208, %v1294
      %v1311 = vadd.f32 %v1209, %v1299
      %v1312 = vadd.f32 %v1210, %v1302
      %v1313 = vld [vmem:[%s5] sm:$0x1]
      %v1315 = vlaneseq
      %v1316 = vshrl.u32 %v1315, 7
      %v1317 = vsub.s32 0, %v1316
      %v1318 = vrot.slane %v1313, %v1317
      %v1320 = vadd.f32 %v1305, %v1318
      %v1321 = vadd.f32 %v1306, %v1318
      %v1322 = vadd.f32 %v1307, %v1318
      %v1323 = vadd.f32 %v1308, %v1318
      %v1324 = vadd.f32 %v1309, %v1318
      %v1325 = vadd.f32 %v1310, %v1318
      %v1326 = vadd.f32 %v1311, %v1318
      %v1327 = vadd.f32 %v1312, %v1318
      %v1328 = vld [vmem:[%s320] sm:$0xff]
      %v1329 = vld [vmem:[%s320 + $0x8] sm:$0xff]
      %v1330 = vld [vmem:[%s320 + $0x10] sm:$0xff]
      %v1331 = vld [vmem:[%s320 + $0x18] sm:$0xff]
      %v1332 = vld [vmem:[%s320 + $0x20] sm:$0xff]
      %v1333 = vld [vmem:[%s320 + $0x28] sm:$0xff]
      %v1334 = vld [vmem:[%s320 + $0x30] sm:$0xff]
      %v1335 = vld [vmem:[%s320 + $0x38] sm:$0xff]
      %v1336 = vld [vmem:[%s320 + $0x40] sm:$0xff]
      %v1337 = vld [vmem:[%s320 + $0x48] sm:$0xff]
      %v1338 = vld [vmem:[%s320 + $0x50] sm:$0xff]
      %v1339 = vld [vmem:[%s320 + $0x58] sm:$0xff]
      %v1340 = vld [vmem:[%s320 + $0x60] sm:$0xff]
      %v1341 = vld [vmem:[%s320 + $0x68] sm:$0xff]
      %v1342 = vld [vmem:[%s320 + $0x70] sm:$0xff]
      %v1343 = vld [vmem:[%s320 + $0x78] sm:$0xff]
      %v1344 = vld [vmem:[%s320 + $0x80] sm:$0xff]
      %v1345 = vld [vmem:[%s320 + $0x88] sm:$0xff]
      %v1346 = vld [vmem:[%s320 + $0x90] sm:$0xff]
      %v1347 = vld [vmem:[%s320 + $0x98] sm:$0xff]
      %v1348 = vld [vmem:[%s320 + $0xa0] sm:$0xff]
      %v1349 = vld [vmem:[%s320 + $0xa8] sm:$0xff]
      %v1350 = vld [vmem:[%s320 + $0xb0] sm:$0xff]
      %v1351 = vld [vmem:[%s320 + $0xb8] sm:$0xff]
      %v1352 = vld [vmem:[%s320 + $0xc0] sm:$0xff]
      %v1353 = vld [vmem:[%s320 + $0xc8] sm:$0xff]
      %v1354 = vld [vmem:[%s320 + $0xd0] sm:$0xff]
      %v1355 = vld [vmem:[%s320 + $0xd8] sm:$0xff]
      %v1356 = vld [vmem:[%s320 + $0xe0] sm:$0xff]
      %v1357 = vld [vmem:[%s320 + $0xe8] sm:$0xff]
      %v1358 = vld [vmem:[%s320 + $0xf0] sm:$0xff]
      %v1359 = vld [vmem:[%s320 + $0xf8] sm:$0xff]
      %vm1360 = vcmask 31744
      %1361 = vst.msk [vmem:[#allocation3] sm:$0xff] %vm1360, 0.0
      %vm1362 = vcmask 24576
      %1363 = vst.msk [vmem:[#allocation3 + $0x8] sm:$0x1] %vm1362, 0.0
      %1364 = vst.msk [vmem:[#allocation3] sm:$0x1] %vm1362, 0.0
      %1365 = vst.msk [vmem:[#allocation3 + $0x10] sm:$0x1] %vm1362, 0.0
      %1366 = vst.msk [vmem:[#allocation3 + $0x20] sm:$0x1] %vm1362, 0.0
      %1367 = vst.msk [vmem:[#allocation3 + $0x30] sm:$0x1] %vm1362, 0.0
      %1368 = vst.msk [vmem:[#allocation3 + $0x40] sm:$0x1] %vm1362, 0.0
      %1369 = vst.msk [vmem:[#allocation3 + $0x50] sm:$0x1] %vm1362, 0.0
      %1370 = vst.msk [vmem:[#allocation3 + $0x60] sm:$0x1] %vm1362, 0.0
      %1371 = vst.msk [vmem:[#allocation3 + $0x70] sm:$0x1] %vm1362, 0.0
      %1372 = vst.msk [vmem:[#allocation3 + $0x80] sm:$0x1] %vm1362, 0.0
      %s1373 = scalar_lea.vmem [#allocation3], 144
      %1374 = vst.msk [vmem:[%s1373] sm:$0xff] %vm1360, 0.0
      %1375 = vst.msk [vmem:[%s1373 + $0x8] sm:$0x1] %vm1362, 0.0
      %1376 = vst.msk [vmem:[%s1373 + $0x8] sm:$0x1] %vm1362, 0.0
      %1377 = vst.msk [vmem:[%s1373 + $0x18] sm:$0x1] %vm1362, 0.0
      %1378 = vst.msk [vmem:[%s1373 + $0x28] sm:$0x1] %vm1362, 0.0
      %1379 = vst.msk [vmem:[%s1373 + $0x38] sm:$0x1] %vm1362, 0.0
      %1380 = vst.msk [vmem:[%s1373 + $0x48] sm:$0x1] %vm1362, 0.0
      %1381 = vst.msk [vmem:[%s1373 + $0x58] sm:$0x1] %vm1362, 0.0
      %1382 = vst.msk [vmem:[%s1373 + $0x68] sm:$0x1] %vm1362, 0.0
      %1383 = vst.msk [vmem:[%s1373 + $0x78] sm:$0x1] %vm1362, 0.0
      %1384 = vst.msk [vmem:[%s1373 + $0x88] sm:$0x1] %vm1362, 0.0
      %s1385 = scalar_lea.vmem [#allocation3], 416
      %1386 = vst.msk [vmem:[%s1385] sm:$0xff] %vm1360, 0.0
      %1387 = vst.msk [vmem:[%s1385 + $0x8] sm:$0x1] %vm1362, 0.0
      %s1388 = scalar_lea.vmem [#allocation3], 288
      %1389 = vst.msk [vmem:[%s1388] sm:$0x1] %vm1362, 0.0
      %1390 = vst.msk [vmem:[%s1388 + $0x10] sm:$0x1] %vm1362, 0.0
      %1391 = vst.msk [vmem:[%s1388 + $0x20] sm:$0x1] %vm1362, 0.0
      %1392 = vst.msk [vmem:[%s1388 + $0x30] sm:$0x1] %vm1362, 0.0
      %1393 = vst.msk [vmem:[%s1388 + $0x40] sm:$0x1] %vm1362, 0.0
      %1394 = vst.msk [vmem:[%s1388 + $0x50] sm:$0x1] %vm1362, 0.0
      %1395 = vst.msk [vmem:[%s1388 + $0x60] sm:$0x1] %vm1362, 0.0
      %1396 = vst.msk [vmem:[%s1388 + $0x70] sm:$0x1] %vm1362, 0.0
      %1397 = vst.msk [vmem:[%s1388 + $0x80] sm:$0x1] %vm1362, 0.0
      %s1398 = scalar_lea.vmem [#allocation3], 560
      %1399 = vst.msk [vmem:[%s1398] sm:$0xff] %vm1360, 0.0
      %1400 = vst.msk [vmem:[%s1398 + $0x8] sm:$0x1] %vm1362, 0.0
      %s1401 = scalar_lea.vmem [#allocation3], 432
      %1402 = vst.msk [vmem:[%s1401 + $0x8] sm:$0x1] %vm1362, 0.0
      %1403 = vst.msk [vmem:[%s1401 + $0x18] sm:$0x1] %vm1362, 0.0
      %1404 = vst.msk [vmem:[%s1401 + $0x28] sm:$0x1] %vm1362, 0.0
      %1405 = vst.msk [vmem:[%s1401 + $0x38] sm:$0x1] %vm1362, 0.0
      %1406 = vst.msk [vmem:[%s1401 + $0x48] sm:$0x1] %vm1362, 0.0
      %1407 = vst.msk [vmem:[%s1401 + $0x58] sm:$0x1] %vm1362, 0.0
      %1408 = vst.msk [vmem:[%s1401 + $0x68] sm:$0x1] %vm1362, 0.0
      %1409 = vst.msk [vmem:[%s1401 + $0x78] sm:$0x1] %vm1362, 0.0
      %1410 = vst.msk [vmem:[%s1401 + $0x88] sm:$0x1] %vm1362, 0.0
      %s1411 = scalar_lea.vmem [#allocation3], 16
      %1412 = vst.msk [vmem:[%s1411 + $0x1] sm:$0xff] %vm1360, %v1352
      %1413 = vst.msk [vmem:[%s1411 + $0x11] sm:$0xff] %vm1360, %v1353
      %1414 = vst.msk [vmem:[%s1411 + $0x21] sm:$0xff] %vm1360, %v1354
      %1415 = vst.msk [vmem:[%s1411 + $0x31] sm:$0xff] %vm1360, %v1355
      %1416 = vst.msk [vmem:[%s1411 + $0x41] sm:$0xff] %vm1360, %v1356
      %1417 = vst.msk [vmem:[%s1411 + $0x51] sm:$0xff] %vm1360, %v1357
      %1418 = vst.msk [vmem:[%s1411 + $0x61] sm:$0xff] %vm1360, %v1358
      %1419 = vst.msk [vmem:[%s1411 + $0x71] sm:$0xff] %vm1360, %v1359
      %s1420 = scalar_lea.vmem [#allocation3], 160
      %1421 = vst.msk [vmem:[%s1420] sm:$0xff] %vm1360, %v1344
      %1422 = vst.msk [vmem:[%s1420 + $0x10] sm:$0xff] %vm1360, %v1345
      %1423 = vst.msk [vmem:[%s1420 + $0x20] sm:$0xff] %vm1360, %v1346
      %1424 = vst.msk [vmem:[%s1420 + $0x30] sm:$0xff] %vm1360, %v1347
      %1425 = vst.msk [vmem:[%s1420 + $0x40] sm:$0xff] %vm1360, %v1348
      %1426 = vst.msk [vmem:[%s1420 + $0x50] sm:$0xff] %vm1360, %v1349
      %1427 = vst.msk [vmem:[%s1420 + $0x60] sm:$0xff] %vm1360, %v1350
      %1428 = vst.msk [vmem:[%s1420 + $0x70] sm:$0xff] %vm1360, %v1351
      %1429 = vst.msk [vmem:[%s1388 + $0x1] sm:$0xff] %vm1360, %v1336
      %1430 = vst.msk [vmem:[%s1388 + $0x11] sm:$0xff] %vm1360, %v1337
      %1431 = vst.msk [vmem:[%s1388 + $0x21] sm:$0xff] %vm1360, %v1338
      %1432 = vst.msk [vmem:[%s1388 + $0x31] sm:$0xff] %vm1360, %v1339
      %1433 = vst.msk [vmem:[%s1388 + $0x41] sm:$0xff] %vm1360, %v1340
      %1434 = vst.msk [vmem:[%s1388 + $0x51] sm:$0xff] %vm1360, %v1341
      %1435 = vst.msk [vmem:[%s1388 + $0x61] sm:$0xff] %vm1360, %v1342
      %1436 = vst.msk [vmem:[%s1388 + $0x71] sm:$0xff] %vm1360, %v1343
      %1437 = vst.msk [vmem:[%s1401] sm:$0xff] %vm1360, %v1328
      %1438 = vst.msk [vmem:[%s1401 + $0x10] sm:$0xff] %vm1360, %v1329
      %1439 = vst.msk [vmem:[%s1401 + $0x20] sm:$0xff] %vm1360, %v1330
      %1440 = vst.msk [vmem:[%s1401 + $0x30] sm:$0xff] %vm1360, %v1331
      %1441 = vst.msk [vmem:[%s1401 + $0x40] sm:$0xff] %vm1360, %v1332
      %1442 = vst.msk [vmem:[%s1401 + $0x50] sm:$0xff] %vm1360, %v1333
      %1443 = vst.msk [vmem:[%s1401 + $0x60] sm:$0xff] %vm1360, %v1334
      %1444 = vst.msk [vmem:[%s1401 + $0x70] sm:$0xff] %vm1360, %v1335
      %v1445 = vld [vmem:[#allocation3] sm:$0xff]
      %v1446 = vld [vmem:[#allocation3 + $0x10] sm:$0xff]
      %v1447 = vld [vmem:[#allocation3 + $0x20] sm:$0xff]
      %v1448 = vld [vmem:[#allocation3 + $0x30] sm:$0xff]
      %v1449 = vld [vmem:[#allocation3 + $0x40] sm:$0xff]
      %v1450 = vld [vmem:[#allocation3 + $0x50] sm:$0xff]
      %v1451 = vld [vmem:[#allocation3 + $0x60] sm:$0xff]
      %v1452 = vld [vmem:[#allocation3 + $0x70] sm:$0xff]
      %v1453 = vpack.c.bf16 %v1446, %v1445
      %v1454 = vpack.c.bf16 %v1448, %v1447
      %v1455 = vpack.c.bf16 %v1450, %v1449
      %v1456 = vpack.c.bf16 %v1452, %v1451
      %v1457 = vld [vmem:[%s6] sm:$0x3]
      %v1458 = vld [vmem:[%s1373] sm:$0xff]
      %v1459 = vld [vmem:[%s1373 + $0x10] sm:$0xff]
      %v1460 = vld [vmem:[%s1373 + $0x20] sm:$0xff]
      %v1461 = vld [vmem:[%s1373 + $0x30] sm:$0xff]
      %v1462 = vld [vmem:[%s1373 + $0x40] sm:$0xff]
      %v1463 = vld [vmem:[%s1373 + $0x50] sm:$0xff]
      %v1464 = vld [vmem:[%s1373 + $0x60] sm:$0xff]
      %v1465 = vld [vmem:[%s1373 + $0x70] sm:$0xff]
      %v1466 = vpack.c.bf16 %v1459, %v1458
      %v1467 = vpack.c.bf16 %v1461, %v1460
      %v1468 = vpack.c.bf16 %v1463, %v1462
      %v1469 = vpack.c.bf16 %v1465, %v1464
      %s1470 = scalar_lea.vmem %s6, 2
      %v1471 = vld [vmem:[%s1470] sm:$0x3]
      %v1473 = vsel %vm1360, %v1466, 0
      %v1476 = vsel %vm1360, %v1467, 0
      %v1479 = vsel %vm1360, %v1468, 0
      %v1482 = vsel %vm1360, %v1469, 0
      %vm1484 = vcmask 1041408
      %v1486 = vsel %vm1484, %v1471, 0
      %1488 = vmatprep.subr.bf16.mxu0 0
      %1489 = vmatpush1.bf16.msra.mxu0 %v1486
      %1490 = vmatprep.subr.bf16.mxu0 0
      %1491 = vmatpush1.bf16.msra.mxu0 0
      %1492 = vmatprep.subr.bf16.mxu0 0
      %1493 = vmatpush1.bf16.msra.mxu0 0
      %1494 = vmatprep.subr.bf16.mxu0 0
      %1495 = vmatpush1.bf16.msra.mxu0 0
      %1496 = vmatprep.subr.bf16.mxu0 0
      %1497 = vmatpush1.bf16.msra.mxu0 0
      %1498 = vmatprep.subr.bf16.mxu0 0
      %1499 = vmatpush1.bf16.msra.mxu0 0
      %1500 = vmatprep.subr.bf16.mxu0 0
      %1501 = vmatpush1.bf16.msra.mxu0 0
      %1502 = vmatprep.subr.bf16.mxu0 0
      %1503 = vmatpush1.bf16.msra.mxu0 0
      %1504 = vmatprep.subr.bf16.mxu0 0
      %1505 = vmatpush1.bf16.msra.mxu0 0
      %1506 = vmatprep.subr.bf16.mxu0 0
      %1507 = vmatpush1.bf16.msra.mxu0 0
      %1508 = vmatprep.subr.bf16.mxu0 0
      %1509 = vmatpush1.bf16.msra.mxu0 0
      %1510 = vmatprep.subr.bf16.mxu0 0
      %1511 = vmatpush1.bf16.msra.mxu0 0
      %1512 = vmatprep.subr.bf16.mxu0 0
      %1513 = vmatpush1.bf16.msra.mxu0 0
      %1514 = vmatprep.subr.bf16.mxu0 0
      %1515 = vmatpush1.bf16.msra.mxu0 0
      %1516 = vmatprep.subr.bf16.mxu0 0
      %1517 = vmatpush1.bf16.msra.mxu0 0
      %1518 = vmatprep.subr.bf16.mxu0 0
      %1519 = vmatpush1.bf16.msra.mxu0 0
      %1520 = vmatprep.mubr.bf16.mxu0 0
      %1521 = vmatmul.mubr.bf16.gmra.mrb[0].mxu0 %v1473
      %v1522 = vpop.f32.mrb[0].mxu0
      %v1523 = vadd.f32 0.0, %v1522
      %v1524 = vpop.f32.mrb[0].mxu0
      %v1525 = vpop.f32.mrb[0].mxu0
      %v1526 = vadd.f32 0.0, %v1525
      %v1527 = vpop.f32.mrb[0].mxu0
      %1528 = vmatprep.mubr.bf16.mxu0 0
      %1529 = vmatmul.mubr.bf16.gmra.mrb[0].mxu0 %v1476
      %v1530 = vpop.f32.mrb[0].mxu0
      %v1531 = vadd.f32 0.0, %v1530
      %v1532 = vpop.f32.mrb[0].mxu0
      %v1533 = vpop.f32.mrb[0].mxu0
      %v1534 = vadd.f32 0.0, %v1533
      %v1535 = vpop.f32.mrb[0].mxu0
      %1536 = vmatprep.mubr.bf16.mxu0 0
      %1537 = vmatmul.mubr.bf16.gmra.mrb[0].mxu0 %v1479
      %v1538 = vpop.f32.mrb[0].mxu0
      %v1539 = vadd.f32 0.0, %v1538
      %v1540 = vpop.f32.mrb[0].mxu0
      %v1541 = vpop.f32.mrb[0].mxu0
      %v1542 = vadd.f32 0.0, %v1541
      %v1543 = vpop.f32.mrb[0].mxu0
      %1544 = vmatprep.mubr.bf16.mxu0 0
      %1545 = vmatmul.mubr.bf16.gmra.mrb[0].mxu0 %v1482
      %v1546 = vpop.f32.mrb[0].mxu0
      %v1547 = vadd.f32 0.0, %v1546
      %v1548 = vpop.f32.mrb[0].mxu0
      %v1549 = vpop.f32.mrb[0].mxu0
      %v1550 = vadd.f32 0.0, %v1549
      %v1551 = vpop.f32.mrb[0].mxu0
      %1552 = vdwg.mxu0
      %v1554 = vsel %vm1360, %v1453, 0
      %v1557 = vsel %vm1360, %v1454, 0
      %v1560 = vsel %vm1360, %v1455, 0
      %v1563 = vsel %vm1360, %v1456, 0
      %v1566 = vsel %vm1484, %v1457, 0
      %1568 = vmatprep.subr.bf16.mxu0 0
      %1569 = vmatpush1.bf16.msra.mxu0 %v1566
      %1570 = vmatprep.subr.bf16.mxu0 0
      %1571 = vmatpush1.bf16.msra.mxu0 0
      %1572 = vmatprep.subr.bf16.mxu0 0
      %1573 = vmatpush1.bf16.msra.mxu0 0
      %1574 = vmatprep.subr.bf16.mxu0 0
      %1575 = vmatpush1.bf16.msra.mxu0 0
      %1576 = vmatprep.subr.bf16.mxu0 0
      %1577 = vmatpush1.bf16.msra.mxu0 0
      %1578 = vmatprep.subr.bf16.mxu0 0
      %1579 = vmatpush1.bf16.msra.mxu0 0
      %1580 = vmatprep.subr.bf16.mxu0 0
      %1581 = vmatpush1.bf16.msra.mxu0 0
      %1582 = vmatprep.subr.bf16.mxu0 0
      %1583 = vmatpush1.bf16.msra.mxu0 0
      %1584 = vmatprep.subr.bf16.mxu0 0
      %1585 = vmatpush1.bf16.msra.mxu0 0
      %1586 = vmatprep.subr.bf16.mxu0 0
      %1587 = vmatpush1.bf16.msra.mxu0 0
      %1588 = vmatprep.subr.bf16.mxu0 0
      %1589 = vmatpush1.bf16.msra.mxu0 0
      %1590 = vmatprep.subr.bf16.mxu0 0
      %1591 = vmatpush1.bf16.msra.mxu0 0
      %1592 = vmatprep.subr.bf16.mxu0 0
      %1593 = vmatpush1.bf16.msra.mxu0 0
      %1594 = vmatprep.subr.bf16.mxu0 0
      %1595 = vmatpush1.bf16.msra.mxu0 0
      %1596 = vmatprep.subr.bf16.mxu0 0
      %1597 = vmatpush1.bf16.msra.mxu0 0
      %1598 = vmatprep.subr.bf16.mxu0 0
      %1599 = vmatpush1.bf16.msra.mxu0 0
      %1600 = vmatprep.mubr.bf16.mxu0 0
      %1601 = vmatmul.mubr.bf16.gmra.mrb[0].mxu0 %v1554
      %v1602 = vpop.f32.mrb[0].mxu0
      %v1603 = vadd.f32 %v1523, %v1602
      %v1604 = vpop.f32.mrb[0].mxu0
      %v1605 = vpop.f32.mrb[0].mxu0
      %v1606 = vadd.f32 %v1526, %v1605
      %v1607 = vpop.f32.mrb[0].mxu0
      %1608 = vmatprep.mubr.bf16.mxu0 0
      %1609 = vmatmul.mubr.bf16.gmra.mrb[0].mxu0 %v1557
      %v1610 = vpop.f32.mrb[0].mxu0
      %v1611 = vadd.f32 %v1531, %v1610
      %v1612 = vpop.f32.mrb[0].mxu0
      %v1613 = vpop.f32.mrb[0].mxu0
      %v1614 = vadd.f32 %v1534, %v1613
      %v1615 = vpop.f32.mrb[0].mxu0
      %1616 = vmatprep.mubr.bf16.mxu0 0
      %1617 = vmatmul.mubr.bf16.gmra.mrb[0].mxu0 %v1560
      %v1618 = vpop.f32.mrb[0].mxu0
      %v1619 = vadd.f32 %v1539, %v1618
      %v1620 = vpop.f32.mrb[0].mxu0
      %v1621 = vpop.f32.mrb[0].mxu0
      %v1622 = vadd.f32 %v1542, %v1621
      %v1623 = vpop.f32.mrb[0].mxu0
      %1624 = vmatprep.mubr.bf16.mxu0 0
      %1625 = vmatmul.mubr.bf16.gmra.mrb[0].mxu0 %v1563
      %v1626 = vpop.f32.mrb[0].mxu0
      %v1627 = vadd.f32 %v1547, %v1626
      %v1628 = vpop.f32.mrb[0].mxu0
      %v1629 = vpop.f32.mrb[0].mxu0
      %v1630 = vadd.f32 %v1550, %v1629
      %v1631 = vpop.f32.mrb[0].mxu0
      %1632 = vdwg.mxu0
      %v1633 = vld [vmem:[#allocation3 + $0x1] sm:$0xff]
      %v1634 = vld [vmem:[#allocation3 + $0x11] sm:$0xff]
      %v1635 = vld [vmem:[#allocation3 + $0x21] sm:$0xff]
      %v1636 = vld [vmem:[#allocation3 + $0x31] sm:$0xff]
      %v1637 = vld [vmem:[#allocation3 + $0x41] sm:$0xff]
      %v1638 = vld [vmem:[#allocation3 + $0x51] sm:$0xff]
      %v1639 = vld [vmem:[#allocation3 + $0x61] sm:$0xff]
      %v1640 = vld [vmem:[#allocation3 + $0x71] sm:$0xff]
      %v1641 = vpack.c.bf16 %v1634, %v1633
      %v1642 = vpack.c.bf16 %v1636, %v1635
      %v1643 = vpack.c.bf16 %v1638, %v1637
      %v1644 = vpack.c.bf16 %v1640, %v1639
      %s1645 = scalar_lea.vmem %s6, 4
      %v1646 = vld [vmem:[%s1645] sm:$0x3]
      %v1648 = vsel %vm1360, %v1641, 0
      %v1651 = vsel %vm1360, %v1642, 0
      %v1654 = vsel %vm1360, %v1643, 0
      %v1657 = vsel %vm1360, %v1644, 0
      %v1660 = vsel %vm1484, %v1646, 0
      %1662 = vmatprep.subr.bf16.mxu0 0
      %1663 = vmatpush1.bf16.msra.mxu0 %v1660
      %1664 = vmatprep.subr.bf16.mxu0 0
      %1665 = vmatpush1.bf16.msra.mxu0 0
      %1666 = vmatprep.subr.bf16.mxu0 0
      %1667 = vmatpush1.bf16.msra.mxu0 0
      %1668 = vmatprep.subr.bf16.mxu0 0
      %1669 = vmatpush1.bf16.msra.mxu0 0
      %1670 = vmatprep.subr.bf16.mxu0 0
      %1671 = vmatpush1.bf16.msra.mxu0 0
      %1672 = vmatprep.subr.bf16.mxu0 0
      %1673 = vmatpush1.bf16.msra.mxu0 0
      %1674 = vmatprep.subr.bf16.mxu0 0
      %1675 = vmatpush1.bf16.msra.mxu0 0
      %1676 = vmatprep.subr.bf16.mxu0 0
      %1677 = vmatpush1.bf16.msra.mxu0 0
      %1678 = vmatprep.subr.bf16.mxu0 0
      %1679 = vmatpush1.bf16.msra.mxu0 0
      %1680 = vmatprep.subr.bf16.mxu0 0
      %1681 = vmatpush1.bf16.msra.mxu0 0
      %1682 = vmatprep.subr.bf16.mxu0 0
      %1683 = vmatpush1.bf16.msra.mxu0 0
      %1684 = vmatprep.subr.bf16.mxu0 0
      %1685 = vmatpush1.bf16.msra.mxu0 0
      %1686 = vmatprep.subr.bf16.mxu0 0
      %1687 = vmatpush1.bf16.msra.mxu0 0
      %1688 = vmatprep.subr.bf16.mxu0 0
      %1689 = vmatpush1.bf16.msra.mxu0 0
      %1690 = vmatprep.subr.bf16.mxu0 0
      %1691 = vmatpush1.bf16.msra.mxu0 0
      %1692 = vmatprep.subr.bf16.mxu0 0
      %1693 = vmatpush1.bf16.msra.mxu0 0
      %1694 = vmatprep.mubr.bf16.mxu0 0
      %1695 = vmatmul.mubr.bf16.gmra.mrb[0].mxu0 %v1648
      %v1696 = vpop.f32.mrb[0].mxu0
      %v1697 = vadd.f32 0.0, %v1696
      %v1698 = vpop.f32.mrb[0].mxu0
      %v1699 = vpop.f32.mrb[0].mxu0
      %v1700 = vadd.f32 0.0, %v1699
      %v1701 = vpop.f32.mrb[0].mxu0
      %1702 = vmatprep.mubr.bf16.mxu0 0
      %1703 = vmatmul.mubr.bf16.gmra.mrb[0].mxu0 %v1651
      %v1704 = vpop.f32.mrb[0].mxu0
      %v1705 = vadd.f32 0.0, %v1704
      %v1706 = vpop.f32.mrb[0].mxu0
      %v1707 = vpop.f32.mrb[0].mxu0
      %v1708 = vadd.f32 0.0, %v1707
      %v1709 = vpop.f32.mrb[0].mxu0
      %1710 = vmatprep.mubr.bf16.mxu0 0
      %1711 = vmatmul.mubr.bf16.gmra.mrb[0].mxu0 %v1654
      %v1712 = vpop.f32.mrb[0].mxu0
      %v1713 = vadd.f32 0.0, %v1712
      %v1714 = vpop.f32.mrb[0].mxu0
      %v1715 = vpop.f32.mrb[0].mxu0
      %v1716 = vadd.f32 0.0, %v1715
      %v1717 = vpop.f32.mrb[0].mxu0
      %1718 = vmatprep.mubr.bf16.mxu0 0
      %1719 = vmatmul.mubr.bf16.gmra.mrb[0].mxu0 %v1657
      %v1720 = vpop.f32.mrb[0].mxu0
      %v1721 = vadd.f32 0.0, %v1720
      %v1722 = vpop.f32.mrb[0].mxu0
      %v1723 = vpop.f32.mrb[0].mxu0
      %v1724 = vadd.f32 0.0, %v1723
      %v1725 = vpop.f32.mrb[0].mxu0
      %1726 = vdwg.mxu0
      %v1727 = vadd.f32 %v1603, %v1697
      %v1728 = vadd.f32 %v1606, %v1700
      %v1729 = vadd.f32 %v1611, %v1705
      %v1730 = vadd.f32 %v1614, %v1708
      %v1731 = vadd.f32 %v1619, %v1713
      %v1732 = vadd.f32 %v1622, %v1716
      %v1733 = vadd.f32 %v1627, %v1721
      %v1734 = vadd.f32 %v1630, %v1724
      %v1735 = vld [vmem:[%s1388] sm:$0xff]
      %v1736 = vld [vmem:[%s1388 + $0x10] sm:$0xff]
      %v1737 = vld [vmem:[%s1388 + $0x20] sm:$0xff]
      %v1738 = vld [vmem:[%s1388 + $0x30] sm:$0xff]
      %v1739 = vld [vmem:[%s1388 + $0x40] sm:$0xff]
      %v1740 = vld [vmem:[%s1388 + $0x50] sm:$0xff]
      %v1741 = vld [vmem:[%s1388 + $0x60] sm:$0xff]
      %v1742 = vld [vmem:[%s1388 + $0x70] sm:$0xff]
      %v1743 = vpack.c.bf16 %v1736, %v1735
      %v1744 = vpack.c.bf16 %v1738, %v1737
      %v1745 = vpack.c.bf16 %v1740, %v1739
      %v1746 = vpack.c.bf16 %v1742, %v1741
      %s1747 = scalar_lea.vmem %s6, 6
      %v1748 = vld [vmem:[%s1747] sm:$0x3]
      %v1750 = vsel %vm1360, %v1743, 0
      %v1753 = vsel %vm1360, %v1744, 0
      %v1756 = vsel %vm1360, %v1745, 0
      %v1759 = vsel %vm1360, %v1746, 0
      %v1762 = vsel %vm1484, %v1748, 0
      %1764 = vmatprep.subr.bf16.mxu0 0
      %1765 = vmatpush1.bf16.msra.mxu0 %v1762
      %1766 = vmatprep.subr.bf16.mxu0 0
      %1767 = vmatpush1.bf16.msra.mxu0 0
      %1768 = vmatprep.subr.bf16.mxu0 0
      %1769 = vmatpush1.bf16.msra.mxu0 0
      %1770 = vmatprep.subr.bf16.mxu0 0
      %1771 = vmatpush1.bf16.msra.mxu0 0
      %1772 = vmatprep.subr.bf16.mxu0 0
      %1773 = vmatpush1.bf16.msra.mxu0 0
      %1774 = vmatprep.subr.bf16.mxu0 0
      %1775 = vmatpush1.bf16.msra.mxu0 0
      %1776 = vmatprep.subr.bf16.mxu0 0
      %1777 = vmatpush1.bf16.msra.mxu0 0
      %1778 = vmatprep.subr.bf16.mxu0 0
      %1779 = vmatpush1.bf16.msra.mxu0 0
      %1780 = vmatprep.subr.bf16.mxu0 0
      %1781 = vmatpush1.bf16.msra.mxu0 0
      %1782 = vmatprep.subr.bf16.mxu0 0
      %1783 = vmatpush1.bf16.msra.mxu0 0
      %1784 = vmatprep.subr.bf16.mxu0 0
      %1785 = vmatpush1.bf16.msra.mxu0 0
      %1786 = vmatprep.subr.bf16.mxu0 0
      %1787 = vmatpush1.bf16.msra.mxu0 0
      %1788 = vmatprep.subr.bf16.mxu0 0
      %1789 = vmatpush1.bf16.msra.mxu0 0
      %1790 = vmatprep.subr.bf16.mxu0 0
      %1791 = vmatpush1.bf16.msra.mxu0 0
      %1792 = vmatprep.subr.bf16.mxu0 0
      %1793 = vmatpush1.bf16.msra.mxu0 0
      %1794 = vmatprep.subr.bf16.mxu0 0
      %1795 = vmatpush1.bf16.msra.mxu0 0
      %1796 = vmatprep.mubr.bf16.mxu0 0
      %1797 = vmatmul.mubr.bf16.gmra.mrb[0].mxu0 %v1750
      %v1798 = vpop.f32.mrb[0].mxu0
      %v1799 = vadd.f32 0.0, %v1798
      %v1800 = vpop.f32.mrb[0].mxu0
      %v1801 = vpop.f32.mrb[0].mxu0
      %v1802 = vadd.f32 0.0, %v1801
      %v1803 = vpop.f32.mrb[0].mxu0
      %1804 = vmatprep.mubr.bf16.mxu0 0
      %1805 = vmatmul.mubr.bf16.gmra.mrb[0].mxu0 %v1753
      %v1806 = vpop.f32.mrb[0].mxu0
      %v1807 = vadd.f32 0.0, %v1806
      %v1808 = vpop.f32.mrb[0].mxu0
      %v1809 = vpop.f32.mrb[0].mxu0
      %v1810 = vadd.f32 0.0, %v1809
      %v1811 = vpop.f32.mrb[0].mxu0
      %1812 = vmatprep.mubr.bf16.mxu0 0
      %1813 = vmatmul.mubr.bf16.gmra.mrb[0].mxu0 %v1756
      %v1814 = vpop.f32.mrb[0].mxu0
      %v1815 = vadd.f32 0.0, %v1814
      %v1816 = vpop.f32.mrb[0].mxu0
      %v1817 = vpop.f32.mrb[0].mxu0
      %v1818 = vadd.f32 0.0, %v1817
      %v1819 = vpop.f32.mrb[0].mxu0
      %1820 = vmatprep.mubr.bf16.mxu0 0
      %1821 = vmatmul.mubr.bf16.gmra.mrb[0].mxu0 %v1759
      %v1822 = vpop.f32.mrb[0].mxu0
      %v1823 = vadd.f32 0.0, %v1822
      %v1824 = vpop.f32.mrb[0].mxu0
      %v1825 = vpop.f32.mrb[0].mxu0
      %v1826 = vadd.f32 0.0, %v1825
      %v1827 = vpop.f32.mrb[0].mxu0
      %1828 = vdwg.mxu0
      %v1829 = vadd.f32 %v1727, %v1799
      %v1830 = vadd.f32 %v1728, %v1802
      %v1831 = vadd.f32 %v1729, %v1807
      %v1832 = vadd.f32 %v1730, %v1810
      %v1833 = vadd.f32 %v1731, %v1815
      %v1834 = vadd.f32 %v1732, %v1818
      %v1835 = vadd.f32 %v1733, %v1823
      %v1836 = vadd.f32 %v1734, %v1826
      %v1837 = vld [vmem:[%s1401] sm:$0xff]
      %v1838 = vld [vmem:[%s1401 + $0x10] sm:$0xff]
      %v1839 = vld [vmem:[%s1401 + $0x20] sm:$0xff]
      %v1840 = vld [vmem:[%s1401 + $0x30] sm:$0xff]
      %v1841 = vld [vmem:[%s1401 + $0x40] sm:$0xff]
      %v1842 = vld [vmem:[%s1401 + $0x50] sm:$0xff]
      %v1843 = vld [vmem:[%s1401 + $0x60] sm:$0xff]
      %v1844 = vld [vmem:[%s1401 + $0x70] sm:$0xff]
      %v1845 = vpack.c.bf16 %v1838, %v1837
      %v1846 = vpack.c.bf16 %v1840, %v1839
      %v1847 = vpack.c.bf16 %v1842, %v1841
      %v1848 = vpack.c.bf16 %v1844, %v1843
      %s1849 = scalar_lea.vmem %s6, 8
      %v1850 = vld [vmem:[%s1849] sm:$0x3]
      %v1852 = vsel %vm1360, %v1845, 0
      %v1855 = vsel %vm1360, %v1846, 0
      %v1858 = vsel %vm1360, %v1847, 0
      %v1861 = vsel %vm1360, %v1848, 0
      %v1864 = vsel %vm1484, %v1850, 0
      %1866 = vmatprep.subr.bf16.mxu0 0
      %1867 = vmatpush1.bf16.msra.mxu0 %v1864
      %1868 = vmatprep.subr.bf16.mxu0 0
      %1869 = vmatpush1.bf16.msra.mxu0 0
      %1870 = vmatprep.subr.bf16.mxu0 0
      %1871 = vmatpush1.bf16.msra.mxu0 0
      %1872 = vmatprep.subr.bf16.mxu0 0
      %1873 = vmatpush1.bf16.msra.mxu0 0
      %1874 = vmatprep.subr.bf16.mxu0 0
      %1875 = vmatpush1.bf16.msra.mxu0 0
      %1876 = vmatprep.subr.bf16.mxu0 0
      %1877 = vmatpush1.bf16.msra.mxu0 0
      %1878 = vmatprep.subr.bf16.mxu0 0
      %1879 = vmatpush1.bf16.msra.mxu0 0
      %1880 = vmatprep.subr.bf16.mxu0 0
      %1881 = vmatpush1.bf16.msra.mxu0 0
      %1882 = vmatprep.subr.bf16.mxu0 0
      %1883 = vmatpush1.bf16.msra.mxu0 0
      %1884 = vmatprep.subr.bf16.mxu0 0
      %1885 = vmatpush1.bf16.msra.mxu0 0
      %1886 = vmatprep.subr.bf16.mxu0 0
      %1887 = vmatpush1.bf16.msra.mxu0 0
      %1888 = vmatprep.subr.bf16.mxu0 0
      %1889 = vmatpush1.bf16.msra.mxu0 0
      %1890 = vmatprep.subr.bf16.mxu0 0
      %1891 = vmatpush1.bf16.msra.mxu0 0
      %1892 = vmatprep.subr.bf16.mxu0 0
      %1893 = vmatpush1.bf16.msra.mxu0 0
      %1894 = vmatprep.subr.bf16.mxu0 0
      %1895 = vmatpush1.bf16.msra.mxu0 0
      %1896 = vmatprep.subr.bf16.mxu0 0
      %1897 = vmatpush1.bf16.msra.mxu0 0
      %1898 = vmatprep.mubr.bf16.mxu0 0
      %1899 = vmatmul.mubr.bf16.gmra.mrb[0].mxu0 %v1852
      %v1900 = vpop.f32.mrb[0].mxu0
      %v1901 = vadd.f32 0.0, %v1900
      %v1902 = vpop.f32.mrb[0].mxu0
      %v1903 = vpop.f32.mrb[0].mxu0
      %v1904 = vadd.f32 0.0, %v1903
      %v1905 = vpop.f32.mrb[0].mxu0
      %1906 = vmatprep.mubr.bf16.mxu0 0
      %1907 = vmatmul.mubr.bf16.gmra.mrb[0].mxu0 %v1855
      %v1908 = vpop.f32.mrb[0].mxu0
      %v1909 = vadd.f32 0.0, %v1908
      %v1910 = vpop.f32.mrb[0].mxu0
      %v1911 = vpop.f32.mrb[0].mxu0
      %v1912 = vadd.f32 0.0, %v1911
      %v1913 = vpop.f32.mrb[0].mxu0
      %1914 = vmatprep.mubr.bf16.mxu0 0
      %1915 = vmatmul.mubr.bf16.gmra.mrb[0].mxu0 %v1858
      %v1916 = vpop.f32.mrb[0].mxu0
      %v1917 = vadd.f32 0.0, %v1916
      %v1918 = vpop.f32.mrb[0].mxu0
      %v1919 = vpop.f32.mrb[0].mxu0
      %v1920 = vadd.f32 0.0, %v1919
      %v1921 = vpop.f32.mrb[0].mxu0
      %1922 = vmatprep.mubr.bf16.mxu0 0
      %1923 = vmatmul.mubr.bf16.gmra.mrb[0].mxu0 %v1861
      %v1924 = vpop.f32.mrb[0].mxu0
      %v1925 = vadd.f32 0.0, %v1924
      %v1926 = vpop.f32.mrb[0].mxu0
      %v1927 = vpop.f32.mrb[0].mxu0
      %v1928 = vadd.f32 0.0, %v1927
      %v1929 = vpop.f32.mrb[0].mxu0
      %1930 = vdwg.mxu0
      %v1931 = vadd.f32 %v1829, %v1901
      %v1932 = vadd.f32 %v1830, %v1904
      %v1933 = vadd.f32 %v1831, %v1909
      %v1934 = vadd.f32 %v1832, %v1912
      %v1935 = vadd.f32 %v1833, %v1917
      %v1936 = vadd.f32 %v1834, %v1920
      %v1937 = vadd.f32 %v1835, %v1925
      %v1938 = vadd.f32 %v1836, %v1928
      %v1939 = vld [vmem:[%s1388 + $0x1] sm:$0xff]
      %v1940 = vld [vmem:[%s1388 + $0x11] sm:$0xff]
      %v1941 = vld [vmem:[%s1388 + $0x21] sm:$0xff]
      %v1942 = vld [vmem:[%s1388 + $0x31] sm:$0xff]
      %v1943 = vld [vmem:[%s1388 + $0x41] sm:$0xff]
      %v1944 = vld [vmem:[%s1388 + $0x51] sm:$0xff]
      %v1945 = vld [vmem:[%s1388 + $0x61] sm:$0xff]
      %v1946 = vld [vmem:[%s1388 + $0x71] sm:$0xff]
      %v1947 = vpack.c.bf16 %v1940, %v1939
      %v1948 = vpack.c.bf16 %v1942, %v1941
      %v1949 = vpack.c.bf16 %v1944, %v1943
      %v1950 = vpack.c.bf16 %v1946, %v1945
      %s1951 = scalar_lea.vmem %s6, 10
      %v1952 = vld [vmem:[%s1951] sm:$0x3]
      %v1954 = vsel %vm1360, %v1947, 0
      %v1957 = vsel %vm1360, %v1948, 0
      %v1960 = vsel %vm1360, %v1949, 0
      %v1963 = vsel %vm1360, %v1950, 0
      %v1966 = vsel %vm1484, %v1952, 0
      %1968 = vmatprep.subr.bf16.mxu0 0
      %1969 = vmatpush1.bf16.msra.mxu0 %v1966
      %1970 = vmatprep.subr.bf16.mxu0 0
      %1971 = vmatpush1.bf16.msra.mxu0 0
      %1972 = vmatprep.subr.bf16.mxu0 0
      %1973 = vmatpush1.bf16.msra.mxu0 0
      %1974 = vmatprep.subr.bf16.mxu0 0
      %1975 = vmatpush1.bf16.msra.mxu0 0
      %1976 = vmatprep.subr.bf16.mxu0 0
      %1977 = vmatpush1.bf16.msra.mxu0 0
      %1978 = vmatprep.subr.bf16.mxu0 0
      %1979 = vmatpush1.bf16.msra.mxu0 0
      %1980 = vmatprep.subr.bf16.mxu0 0
      %1981 = vmatpush1.bf16.msra.mxu0 0
      %1982 = vmatprep.subr.bf16.mxu0 0
      %1983 = vmatpush1.bf16.msra.mxu0 0
      %1984 = vmatprep.subr.bf16.mxu0 0
      %1985 = vmatpush1.bf16.msra.mxu0 0
      %1986 = vmatprep.subr.bf16.mxu0 0
      %1987 = vmatpush1.bf16.msra.mxu0 0
      %1988 = vmatprep.subr.bf16.mxu0 0
      %1989 = vmatpush1.bf16.msra.mxu0 0
      %1990 = vmatprep.subr.bf16.mxu0 0
      %1991 = vmatpush1.bf16.msra.mxu0 0
      %1992 = vmatprep.subr.bf16.mxu0 0
      %1993 = vmatpush1.bf16.msra.mxu0 0
      %1994 = vmatprep.subr.bf16.mxu0 0
      %1995 = vmatpush1.bf16.msra.mxu0 0
      %1996 = vmatprep.subr.bf16.mxu0 0
      %1997 = vmatpush1.bf16.msra.mxu0 0
      %1998 = vmatprep.subr.bf16.mxu0 0
      %1999 = vmatpush1.bf16.msra.mxu0 0
      %2000 = vmatprep.mubr.bf16.mxu0 0
      %2001 = vmatmul.mubr.bf16.gmra.mrb[0].mxu0 %v1954
      %v2002 = vpop.f32.mrb[0].mxu0
      %v2003 = vadd.f32 0.0, %v2002
      %v2004 = vpop.f32.mrb[0].mxu0
      %v2005 = vpop.f32.mrb[0].mxu0
      %v2006 = vadd.f32 0.0, %v2005
      %v2007 = vpop.f32.mrb[0].mxu0
      %2008 = vmatprep.mubr.bf16.mxu0 0
      %2009 = vmatmul.mubr.bf16.gmra.mrb[0].mxu0 %v1957
      %v2010 = vpop.f32.mrb[0].mxu0
      %v2011 = vadd.f32 0.0, %v2010
      %v2012 = vpop.f32.mrb[0].mxu0
      %v2013 = vpop.f32.mrb[0].mxu0
      %v2014 = vadd.f32 0.0, %v2013
      %v2015 = vpop.f32.mrb[0].mxu0
      %2016 = vmatprep.mubr.bf16.mxu0 0
      %2017 = vmatmul.mubr.bf16.gmra.mrb[0].mxu0 %v1960
      %v2018 = vpop.f32.mrb[0].mxu0
      %v2019 = vadd.f32 0.0, %v2018
      %v2020 = vpop.f32.mrb[0].mxu0
      %v2021 = vpop.f32.mrb[0].mxu0
      %v2022 = vadd.f32 0.0, %v2021
      %v2023 = vpop.f32.mrb[0].mxu0
      %2024 = vmatprep.mubr.bf16.mxu0 0
      %2025 = vmatmul.mubr.bf16.gmra.mrb[0].mxu0 %v1963
      %v2026 = vpop.f32.mrb[0].mxu0
      %v2027 = vadd.f32 0.0, %v2026
      %v2028 = vpop.f32.mrb[0].mxu0
      %v2029 = vpop.f32.mrb[0].mxu0
      %v2030 = vadd.f32 0.0, %v2029
      %v2031 = vpop.f32.mrb[0].mxu0
      %2032 = vdwg.mxu0
      %v2033 = vadd.f32 %v1931, %v2003
      %v2034 = vadd.f32 %v1932, %v2006
      %v2035 = vadd.f32 %v1933, %v2011
      %v2036 = vadd.f32 %v1934, %v2014
      %v2037 = vadd.f32 %v1935, %v2019
      %v2038 = vadd.f32 %v1936, %v2022
      %v2039 = vadd.f32 %v1937, %v2027
      %v2040 = vadd.f32 %v1938, %v2030
      %v2041 = vld [vmem:[%s1411] sm:$0xff]
      %v2042 = vld [vmem:[%s1411 + $0x10] sm:$0xff]
      %v2043 = vld [vmem:[%s1411 + $0x20] sm:$0xff]
      %v2044 = vld [vmem:[%s1411 + $0x30] sm:$0xff]
      %v2045 = vld [vmem:[%s1411 + $0x40] sm:$0xff]
      %v2046 = vld [vmem:[%s1411 + $0x50] sm:$0xff]
      %v2047 = vld [vmem:[%s1411 + $0x60] sm:$0xff]
      %v2048 = vld [vmem:[%s1411 + $0x70] sm:$0xff]
      %v2049 = vpack.c.bf16 %v2042, %v2041
      %v2050 = vpack.c.bf16 %v2044, %v2043
      %v2051 = vpack.c.bf16 %v2046, %v2045
      %v2052 = vpack.c.bf16 %v2048, %v2047
      %s2053 = scalar_lea.vmem %s6, 12
      %v2054 = vld [vmem:[%s2053] sm:$0x3]
      %v2056 = vsel %vm1360, %v2049, 0
      %v2059 = vsel %vm1360, %v2050, 0
      %v2062 = vsel %vm1360, %v2051, 0
      %v2065 = vsel %vm1360, %v2052, 0
      %v2068 = vsel %vm1484, %v2054, 0
      %2070 = vmatprep.subr.bf16.mxu0 0
      %2071 = vmatpush1.bf16.msra.mxu0 %v2068
      %2072 = vmatprep.subr.bf16.mxu0 0
      %2073 = vmatpush1.bf16.msra.mxu0 0
      %2074 = vmatprep.subr.bf16.mxu0 0
      %2075 = vmatpush1.bf16.msra.mxu0 0
      %2076 = vmatprep.subr.bf16.mxu0 0
      %2077 = vmatpush1.bf16.msra.mxu0 0
      %2078 = vmatprep.subr.bf16.mxu0 0
      %2079 = vmatpush1.bf16.msra.mxu0 0
      %2080 = vmatprep.subr.bf16.mxu0 0
      %2081 = vmatpush1.bf16.msra.mxu0 0
      %2082 = vmatprep.subr.bf16.mxu0 0
      %2083 = vmatpush1.bf16.msra.mxu0 0
      %2084 = vmatprep.subr.bf16.mxu0 0
      %2085 = vmatpush1.bf16.msra.mxu0 0
      %2086 = vmatprep.subr.bf16.mxu0 0
      %2087 = vmatpush1.bf16.msra.mxu0 0
      %2088 = vmatprep.subr.bf16.mxu0 0
      %2089 = vmatpush1.bf16.msra.mxu0 0
      %2090 = vmatprep.subr.bf16.mxu0 0
      %2091 = vmatpush1.bf16.msra.mxu0 0
      %2092 = vmatprep.subr.bf16.mxu0 0
      %2093 = vmatpush1.bf16.msra.mxu0 0
      %2094 = vmatprep.subr.bf16.mxu0 0
      %2095 = vmatpush1.bf16.msra.mxu0 0
      %2096 = vmatprep.subr.bf16.mxu0 0
      %2097 = vmatpush1.bf16.msra.mxu0 0
      %2098 = vmatprep.subr.bf16.mxu0 0
      %2099 = vmatpush1.bf16.msra.mxu0 0
      %2100 = vmatprep.subr.bf16.mxu0 0
      %2101 = vmatpush1.bf16.msra.mxu0 0
      %2102 = vmatprep.mubr.bf16.mxu0 0
      %2103 = vmatmul.mubr.bf16.gmra.mrb[0].mxu0 %v2056
      %v2104 = vpop.f32.mrb[0].mxu0
      %v2105 = vadd.f32 0.0, %v2104
      %v2106 = vpop.f32.mrb[0].mxu0
      %v2107 = vpop.f32.mrb[0].mxu0
      %v2108 = vadd.f32 0.0, %v2107
      %v2109 = vpop.f32.mrb[0].mxu0
      %2110 = vmatprep.mubr.bf16.mxu0 0
      %2111 = vmatmul.mubr.bf16.gmra.mrb[0].mxu0 %v2059
      %v2112 = vpop.f32.mrb[0].mxu0
      %v2113 = vadd.f32 0.0, %v2112
      %v2114 = vpop.f32.mrb[0].mxu0
      %v2115 = vpop.f32.mrb[0].mxu0
      %v2116 = vadd.f32 0.0, %v2115
      %v2117 = vpop.f32.mrb[0].mxu0
      %2118 = vmatprep.mubr.bf16.mxu0 0
      %2119 = vmatmul.mubr.bf16.gmra.mrb[0].mxu0 %v2062
      %v2120 = vpop.f32.mrb[0].mxu0
      %v2121 = vadd.f32 0.0, %v2120
      %v2122 = vpop.f32.mrb[0].mxu0
      %v2123 = vpop.f32.mrb[0].mxu0
      %v2124 = vadd.f32 0.0, %v2123
      %v2125 = vpop.f32.mrb[0].mxu0
      %2126 = vmatprep.mubr.bf16.mxu0 0
      %2127 = vmatmul.mubr.bf16.gmra.mrb[0].mxu0 %v2065
      %v2128 = vpop.f32.mrb[0].mxu0
      %v2129 = vadd.f32 0.0, %v2128
      %v2130 = vpop.f32.mrb[0].mxu0
      %v2131 = vpop.f32.mrb[0].mxu0
      %v2132 = vadd.f32 0.0, %v2131
      %v2133 = vpop.f32.mrb[0].mxu0
      %2134 = vdwg.mxu0
      %v2135 = vadd.f32 %v2033, %v2105
      %v2136 = vadd.f32 %v2034, %v2108
      %v2137 = vadd.f32 %v2035, %v2113
      %v2138 = vadd.f32 %v2036, %v2116
      %v2139 = vadd.f32 %v2037, %v2121
      %v2140 = vadd.f32 %v2038, %v2124
      %v2141 = vadd.f32 %v2039, %v2129
      %v2142 = vadd.f32 %v2040, %v2132
      %v2143 = vld [vmem:[%s1420] sm:$0xff]
      %v2144 = vld [vmem:[%s1420 + $0x10] sm:$0xff]
      %v2145 = vld [vmem:[%s1420 + $0x20] sm:$0xff]
      %v2146 = vld [vmem:[%s1420 + $0x30] sm:$0xff]
      %v2147 = vld [vmem:[%s1420 + $0x40] sm:$0xff]
      %v2148 = vld [vmem:[%s1420 + $0x50] sm:$0xff]
      %v2149 = vld [vmem:[%s1420 + $0x60] sm:$0xff]
      %v2150 = vld [vmem:[%s1420 + $0x70] sm:$0xff]
      %v2151 = vpack.c.bf16 %v2144, %v2143
      %v2152 = vpack.c.bf16 %v2146, %v2145
      %v2153 = vpack.c.bf16 %v2148, %v2147
      %v2154 = vpack.c.bf16 %v2150, %v2149
      %s2155 = scalar_lea.vmem %s6, 14
      %v2156 = vld [vmem:[%s2155] sm:$0x3]
      %v2158 = vsel %vm1360, %v2151, 0
      %v2161 = vsel %vm1360, %v2152, 0
      %v2164 = vsel %vm1360, %v2153, 0
      %v2167 = vsel %vm1360, %v2154, 0
      %v2170 = vsel %vm1484, %v2156, 0
      %2172 = vmatprep.subr.bf16.mxu0 0
      %2173 = vmatpush1.bf16.msra.mxu0 %v2170
      %2174 = vmatprep.subr.bf16.mxu0 0
      %2175 = vmatpush1.bf16.msra.mxu0 0
      %2176 = vmatprep.subr.bf16.mxu0 0
      %2177 = vmatpush1.bf16.msra.mxu0 0
      %2178 = vmatprep.subr.bf16.mxu0 0
      %2179 = vmatpush1.bf16.msra.mxu0 0
      %2180 = vmatprep.subr.bf16.mxu0 0
      %2181 = vmatpush1.bf16.msra.mxu0 0
      %2182 = vmatprep.subr.bf16.mxu0 0
      %2183 = vmatpush1.bf16.msra.mxu0 0
      %2184 = vmatprep.subr.bf16.mxu0 0
      %2185 = vmatpush1.bf16.msra.mxu0 0
      %2186 = vmatprep.subr.bf16.mxu0 0
      %2187 = vmatpush1.bf16.msra.mxu0 0
      %2188 = vmatprep.subr.bf16.mxu0 0
      %2189 = vmatpush1.bf16.msra.mxu0 0
      %2190 = vmatprep.subr.bf16.mxu0 0
      %2191 = vmatpush1.bf16.msra.mxu0 0
      %2192 = vmatprep.subr.bf16.mxu0 0
      %2193 = vmatpush1.bf16.msra.mxu0 0
      %2194 = vmatprep.subr.bf16.mxu0 0
      %2195 = vmatpush1.bf16.msra.mxu0 0
      %2196 = vmatprep.subr.bf16.mxu0 0
      %2197 = vmatpush1.bf16.msra.mxu0 0
      %2198 = vmatprep.subr.bf16.mxu0 0
      %2199 = vmatpush1.bf16.msra.mxu0 0
      %2200 = vmatprep.subr.bf16.mxu0 0
      %2201 = vmatpush1.bf16.msra.mxu0 0
      %2202 = vmatprep.subr.bf16.mxu0 0
      %2203 = vmatpush1.bf16.msra.mxu0 0
      %2204 = vmatprep.mubr.bf16.mxu0 0
      %2205 = vmatmul.mubr.bf16.gmra.mrb[0].mxu0 %v2158
      %v2206 = vpop.f32.mrb[0].mxu0
      %v2207 = vadd.f32 0.0, %v2206
      %v2208 = vpop.f32.mrb[0].mxu0
      %v2209 = vpop.f32.mrb[0].mxu0
      %v2210 = vadd.f32 0.0, %v2209
      %v2211 = vpop.f32.mrb[0].mxu0
      %2212 = vmatprep.mubr.bf16.mxu0 0
      %2213 = vmatmul.mubr.bf16.gmra.mrb[0].mxu0 %v2161
      %v2214 = vpop.f32.mrb[0].mxu0
      %v2215 = vadd.f32 0.0, %v2214
      %v2216 = vpop.f32.mrb[0].mxu0
      %v2217 = vpop.f32.mrb[0].mxu0
      %v2218 = vadd.f32 0.0, %v2217
      %v2219 = vpop.f32.mrb[0].mxu0
      %2220 = vmatprep.mubr.bf16.mxu0 0
      %2221 = vmatmul.mubr.bf16.gmra.mrb[0].mxu0 %v2164
      %v2222 = vpop.f32.mrb[0].mxu0
      %v2223 = vadd.f32 0.0, %v2222
      %v2224 = vpop.f32.mrb[0].mxu0
      %v2225 = vpop.f32.mrb[0].mxu0
      %v2226 = vadd.f32 0.0, %v2225
      %v2227 = vpop.f32.mrb[0].mxu0
      %2228 = vmatprep.mubr.bf16.mxu0 0
      %2229 = vmatmul.mubr.bf16.gmra.mrb[0].mxu0 %v2167
      %v2230 = vpop.f32.mrb[0].mxu0
      %v2231 = vadd.f32 0.0, %v2230
      %v2232 = vpop.f32.mrb[0].mxu0
      %v2233 = vpop.f32.mrb[0].mxu0
      %v2234 = vadd.f32 0.0, %v2233
      %v2235 = vpop.f32.mrb[0].mxu0
      %2236 = vdwg.mxu0
      %v2237 = vadd.f32 %v2135, %v2207
      %v2238 = vadd.f32 %v2136, %v2210
      %v2239 = vadd.f32 %v2137, %v2215
      %v2240 = vadd.f32 %v2138, %v2218
      %v2241 = vadd.f32 %v2139, %v2223
      %v2242 = vadd.f32 %v2140, %v2226
      %v2243 = vadd.f32 %v2141, %v2231
      %v2244 = vadd.f32 %v2142, %v2234
      %v2245 = vld [vmem:[%s1411 + $0x1] sm:$0xff]
      %v2246 = vld [vmem:[%s1411 + $0x11] sm:$0xff]
      %v2247 = vld [vmem:[%s1411 + $0x21] sm:$0xff]
      %v2248 = vld [vmem:[%s1411 + $0x31] sm:$0xff]
      %v2249 = vld [vmem:[%s1411 + $0x41] sm:$0xff]
      %v2250 = vld [vmem:[%s1411 + $0x51] sm:$0xff]
      %v2251 = vld [vmem:[%s1411 + $0x61] sm:$0xff]
      %v2252 = vld [vmem:[%s1411 + $0x71] sm:$0xff]
      %v2253 = vpack.c.bf16 %v2246, %v2245
      %v2254 = vpack.c.bf16 %v2248, %v2247
      %v2255 = vpack.c.bf16 %v2250, %v2249
      %v2256 = vpack.c.bf16 %v2252, %v2251
      %s2257 = scalar_lea.vmem %s6, 16
      %v2258 = vld [vmem:[%s2257] sm:$0x3]
      %v2260 = vsel %vm1360, %v2253, 0
      %v2263 = vsel %vm1360, %v2254, 0
      %v2266 = vsel %vm1360, %v2255, 0
      %v2269 = vsel %vm1360, %v2256, 0
      %v2272 = vsel %vm1484, %v2258, 0
      %2274 = vmatprep.subr.bf16.mxu0 0
      %2275 = vmatpush1.bf16.msra.mxu0 %v2272
      %2276 = vmatprep.subr.bf16.mxu0 0
      %2277 = vmatpush1.bf16.msra.mxu0 0
      %2278 = vmatprep.subr.bf16.mxu0 0
      %2279 = vmatpush1.bf16.msra.mxu0 0
      %2280 = vmatprep.subr.bf16.mxu0 0
      %2281 = vmatpush1.bf16.msra.mxu0 0
      %2282 = vmatprep.subr.bf16.mxu0 0
      %2283 = vmatpush1.bf16.msra.mxu0 0
      %2284 = vmatprep.subr.bf16.mxu0 0
      %2285 = vmatpush1.bf16.msra.mxu0 0
      %2286 = vmatprep.subr.bf16.mxu0 0
      %2287 = vmatpush1.bf16.msra.mxu0 0
      %2288 = vmatprep.subr.bf16.mxu0 0
      %2289 = vmatpush1.bf16.msra.mxu0 0
      %2290 = vmatprep.subr.bf16.mxu0 0
      %2291 = vmatpush1.bf16.msra.mxu0 0
      %2292 = vmatprep.subr.bf16.mxu0 0
      %2293 = vmatpush1.bf16.msra.mxu0 0
      %2294 = vmatprep.subr.bf16.mxu0 0
      %2295 = vmatpush1.bf16.msra.mxu0 0
      %2296 = vmatprep.subr.bf16.mxu0 0
      %2297 = vmatpush1.bf16.msra.mxu0 0
      %2298 = vmatprep.subr.bf16.mxu0 0
      %2299 = vmatpush1.bf16.msra.mxu0 0
      %2300 = vmatprep.subr.bf16.mxu0 0
      %2301 = vmatpush1.bf16.msra.mxu0 0
      %2302 = vmatprep.subr.bf16.mxu0 0
      %2303 = vmatpush1.bf16.msra.mxu0 0
      %2304 = vmatprep.subr.bf16.mxu0 0
      %2305 = vmatpush1.bf16.msra.mxu0 0
      %2306 = vmatprep.mubr.bf16.mxu0 0
      %2307 = vmatmul.mubr.bf16.gmra.mrb[0].mxu0 %v2260
      %v2308 = vpop.f32.mrb[0].mxu0
      %v2309 = vadd.f32 0.0, %v2308
      %v2310 = vpop.f32.mrb[0].mxu0
      %v2311 = vpop.f32.mrb[0].mxu0
      %v2312 = vadd.f32 0.0, %v2311
      %v2313 = vpop.f32.mrb[0].mxu0
      %2314 = vmatprep.mubr.bf16.mxu0 0
      %2315 = vmatmul.mubr.bf16.gmra.mrb[0].mxu0 %v2263
      %v2316 = vpop.f32.mrb[0].mxu0
      %v2317 = vadd.f32 0.0, %v2316
      %v2318 = vpop.f32.mrb[0].mxu0
      %v2319 = vpop.f32.mrb[0].mxu0
      %v2320 = vadd.f32 0.0, %v2319
      %v2321 = vpop.f32.mrb[0].mxu0
      %2322 = vmatprep.mubr.bf16.mxu0 0
      %2323 = vmatmul.mubr.bf16.gmra.mrb[0].mxu0 %v2266
      %v2324 = vpop.f32.mrb[0].mxu0
      %v2325 = vadd.f32 0.0, %v2324
      %v2326 = vpop.f32.mrb[0].mxu0
      %v2327 = vpop.f32.mrb[0].mxu0
      %v2328 = vadd.f32 0.0, %v2327
      %v2329 = vpop.f32.mrb[0].mxu0
      %2330 = vmatprep.mubr.bf16.mxu0 0
      %2331 = vmatmul.mubr.bf16.gmra.mrb[0].mxu0 %v2269
      %v2332 = vpop.f32.mrb[0].mxu0
      %v2333 = vadd.f32 0.0, %v2332
      %v2334 = vpop.f32.mrb[0].mxu0
      %v2335 = vpop.f32.mrb[0].mxu0
      %v2336 = vadd.f32 0.0, %v2335
      %v2337 = vpop.f32.mrb[0].mxu0
      %2338 = vdwg.mxu0
      %v2339 = vadd.f32 %v2237, %v2309
      %v2340 = vadd.f32 %v2238, %v2312
      %v2341 = vadd.f32 %v2239, %v2317
      %v2342 = vadd.f32 %v2240, %v2320
      %v2343 = vadd.f32 %v2241, %v2325
      %v2344 = vadd.f32 %v2242, %v2328
      %v2345 = vadd.f32 %v2243, %v2333
      %v2346 = vadd.f32 %v2244, %v2336
      %v2347 = vadd.f32 %v1320, %v2339
      %v2348 = vadd.f32 %v1321, %v2340
      %v2349 = vadd.f32 %v1322, %v2341
      %v2350 = vadd.f32 %v1323, %v2342
      %v2351 = vadd.f32 %v1324, %v2343
      %v2352 = vadd.f32 %v1325, %v2344
      %v2353 = vadd.f32 %v1326, %v2345
      %v2354 = vadd.f32 %v1327, %v2346
      %v2355 = vld [vmem:[%s7] sm:$0x1]
      %v2357 = vlaneseq
      %v2358 = vshrl.u32 %v2357, 7
      %v2359 = vsub.s32 0, %v2358
      %v2360 = vrot.slane %v2355, %v2359
      %v2362 = vadd.f32 %v2347, %v2360
      %v2363 = vadd.f32 %v2348, %v2360
      %v2364 = vadd.f32 %v2349, %v2360
      %v2365 = vadd.f32 %v2350, %v2360
      %v2366 = vadd.f32 %v2351, %v2360
      %v2367 = vadd.f32 %v2352, %v2360
      %v2368 = vadd.f32 %v2353, %v2360
      %v2369 = vadd.f32 %v2354, %v2360
      %2370 = vst.msk [vmem:[%s325] sm:$0xff] %vm373, %v2362
      %2371 = vst.msk [vmem:[%s325 + $0x8] sm:$0xff] %vm373, %v2363
      %2372 = vst.msk [vmem:[%s325 + $0x10] sm:$0xff] %vm373, %v2364
      %2373 = vst.msk [vmem:[%s325 + $0x18] sm:$0xff] %vm373, %v2365
      %2374 = vst.msk [vmem:[%s325 + $0x20] sm:$0xff] %vm373, %v2366
      %2375 = vst.msk [vmem:[%s325 + $0x28] sm:$0xff] %vm373, %v2367
      %2376 = vst.msk [vmem:[%s325 + $0x30] sm:$0xff] %vm373, %v2368
      %2377 = vst.msk [vmem:[%s325 + $0x38] sm:$0xff] %vm373, %v2369
      %p2378 = scmp.lt.s32.totalorder %s19, 1
      %s2379 = scalar_select %p2378, %s19, 1
      %s2380 = smul.addr %s2379, 8
      %s2381 = smul.addr %s2380, 8
      %s2382 = scalar_lea.vmem %s8, %s2381
      // Predicated region
      $region53: #{wide_dropout_block_forward.3} parent=51 // pred_check
        %p2383 = pneg %p215
      $region54: #{wide_dropout_block_forward.3} parent=51 // pred_check_branch
        %2385 = sbr.rel (%p2383) target = $region56
      $region55: #{wide_dropout_block_forward.3} parent=51 // pred_region
        _
      $region56: #{wide_dropout_block_forward.3} parent=51 // pred_fallthru
        _
    $region52: #{wide_dropout_block_forward.3} parent=5 // pred_fallthru
      _
    %p2386 = scmp.le.s32.totalorder 2, %s14
    // Predicated region
    $region57: #{wide_dropout_block_forward.3} parent=5 // pred_check
      %p2387 = pneg %p2386
    $region58: #{wide_dropout_block_forward.3} parent=5 // pred_check_branch
      %2389 = sbr.rel (%p2387) target = $region60
    $region59: #{wide_dropout_block_forward.3} parent=5 // pred_region
      %s2390 = ssub.s32 %s14, 2
      // Predicated region
      $region61: #{wide_dropout_block_forward.3} parent=59 // pred_check
        %p2391 = pneg %p221
      $region62: #{wide_dropout_block_forward.3} parent=59 // pred_check_branch
        %2393 = sbr.rel (%p2391) target = $region64
      $region63: #{wide_dropout_block_forward.3} parent=59 // pred_region
        %p2394 = scmp.lt.s32.totalorder %s20, 1
        %s2395 = scalar_select %p2394, %s20, 1
        %s2396 = smul.addr %s2395, 8
        %s2397 = smul.addr %s2396, 8
        %s2398 = scalar_lea.vmem %s8, %s2397
      $region64: #{wide_dropout_block_forward.3} parent=59 // pred_fallthru
        _
    $region60: #{wide_dropout_block_forward.3} parent=5 // pred_fallthru
      _
  $region6: #{wide_dropout_block_forward.3} parent=0 // loop_footer
    %s18 = sadd.s32 1, %s14
  $region7: #{wide_dropout_block_forward.3} parent=0 // loop_footer_branch
    %13 = sbr.rel target = $region3
  $region8: #{wide_dropout_block_forward.3} parent=0 // loop_exit
    _

</llo_original>
